<compile_context>
chip_gen: v6e
topology: v6e:2x2x1
jax: 0.10.0
libtpu: 0.0.40
codegen_flags: <defaults>
</compile_context>

<pallas_src>
import jax
import jax.numpy as jnp
from jax import lax
from jax.experimental import pallas as pl

# ----------------------- config (consistent with __init__) -------------------
IMG_SHAPE   = (1, 24, 24)   # (C, H, W)
CHANNELS    = 8
PRIMARY_DIM = 4
NUM_CLASSES = 10
OUT_DIM     = 16
DIM_REAL    = 62            # RealOrFake capsule dim = DIM_REAL - 10 = 52 (Conv1d(52,1,1))
NUM_ROUTING = 3
KSIZE       = 9
BATCH       = 2
BN_EPS      = 1e-5
SQ_EPS      = 1e-8

C_IN, H_IN, W_IN = IMG_SHAPE
H1 = H_IN - KSIZE + 1              # 16  conv1 output height/width
W1 = W_IN - KSIZE + 1              # 16
H2 = (H1 - KSIZE) // 2 + 1         # 4   primary conv output height/width
W2 = (W1 - KSIZE) // 2 + 1         # 4
LANES = CHANNELS * W1              # 128  conv1 lane layout: lane = c*W1 + wo
NUM_PRIMARY = CHANNELS * H2 * W2 // PRIMARY_DIM   # 32
REAL_DIM = DIM_REAL - 10           # 52
ND = NUM_CLASSES * OUT_DIM         # 160  lane-dense digit-caps width

# packed output slab layout (lane-dense, single writeback DMA)
PACK_W = 256
OFF_C = 0
OFF_R = OFF_C + ND                 # 160
OFF_N = OFF_R + REAL_DIM           # 212
OFF_P = OFF_N + NUM_CLASSES        # 222
PACK_PAD = PACK_W - (OFF_P + 1)    # 33

assert C_IN == 1                   # banded conv1 weight below assumes 1 input channel
assert W2 == PRIMARY_DIM           # the torch .view(B, -1, primary_dim) relies on this


# ----------------------------- in-kernel helpers ------------------------------
def _dot(a, b):
    return jnp.dot(a, b, preferred_element_type=jnp.float32)


def _squash_blocks(s, reduce_d, expand_n):
    """Block-wise squash of (B, N*D): capsule blocks of width D along lanes."""
    sq = _dot(s * s, reduce_d)                                      # (B, N)
    scale = (sq * pl.reciprocal(1.0 + sq, approx=True)) * lax.rsqrt(sq + SQ_EPS)
    return s * _dot(scale, expand_n)


def _squash_last(s):
    """Squash over the trailing axis (one capsule per row)."""
    sq = jnp.sum(s * s, axis=-1, keepdims=True)
    return s * ((sq * pl.reciprocal(1.0 + sq, approx=True)) * lax.rsqrt(sq + SQ_EPS))


def _routing_digits(u3, reduce_d, expand_n):
    """Dynamic routing on lane-dense u_hat (B, I, N*Dout); softmax over out-caps N."""
    Bx, I, nd = u3.shape
    N = reduce_d.shape[1]
    u2 = u3.reshape(Bx * I, nd)
    # r = 0: b_log == 0  =>  coupling c == 1/N  (softmax of zeros); skip the softmax.
    s = jnp.sum(u3, axis=1) * (1.0 / N)                             # (B, N*Dout)
    v = _squash_blocks(s, reduce_d, expand_n)
    b3 = _dot((u3 * v[:, None, :]).reshape(Bx * I, nd),
              reduce_d).reshape(Bx, I, N)                           # (B, I, N)
    for r in range(1, NUM_ROUTING):
        e = jnp.exp(b3 - jnp.max(b3, axis=-1, keepdims=True))
        c3 = e / jnp.sum(e, axis=-1, keepdims=True)                 # exact division
        cexp = _dot(c3.reshape(Bx * I, N), expand_n).reshape(Bx, I, nd)
        s = jnp.sum(cexp * u3, axis=1)                              # sublane I-reduce
        v = _squash_blocks(s, reduce_d, expand_n)
        if r != NUM_ROUTING - 1:
            b3 = b3 + _dot((u3 * v[:, None, :]).reshape(Bx * I, nd),
                           reduce_d).reshape(Bx, I, N)
    return v


# --------------------------------- the kernel ---------------------------------
def discriminator_kernel(x2_ref, t1_ref, b1_ref, gam_ref, bet_ref, gsel_ref,
                         gexp_ref, sel2_ref, m2_ref, b2_ref, wd_ref, rd_ref,
                         en_ref, wr_ref, wcr_ref, bcr_ref,
                         pcaps_ref, packed_ref):
    f32 = jnp.float32
    B = x2_ref.shape[0] // H_IN

    # ---- conv1: ONE batch-stacked matmul against the banded (24, 9*128) weight,
    #      then fold the 9 dh taps with shifted (16,128) adds.
    taps = _dot(x2_ref[...], t1_ref[...])                 # (B*H_in, K*128) = (48, 1152)
    parts = []
    for b in range(B):
        acc = taps[b * H_IN:b * H_IN + H1, 0:LANES]
        for dh in range(1, KSIZE):
            acc = acc + taps[b * H_IN + dh:b * H_IN + dh + H1,
                             dh * LANES:(dh + 1) * LANES]
        parts.append(acc)
    feat = jnp.concatenate(parts, axis=0) + b1_ref[...]   # (B*H1, 128) = (32, 128)

    # ---- BatchNorm2d (train-mode biased batch stats) + ReLU, fused per-lane affine
    cnt = float(B * H1 * W1)
    lane_sum = jnp.sum(feat, axis=0, keepdims=True)                 # (1, 128)
    lane_sq = jnp.sum(feat * feat, axis=0, keepdims=True)
    ch_mean = _dot(lane_sum, gsel_ref[...]) * (1.0 / cnt)           # (1, C)
    ch_sq = _dot(lane_sq, gsel_ref[...]) * (1.0 / cnt)
    ch_var = jnp.maximum(ch_sq - ch_mean * ch_mean, 0.0)            # clamp cancellation
    mean_l = _dot(ch_mean, gexp_ref[...])                           # (1, 128)
    inv_l = _dot(lax.rsqrt(ch_var + BN_EPS), gexp_ref[...])
    a_l = gam_ref[...] * inv_l
    c_l = bet_ref[...] - mean_l * a_l
    feat = jnp.maximum(feat * a_l + c_l, 0.0)

    # ---- PrimaryCapsules conv (stride 2): one 0/1 row-selection matmul gathers
    #      all (b, po, dh) rows, then one banded matmul over (dh, ci, wi).
    gathered = _dot(sel2_ref[...], feat)                  # (K*B*H2, 128) = (72, 128)
    lhs = jnp.concatenate(
        [gathered[dh * B * H2:(dh + 1) * B * H2, :] for dh in range(KSIZE)],
        axis=1)                                           # (B*H2, K*128) = (8, 1152)
    prim = _dot(lhs, m2_ref[...]) + b2_ref[...]           # (B*H2, C*W2) = (8, 32)

    # ---- capsule view (torch order: i = c*H2 + po) + squash
    p3 = jnp.concatenate(
        [prim[b * H2:(b + 1) * H2, c * W2:(c + 1) * W2]
         for b in range(B) for c in range(CHANNELS)],
        axis=0).reshape(B, NUM_PRIMARY, PRIMARY_DIM)      # (B, 32, 4)
    p3 = _squash_last(p3)
    pcaps_ref[...] = p3

    # ---- DigitCaps dynamic routing (lane-dense u_hat: (B, I, N*Dout) = (B, 32, 160))
    wd = wd_ref[...]                                      # (Din, I, N*Dout)
    u3 = wd[0][None, :, :] * p3[:, :, 0:1]
    for din in range(1, PRIMARY_DIM):
        u3 = u3 + wd[din][None, :, :] * p3[:, :, din:din + 1]
    rd = rd_ref[...]                                      # (160, 10) block reduce
    en = en_ref[...]                                      # (10, 160) block expand
    v = _routing_digits(u3, rd, en)                       # (B, 160)

    # extra squash + norm + (norm + 1) rescale (as in the torch forward)
    c_sq = _squash_blocks(v, rd, en)
    norm_c = jnp.sqrt(_dot(c_sq * c_sq, rd))              # (B, 10)
    c_caps = c_sq * _dot(norm_c + 1.0, en)                # (B, 160)

    # ---- RealOrFake routing: single output capsule => softmax over the singleton
    #      output axis is identically 1, so every routing iteration yields the same
    #      v; the stage collapses to one matmul + squash (exact same math).
    s2 = _dot(c_caps, wr_ref[...])                        # (B, 52)
    r_caps = _squash_last(s2)

    # ---- convR (Conv1d(52,1,1)) + sigmoid
    y = jnp.sum(r_caps * wcr_ref[...], axis=-1, keepdims=True) + bcr_ref[...]
    preds = 1.0 / (1.0 + jnp.exp(-y))                     # (B, 1), exact sigmoid

    # ---- single lane-dense packed output slab (c_caps | r_caps | norm_c | preds | pad)
    pad = jnp.zeros((B, PACK_PAD), f32)
    packed_ref[...] = jnp.concatenate([c_caps, r_caps, norm_c, preds, pad], axis=1)


# ------------------------- host-side weight plumbing ---------------------------
def _prepare_inputs(x, params):
    """Weight-only layout transforms (no activation im2col)."""
    f32 = jnp.float32
    B = x.shape[0]

    # batch-stacked input rows: (B*H_in, W_in) = (48, 24)
    x2 = x.astype(f32).reshape(B * H_IN, W_IN)

    # conv1 banded weight: t1[wi, dh*128 + c*W1 + wo] = w1[c, 0, dh, wi - wo]
    w1 = params["conv1_w"].astype(f32)                      # (C, 1, K, K)
    wi = jnp.arange(W_IN)
    wo = jnp.arange(W1)
    d1 = wi[:, None] - wo[None, :]                          # (24, 16)
    v1 = (d1 >= 0) & (d1 < KSIZE)
    g1 = jnp.take(w1[:, 0], jnp.where(v1, d1, 0), axis=2)   # (C, K, 24, 16)
    g1 = jnp.where(v1[None, None], g1, 0.0)
    t1 = g1.transpose(2, 1, 0, 3).reshape(W_IN, KSIZE * LANES)        # (24, 1152)

    # primary banded weight (stride 2):
    #   m2[dh*128 + ci*W1 + wi, c*W2 + qo] = w2[c, ci, dh, wi - 2*qo]
    w2 = params["prim_w"].astype(f32)                       # (C, C, K, K)
    wi1 = jnp.arange(W1)
    qo = jnp.arange(W2)
    d2 = wi1[:, None] - 2 * qo[None, :]                     # (16, 4)
    v2 = (d2 >= 0) & (d2 < KSIZE)
    g2 = jnp.take(w2, jnp.where(v2, d2, 0), axis=3)         # (C, C, K, 16, 4)
    g2 = jnp.where(v2[None, None, None], g2, 0.0)
    m2 = g2.transpose(2, 1, 3, 0, 4).reshape(KSIZE * LANES, CHANNELS * W2)  # (1152, 32)

    # primary-conv row selection: sel2[dh*B*H2 + b*H2 + po, b*H1 + 2*po + dh] = 1
    dh_g, b_g, po_g = jnp.meshgrid(jnp.arange(KSIZE), jnp.arange(B),
                                   jnp.arange(H2), indexing="ij")
    cols = (b_g * H1 + 2 * po_g + dh_g).reshape(-1, 1)      # (K*B*H2, 1)
    sel2 = (cols == jnp.arange(B * H1)[None, :]).astype(f32)

    # per-lane expansions & BN channel-selection matrices (lane = c*W1 + wo)
    b1_l = jnp.repeat(params["conv1_b"].reshape(-1).astype(f32), W1)[None, :]
    gam_l = jnp.repeat(params["bn_gamma"].reshape(-1).astype(f32), W1)[None, :]
    bet_l = jnp.repeat(params["bn_beta"].reshape(-1).astype(f32), W1)[None, :]
    b2_l = jnp.repeat(params["prim_b"].reshape(-1).astype(f32), W2)[None, :]
    gsel = (jnp.arange(LANES)[:, None] // W1
            == jnp.arange(CHANNELS)[None, :]).astype(f32)   # (128, C)
    gexp = gsel.T                                           # (C, 128)

    # lane-dense routing weights + block reduce / expand matrices
    wd = params["W_digits"].astype(f32)                     # (N, I, Dout, Din)
    wd_ld = wd.transpose(3, 1, 0, 2).reshape(PRIMARY_DIM, NUM_PRIMARY, ND)  # (4,32,160)
    rd = (jnp.arange(ND)[:, None] // OUT_DIM
          == jnp.arange(NUM_CLASSES)[None, :]).astype(f32)  # (160, 10)
    en = rd.T                                               # (10, 160)
    wr = params["W_real"].astype(f32)[0]                    # (10, 52, 16)
    wr_flat = wr.transpose(0, 2, 1).reshape(ND, REAL_DIM)   # (160, 52)

    wcr = params["convR_w"].astype(f32).reshape(1, REAL_DIM)  # (1, 52)
    bcr = params["convR_b"].astype(f32).reshape(1, 1)

    return (x2, t1, b1_l, gam_l, bet_l, gsel, gexp, sel2, m2, b2_l,
            wd_ld, rd, en, wr_flat, wcr, bcr)


@jax.jit
def discriminator_forward(x, params):
    B = x.shape[0]
    inputs = _prepare_inputs(x, params)
    out_shape = (
        jax.ShapeDtypeStruct((B, NUM_PRIMARY, PRIMARY_DIM), jnp.float32),  # p_caps
        jax.ShapeDtypeStruct((B, PACK_W), jnp.float32),                    # packed slab
    )
    p_caps, packed = pl.pallas_call(
        discriminator_kernel,
        out_shape=out_shape,
    )(*inputs)
    # host-side split of the lane-dense packed slab
    c_caps = packed[:, OFF_C:OFF_C + ND].reshape(B, NUM_CLASSES, OUT_DIM)
    r_caps = packed[:, OFF_R:OFF_R + REAL_DIM].reshape(B, 1, REAL_DIM)
    norm_c = packed[:, OFF_N:OFF_N + NUM_CLASSES]
    preds = packed[:, OFF_P:OFF_P + 1]
    return preds, p_caps, c_caps, r_caps, norm_c


# ------------------------------ parameter init --------------------------------
def init_params(key):
    ks = jax.random.split(key, 8)
    fan_in = C_IN * KSIZE * KSIZE
    fan_out = CHANNELS * KSIZE * KSIZE
    xavier_std = (2.0 / (fan_in + fan_out)) ** 0.5
    return {
        "conv1_w": xavier_std * jax.random.normal(
            ks[0], (CHANNELS, C_IN, KSIZE, KSIZE), jnp.float32),
        "conv1_b": 0.01 * jax.random.normal(ks[1], (1, CHANNELS), jnp.float32),
        "bn_gamma": jnp.ones((1, CHANNELS), jnp.float32),
        "bn_beta": jnp.zeros((1, CHANNELS), jnp.float32),
        "prim_w": ((2.0 / (CHANNELS * KSIZE * KSIZE)) ** 0.5) * jax.random.normal(
            ks[2], (CHANNELS, CHANNELS, KSIZE, KSIZE), jnp.float32),
        "prim_b": 0.01 * jax.random.normal(ks[3], (1, CHANNELS), jnp.float32),
        "W_digits": 0.01 * jax.random.normal(
            ks[4], (NUM_CLASSES, NUM_PRIMARY, OUT_DIM, PRIMARY_DIM), jnp.float32),
        "W_real": 0.01 * jax.random.normal(
            ks[5], (1, NUM_CLASSES, REAL_DIM, OUT_DIM), jnp.float32),
        "convR_w": (1.0 / REAL_DIM ** 0.5) * jax.random.normal(
            ks[6], (REAL_DIM, 1), jnp.float32),
        "convR_b": 0.01 * jax.random.normal(ks[7], (1, 1), jnp.float32),
    }


if __name__ == "__main__":
    key = jax.random.PRNGKey(0)
    kx, kp = jax.random.split(key)
    params = init_params(kp)
    x = jax.random.normal(kx, (BATCH,) + IMG_SHAPE, jnp.float32)

    preds, p_caps, c_caps, r_caps, norm_c = discriminator_forward(x, params)
    jax.block_until_ready((preds, p_caps, c_caps, r_caps, norm_c))

    assert preds.shape == (BATCH, 1)
    assert p_caps.shape == (BATCH, NUM_PRIMARY, PRIMARY_DIM)
    assert c_caps.shape == (BATCH, NUM_CLASSES, OUT_DIM)
    assert r_caps.shape == (BATCH, 1, REAL_DIM)
    assert norm_c.shape == (BATCH, NUM_CLASSES)
    assert bool(jnp.all(jnp.isfinite(preds)))
    assert bool(jnp.all(jnp.isfinite(p_caps)))
    assert bool(jnp.all(jnp.isfinite(c_caps)))
    assert bool(jnp.all(jnp.isfinite(r_caps)))
    assert bool(jnp.all(jnp.isfinite(norm_c)))
    print("KERNEL_OK")
</pallas_src>

<mosaic_0001>
module attributes {stable_mosaic.version = 11 : i64} {
  func.func @discriminator_kernel(%arg0: memref<48x24xf32, #tpu.memory_space<vmem>>, %arg1: memref<24x1152xf32, #tpu.memory_space<vmem>>, %arg2: memref<1x128xf32, #tpu.memory_space<vmem>>, %arg3: memref<1x128xf32, #tpu.memory_space<vmem>>, %arg4: memref<1x128xf32, #tpu.memory_space<vmem>>, %arg5: memref<128x8xf32, #tpu.memory_space<vmem>>, %arg6: memref<8x128xf32, #tpu.memory_space<vmem>>, %arg7: memref<72x32xf32, #tpu.memory_space<vmem>>, %arg8: memref<1152x32xf32, #tpu.memory_space<vmem>>, %arg9: memref<1x32xf32, #tpu.memory_space<vmem>>, %arg10: memref<4x32x160xf32, #tpu.memory_space<vmem>>, %arg11: memref<160x10xf32, #tpu.memory_space<vmem>>, %arg12: memref<10x160xf32, #tpu.memory_space<vmem>>, %arg13: memref<160x52xf32, #tpu.memory_space<vmem>>, %arg14: memref<1x52xf32, #tpu.memory_space<vmem>>, %arg15: memref<1x1xf32, #tpu.memory_space<vmem>>, %arg16: memref<2x32x4xf32, #tpu.memory_space<vmem>>, %arg17: memref<2x256xf32, #tpu.memory_space<vmem>>) attributes {dimension_semantics = [], scalar_prefetch = 0 : i64, scratch_operands = 0 : i64, tpu.core_type = #tpu.core_type<tc>} {
    %c0 = arith.constant 0 : index
    %c0_0 = arith.constant 0 : index
    %0 = vector.load %arg0[%c0, %c0_0] : memref<48x24xf32, #tpu.memory_space<vmem>>, vector<48x24xf32>
    %c0_1 = arith.constant 0 : index
    %c0_2 = arith.constant 0 : index
    %1 = vector.load %arg1[%c0_1, %c0_2] : memref<24x1152xf32, #tpu.memory_space<vmem>>, vector<24x1152xf32>
    %cst = arith.constant dense<0.000000e+00> : vector<48x1152xf32>
    %2 = tpu.matmul %0, %1, %cst {dimension_numbers = #tpu.dot_dimension_numbers<[1], [0], [0], [1], [0, 0, 1, 1], [], []>} : vector<48x24xf32>, vector<24x1152xf32>, vector<48x1152xf32> -> vector<48x1152xf32>
    %3 = vector.extract_strided_slice %2 {offsets = [0, 0], sizes = [16, 128], strides = [1, 1]} : vector<48x1152xf32> to vector<16x128xf32>
    %4 = vector.extract_strided_slice %2 {offsets = [1, 128], sizes = [16, 128], strides = [1, 1]} : vector<48x1152xf32> to vector<16x128xf32>
    %5 = arith.addf %3, %4 : vector<16x128xf32>
    %6 = vector.extract_strided_slice %2 {offsets = [2, 256], sizes = [16, 128], strides = [1, 1]} : vector<48x1152xf32> to vector<16x128xf32>
    %7 = arith.addf %5, %6 : vector<16x128xf32>
    %8 = vector.extract_strided_slice %2 {offsets = [3, 384], sizes = [16, 128], strides = [1, 1]} : vector<48x1152xf32> to vector<16x128xf32>
    %9 = arith.addf %7, %8 : vector<16x128xf32>
    %10 = vector.extract_strided_slice %2 {offsets = [4, 512], sizes = [16, 128], strides = [1, 1]} : vector<48x1152xf32> to vector<16x128xf32>
    %11 = arith.addf %9, %10 : vector<16x128xf32>
    %12 = vector.extract_strided_slice %2 {offsets = [5, 640], sizes = [16, 128], strides = [1, 1]} : vector<48x1152xf32> to vector<16x128xf32>
    %13 = arith.addf %11, %12 : vector<16x128xf32>
    %14 = vector.extract_strided_slice %2 {offsets = [6, 768], sizes = [16, 128], strides = [1, 1]} : vector<48x1152xf32> to vector<16x128xf32>
    %15 = arith.addf %13, %14 : vector<16x128xf32>
    %16 = vector.extract_strided_slice %2 {offsets = [7, 896], sizes = [16, 128], strides = [1, 1]} : vector<48x1152xf32> to vector<16x128xf32>
    %17 = arith.addf %15, %16 : vector<16x128xf32>
    %18 = vector.extract_strided_slice %2 {offsets = [8, 1024], sizes = [16, 128], strides = [1, 1]} : vector<48x1152xf32> to vector<16x128xf32>
    %19 = arith.addf %17, %18 : vector<16x128xf32>
    %20 = vector.extract_strided_slice %2 {offsets = [24, 0], sizes = [16, 128], strides = [1, 1]} : vector<48x1152xf32> to vector<16x128xf32>
    %21 = vector.extract_strided_slice %2 {offsets = [25, 128], sizes = [16, 128], strides = [1, 1]} : vector<48x1152xf32> to vector<16x128xf32>
    %22 = arith.addf %20, %21 : vector<16x128xf32>
    %23 = vector.extract_strided_slice %2 {offsets = [26, 256], sizes = [16, 128], strides = [1, 1]} : vector<48x1152xf32> to vector<16x128xf32>
    %24 = arith.addf %22, %23 : vector<16x128xf32>
    %25 = vector.extract_strided_slice %2 {offsets = [27, 384], sizes = [16, 128], strides = [1, 1]} : vector<48x1152xf32> to vector<16x128xf32>
    %26 = arith.addf %24, %25 : vector<16x128xf32>
    %27 = vector.extract_strided_slice %2 {offsets = [28, 512], sizes = [16, 128], strides = [1, 1]} : vector<48x1152xf32> to vector<16x128xf32>
    %28 = arith.addf %26, %27 : vector<16x128xf32>
    %29 = vector.extract_strided_slice %2 {offsets = [29, 640], sizes = [16, 128], strides = [1, 1]} : vector<48x1152xf32> to vector<16x128xf32>
    %30 = arith.addf %28, %29 : vector<16x128xf32>
    %31 = vector.extract_strided_slice %2 {offsets = [30, 768], sizes = [16, 128], strides = [1, 1]} : vector<48x1152xf32> to vector<16x128xf32>
    %32 = arith.addf %30, %31 : vector<16x128xf32>
    %33 = vector.extract_strided_slice %2 {offsets = [31, 896], sizes = [16, 128], strides = [1, 1]} : vector<48x1152xf32> to vector<16x128xf32>
    %34 = arith.addf %32, %33 : vector<16x128xf32>
    %35 = vector.extract_strided_slice %2 {offsets = [32, 1024], sizes = [16, 128], strides = [1, 1]} : vector<48x1152xf32> to vector<16x128xf32>
    %36 = arith.addf %34, %35 : vector<16x128xf32>
    %37 = tpu.concatenate %19, %36 in 0 : vector<16x128xf32>, vector<16x128xf32> -> vector<32x128xf32>
    %c0_3 = arith.constant 0 : index
    %c0_4 = arith.constant 0 : index
    %38 = vector.load %arg2[%c0_3, %c0_4] : memref<1x128xf32, #tpu.memory_space<vmem>>, vector<1x128xf32>
    %39 = vector.broadcast %38 : vector<1x128xf32> to vector<32x128xf32>
    %40 = arith.addf %37, %39 : vector<32x128xf32>
    %cst_5 = arith.constant dense<0.000000e+00> : vector<128xf32>
    %41 = vector.multi_reduction <add>, %40, %cst_5 [0] : vector<32x128xf32> to vector<128xf32>
    %42 = vector.shape_cast %41 : vector<128xf32> to vector<1x128xf32>
    %43 = arith.mulf %40, %40 : vector<32x128xf32>
    %cst_6 = arith.constant dense<0.000000e+00> : vector<128xf32>
    %44 = vector.multi_reduction <add>, %43, %cst_6 [0] : vector<32x128xf32> to vector<128xf32>
    %45 = vector.shape_cast %44 : vector<128xf32> to vector<1x128xf32>
    %c0_7 = arith.constant 0 : index
    %c0_8 = arith.constant 0 : index
    %46 = vector.load %arg5[%c0_7, %c0_8] : memref<128x8xf32, #tpu.memory_space<vmem>>, vector<128x8xf32>
    %cst_9 = arith.constant dense<0.000000e+00> : vector<1x8xf32>
    %47 = tpu.matmul %42, %46, %cst_9 {dimension_numbers = #tpu.dot_dimension_numbers<[1], [0], [0], [1], [0, 0, 1, 1], [], []>} : vector<1x128xf32>, vector<128x8xf32>, vector<1x8xf32> -> vector<1x8xf32>
    %cst_10 = arith.constant 0.001953125 : f32
    %48 = vector.broadcast %cst_10 : f32 to vector<1x8xf32>
    %49 = arith.mulf %47, %48 : vector<1x8xf32>
    %c0_11 = arith.constant 0 : index
    %c0_12 = arith.constant 0 : index
    %50 = vector.load %arg5[%c0_11, %c0_12] : memref<128x8xf32, #tpu.memory_space<vmem>>, vector<128x8xf32>
    %cst_13 = arith.constant dense<0.000000e+00> : vector<1x8xf32>
    %51 = tpu.matmul %45, %50, %cst_13 {dimension_numbers = #tpu.dot_dimension_numbers<[1], [0], [0], [1], [0, 0, 1, 1], [], []>} : vector<1x128xf32>, vector<128x8xf32>, vector<1x8xf32> -> vector<1x8xf32>
    %cst_14 = arith.constant 0.001953125 : f32
    %52 = vector.broadcast %cst_14 : f32 to vector<1x8xf32>
    %53 = arith.mulf %51, %52 : vector<1x8xf32>
    %54 = arith.mulf %49, %49 : vector<1x8xf32>
    %55 = arith.subf %53, %54 : vector<1x8xf32>
    %cst_15 = arith.constant 0.000000e+00 : f32
    %56 = vector.broadcast %cst_15 : f32 to vector<1x8xf32>
    %57 = arith.maximumf %55, %56 : vector<1x8xf32>
    %c0_16 = arith.constant 0 : index
    %c0_17 = arith.constant 0 : index
    %58 = vector.load %arg6[%c0_16, %c0_17] : memref<8x128xf32, #tpu.memory_space<vmem>>, vector<8x128xf32>
    %cst_18 = arith.constant dense<0.000000e+00> : vector<1x128xf32>
    %59 = tpu.matmul %49, %58, %cst_18 {dimension_numbers = #tpu.dot_dimension_numbers<[1], [0], [0], [1], [0, 0, 1, 1], [], []>} : vector<1x8xf32>, vector<8x128xf32>, vector<1x128xf32> -> vector<1x128xf32>
    %cst_19 = arith.constant 9.99999974E-6 : f32
    %60 = vector.broadcast %cst_19 : f32 to vector<1x8xf32>
    %61 = arith.addf %57, %60 : vector<1x8xf32>
    %62 = math.rsqrt %61 : vector<1x8xf32>
    %c0_20 = arith.constant 0 : index
    %c0_21 = arith.constant 0 : index
    %63 = vector.load %arg6[%c0_20, %c0_21] : memref<8x128xf32, #tpu.memory_space<vmem>>, vector<8x128xf32>
    %cst_22 = arith.constant dense<0.000000e+00> : vector<1x128xf32>
    %64 = tpu.matmul %62, %63, %cst_22 {dimension_numbers = #tpu.dot_dimension_numbers<[1], [0], [0], [1], [0, 0, 1, 1], [], []>} : vector<1x8xf32>, vector<8x128xf32>, vector<1x128xf32> -> vector<1x128xf32>
    %c0_23 = arith.constant 0 : index
    %c0_24 = arith.constant 0 : index
    %65 = vector.load %arg3[%c0_23, %c0_24] : memref<1x128xf32, #tpu.memory_space<vmem>>, vector<1x128xf32>
    %66 = arith.mulf %65, %64 : vector<1x128xf32>
    %c0_25 = arith.constant 0 : index
    %c0_26 = arith.constant 0 : index
    %67 = vector.load %arg4[%c0_25, %c0_26] : memref<1x128xf32, #tpu.memory_space<vmem>>, vector<1x128xf32>
    %68 = arith.mulf %59, %66 : vector<1x128xf32>
    %69 = arith.subf %67, %68 : vector<1x128xf32>
    %70 = vector.broadcast %66 : vector<1x128xf32> to vector<32x128xf32>
    %71 = arith.mulf %40, %70 : vector<32x128xf32>
    %72 = vector.broadcast %69 : vector<1x128xf32> to vector<32x128xf32>
    %73 = arith.addf %71, %72 : vector<32x128xf32>
    %cst_27 = arith.constant 0.000000e+00 : f32
    %74 = vector.broadcast %cst_27 : f32 to vector<32x128xf32>
    %75 = arith.maximumf %73, %74 : vector<32x128xf32>
    %c0_28 = arith.constant 0 : index
    %c0_29 = arith.constant 0 : index
    %76 = vector.load %arg7[%c0_28, %c0_29] : memref<72x32xf32, #tpu.memory_space<vmem>>, vector<72x32xf32>
    %cst_30 = arith.constant dense<0.000000e+00> : vector<72x128xf32>
    %77 = tpu.matmul %76, %75, %cst_30 {dimension_numbers = #tpu.dot_dimension_numbers<[1], [0], [0], [1], [0, 0, 1, 1], [], []>} : vector<72x32xf32>, vector<32x128xf32>, vector<72x128xf32> -> vector<72x128xf32>
    %78 = vector.extract_strided_slice %77 {offsets = [0, 0], sizes = [8, 128], strides = [1, 1]} : vector<72x128xf32> to vector<8x128xf32>
    %79 = vector.extract_strided_slice %77 {offsets = [8, 0], sizes = [8, 128], strides = [1, 1]} : vector<72x128xf32> to vector<8x128xf32>
    %80 = vector.extract_strided_slice %77 {offsets = [16, 0], sizes = [8, 128], strides = [1, 1]} : vector<72x128xf32> to vector<8x128xf32>
    %81 = vector.extract_strided_slice %77 {offsets = [24, 0], sizes = [8, 128], strides = [1, 1]} : vector<72x128xf32> to vector<8x128xf32>
    %82 = vector.extract_strided_slice %77 {offsets = [32, 0], sizes = [8, 128], strides = [1, 1]} : vector<72x128xf32> to vector<8x128xf32>
    %83 = vector.extract_strided_slice %77 {offsets = [40, 0], sizes = [8, 128], strides = [1, 1]} : vector<72x128xf32> to vector<8x128xf32>
    %84 = vector.extract_strided_slice %77 {offsets = [48, 0], sizes = [8, 128], strides = [1, 1]} : vector<72x128xf32> to vector<8x128xf32>
    %85 = vector.extract_strided_slice %77 {offsets = [56, 0], sizes = [8, 128], strides = [1, 1]} : vector<72x128xf32> to vector<8x128xf32>
    %86 = vector.extract_strided_slice %77 {offsets = [64, 0], sizes = [8, 128], strides = [1, 1]} : vector<72x128xf32> to vector<8x128xf32>
    %87 = tpu.concatenate %78, %79, %80, %81, %82, %83, %84, %85, %86 in 1 : vector<8x128xf32>, vector<8x128xf32>, vector<8x128xf32>, vector<8x128xf32>, vector<8x128xf32>, vector<8x128xf32>, vector<8x128xf32>, vector<8x128xf32>, vector<8x128xf32> -> vector<8x1152xf32>
    %c0_31 = arith.constant 0 : index
    %c0_32 = arith.constant 0 : index
    %88 = vector.load %arg8[%c0_31, %c0_32] : memref<1152x32xf32, #tpu.memory_space<vmem>>, vector<1152x32xf32>
    %cst_33 = arith.constant dense<0.000000e+00> : vector<8x32xf32>
    %89 = tpu.matmul %87, %88, %cst_33 {dimension_numbers = #tpu.dot_dimension_numbers<[1], [0], [0], [1], [0, 0, 1, 1], [], []>} : vector<8x1152xf32>, vector<1152x32xf32>, vector<8x32xf32> -> vector<8x32xf32>
    %c0_34 = arith.constant 0 : index
    %c0_35 = arith.constant 0 : index
    %90 = vector.load %arg9[%c0_34, %c0_35] : memref<1x32xf32, #tpu.memory_space<vmem>>, vector<1x32xf32>
    %91 = vector.broadcast %90 : vector<1x32xf32> to vector<8x32xf32>
    %92 = arith.addf %89, %91 : vector<8x32xf32>
    %93 = vector.extract_strided_slice %92 {offsets = [0, 0], sizes = [4, 4], strides = [1, 1]} : vector<8x32xf32> to vector<4x4xf32>
    %94 = vector.extract_strided_slice %92 {offsets = [0, 4], sizes = [4, 4], strides = [1, 1]} : vector<8x32xf32> to vector<4x4xf32>
    %95 = vector.extract_strided_slice %92 {offsets = [0, 8], sizes = [4, 4], strides = [1, 1]} : vector<8x32xf32> to vector<4x4xf32>
    %96 = vector.extract_strided_slice %92 {offsets = [0, 12], sizes = [4, 4], strides = [1, 1]} : vector<8x32xf32> to vector<4x4xf32>
    %97 = vector.extract_strided_slice %92 {offsets = [0, 16], sizes = [4, 4], strides = [1, 1]} : vector<8x32xf32> to vector<4x4xf32>
    %98 = vector.extract_strided_slice %92 {offsets = [0, 20], sizes = [4, 4], strides = [1, 1]} : vector<8x32xf32> to vector<4x4xf32>
    %99 = vector.extract_strided_slice %92 {offsets = [0, 24], sizes = [4, 4], strides = [1, 1]} : vector<8x32xf32> to vector<4x4xf32>
    %100 = vector.extract_strided_slice %92 {offsets = [0, 28], sizes = [4, 4], strides = [1, 1]} : vector<8x32xf32> to vector<4x4xf32>
    %101 = vector.extract_strided_slice %92 {offsets = [4, 0], sizes = [4, 4], strides = [1, 1]} : vector<8x32xf32> to vector<4x4xf32>
    %102 = vector.extract_strided_slice %92 {offsets = [4, 4], sizes = [4, 4], strides = [1, 1]} : vector<8x32xf32> to vector<4x4xf32>
    %103 = vector.extract_strided_slice %92 {offsets = [4, 8], sizes = [4, 4], strides = [1, 1]} : vector<8x32xf32> to vector<4x4xf32>
    %104 = vector.extract_strided_slice %92 {offsets = [4, 12], sizes = [4, 4], strides = [1, 1]} : vector<8x32xf32> to vector<4x4xf32>
    %105 = vector.extract_strided_slice %92 {offsets = [4, 16], sizes = [4, 4], strides = [1, 1]} : vector<8x32xf32> to vector<4x4xf32>
    %106 = vector.extract_strided_slice %92 {offsets = [4, 20], sizes = [4, 4], strides = [1, 1]} : vector<8x32xf32> to vector<4x4xf32>
    %107 = vector.extract_strided_slice %92 {offsets = [4, 24], sizes = [4, 4], strides = [1, 1]} : vector<8x32xf32> to vector<4x4xf32>
    %108 = vector.extract_strided_slice %92 {offsets = [4, 28], sizes = [4, 4], strides = [1, 1]} : vector<8x32xf32> to vector<4x4xf32>
    %109 = tpu.concatenate %93, %94, %95, %96, %97, %98, %99, %100, %101, %102, %103, %104, %105, %106, %107, %108 in 0 : vector<4x4xf32>, vector<4x4xf32>, vector<4x4xf32>, vector<4x4xf32>, vector<4x4xf32>, vector<4x4xf32>, vector<4x4xf32>, vector<4x4xf32>, vector<4x4xf32>, vector<4x4xf32>, vector<4x4xf32>, vector<4x4xf32>, vector<4x4xf32>, vector<4x4xf32>, vector<4x4xf32>, vector<4x4xf32> -> vector<64x4xf32>
    %110 = vector.shape_cast %109 : vector<64x4xf32> to vector<2x32x4xf32>
    %111 = arith.mulf %110, %110 : vector<2x32x4xf32>
    %cst_36 = arith.constant dense<0.000000e+00> : vector<2x32xf32>
    %112 = vector.multi_reduction <add>, %111, %cst_36 [2] : vector<2x32x4xf32> to vector<2x32xf32>
    %113 = vector.shape_cast %112 : vector<2x32xf32> to vector<2x32x1xf32>
    %cst_37 = arith.constant 1.000000e+00 : f32
    %114 = vector.broadcast %cst_37 : f32 to vector<2x32x1xf32>
    %115 = arith.addf %114, %113 : vector<2x32x1xf32>
    %116 = tpu.reciprocal %115 {approx = true} : vector<2x32x1xf32> -> vector<2x32x1xf32>
    %117 = arith.mulf %113, %116 : vector<2x32x1xf32>
    %cst_38 = arith.constant 9.99999993E-9 : f32
    %118 = vector.broadcast %cst_38 : f32 to vector<2x32x1xf32>
    %119 = arith.addf %113, %118 : vector<2x32x1xf32>
    %120 = math.rsqrt %119 : vector<2x32x1xf32>
    %121 = arith.mulf %117, %120 : vector<2x32x1xf32>
    %122 = vector.broadcast %121 : vector<2x32x1xf32> to vector<2x32x4xf32>
    %123 = arith.mulf %110, %122 : vector<2x32x4xf32>
    %c0_39 = arith.constant 0 : index
    %c0_40 = arith.constant 0 : index
    %c0_41 = arith.constant 0 : index
    %124 = vector.load %arg16[%c0_39, %c0_40, %c0_41] : memref<2x32x4xf32, #tpu.memory_space<vmem>>, vector<2x32x4xf32>
    tpu.vector_store %arg16[%c0_39, %c0_40, %c0_41], %123 {strides = array<i32>} : memref<2x32x4xf32, #tpu.memory_space<vmem>>, vector<2x32x4xf32>,
    %c0_42 = arith.constant 0 : index
    %c0_43 = arith.constant 0 : index
    %c0_44 = arith.constant 0 : index
    %125 = vector.load %arg10[%c0_42, %c0_43, %c0_44] : memref<4x32x160xf32, #tpu.memory_space<vmem>>, vector<4x32x160xf32>
    %126 = vector.extract_strided_slice %125 {offsets = [0, 0, 0], sizes = [1, 32, 160], strides = [1, 1, 1]} : vector<4x32x160xf32> to vector<1x32x160xf32>
    %127 = vector.shape_cast %126 : vector<1x32x160xf32> to vector<32x160xf32>
    %128 = vector.shape_cast %127 : vector<32x160xf32> to vector<1x32x160xf32>
    %129 = vector.extract_strided_slice %123 {offsets = [0, 0, 0], sizes = [2, 32, 1], strides = [1, 1, 1]} : vector<2x32x4xf32> to vector<2x32x1xf32>
    %130 = vector.broadcast %128 : vector<1x32x160xf32> to vector<2x32x160xf32>
    %131 = vector.broadcast %129 : vector<2x32x1xf32> to vector<2x32x160xf32>
    %132 = arith.mulf %130, %131 : vector<2x32x160xf32>
    %133 = vector.extract_strided_slice %125 {offsets = [1, 0, 0], sizes = [1, 32, 160], strides = [1, 1, 1]} : vector<4x32x160xf32> to vector<1x32x160xf32>
    %134 = vector.shape_cast %133 : vector<1x32x160xf32> to vector<32x160xf32>
    %135 = vector.shape_cast %134 : vector<32x160xf32> to vector<1x32x160xf32>
    %136 = vector.extract_strided_slice %123 {offsets = [0, 0, 1], sizes = [2, 32, 1], strides = [1, 1, 1]} : vector<2x32x4xf32> to vector<2x32x1xf32>
    %137 = vector.broadcast %135 : vector<1x32x160xf32> to vector<2x32x160xf32>
    %138 = vector.broadcast %136 : vector<2x32x1xf32> to vector<2x32x160xf32>
    %139 = arith.mulf %137, %138 : vector<2x32x160xf32>
    %140 = arith.addf %132, %139 : vector<2x32x160xf32>
    %141 = vector.extract_strided_slice %125 {offsets = [2, 0, 0], sizes = [1, 32, 160], strides = [1, 1, 1]} : vector<4x32x160xf32> to vector<1x32x160xf32>
    %142 = vector.shape_cast %141 : vector<1x32x160xf32> to vector<32x160xf32>
    %143 = vector.shape_cast %142 : vector<32x160xf32> to vector<1x32x160xf32>
    %144 = vector.extract_strided_slice %123 {offsets = [0, 0, 2], sizes = [2, 32, 1], strides = [1, 1, 1]} : vector<2x32x4xf32> to vector<2x32x1xf32>
    %145 = vector.broadcast %143 : vector<1x32x160xf32> to vector<2x32x160xf32>
    %146 = vector.broadcast %144 : vector<2x32x1xf32> to vector<2x32x160xf32>
    %147 = arith.mulf %145, %146 : vector<2x32x160xf32>
    %148 = arith.addf %140, %147 : vector<2x32x160xf32>
    %149 = vector.extract_strided_slice %125 {offsets = [3, 0, 0], sizes = [1, 32, 160], strides = [1, 1, 1]} : vector<4x32x160xf32> to vector<1x32x160xf32>
    %150 = vector.shape_cast %149 : vector<1x32x160xf32> to vector<32x160xf32>
    %151 = vector.shape_cast %150 : vector<32x160xf32> to vector<1x32x160xf32>
    %152 = vector.extract_strided_slice %123 {offsets = [0, 0, 3], sizes = [2, 32, 1], strides = [1, 1, 1]} : vector<2x32x4xf32> to vector<2x32x1xf32>
    %153 = vector.broadcast %151 : vector<1x32x160xf32> to vector<2x32x160xf32>
    %154 = vector.broadcast %152 : vector<2x32x1xf32> to vector<2x32x160xf32>
    %155 = arith.mulf %153, %154 : vector<2x32x160xf32>
    %156 = arith.addf %148, %155 : vector<2x32x160xf32>
    %c0_45 = arith.constant 0 : index
    %c0_46 = arith.constant 0 : index
    %157 = vector.load %arg11[%c0_45, %c0_46] : memref<160x10xf32, #tpu.memory_space<vmem>>, vector<160x10xf32>
    %c0_47 = arith.constant 0 : index
    %c0_48 = arith.constant 0 : index
    %158 = vector.load %arg12[%c0_47, %c0_48] : memref<10x160xf32, #tpu.memory_space<vmem>>, vector<10x160xf32>
    %cst_49 = arith.constant dense<0.000000e+00> : vector<2x160xf32>
    %159 = vector.multi_reduction <add>, %156, %cst_49 [1] : vector<2x32x160xf32> to vector<2x160xf32>
    %cst_50 = arith.constant 1.000000e-01 : f32
    %160 = vector.broadcast %cst_50 : f32 to vector<2x160xf32>
    %161 = arith.mulf %159, %160 : vector<2x160xf32>
    %162 = arith.mulf %161, %161 : vector<2x160xf32>
    %cst_51 = arith.constant dense<0.000000e+00> : vector<2x10xf32>
    %163 = tpu.matmul %162, %157, %cst_51 {dimension_numbers = #tpu.dot_dimension_numbers<[1], [0], [0], [1], [0, 0, 1, 1], [], []>} : vector<2x160xf32>, vector<160x10xf32>, vector<2x10xf32> -> vector<2x10xf32>
    %cst_52 = arith.constant 1.000000e+00 : f32
    %164 = vector.broadcast %cst_52 : f32 to vector<2x10xf32>
    %165 = arith.addf %164, %163 : vector<2x10xf32>
    %166 = tpu.reciprocal %165 {approx = true} : vector<2x10xf32> -> vector<2x10xf32>
    %167 = arith.mulf %163, %166 : vector<2x10xf32>
    %cst_53 = arith.constant 9.99999993E-9 : f32
    %168 = vector.broadcast %cst_53 : f32 to vector<2x10xf32>
    %169 = arith.addf %163, %168 : vector<2x10xf32>
    %170 = math.rsqrt %169 : vector<2x10xf32>
    %171 = arith.mulf %167, %170 : vector<2x10xf32>
    %cst_54 = arith.constant dense<0.000000e+00> : vector<2x160xf32>
    %172 = tpu.matmul %171, %158, %cst_54 {dimension_numbers = #tpu.dot_dimension_numbers<[1], [0], [0], [1], [0, 0, 1, 1], [], []>} : vector<2x10xf32>, vector<10x160xf32>, vector<2x160xf32> -> vector<2x160xf32>
    %173 = arith.mulf %161, %172 : vector<2x160xf32>
    %174 = vector.shape_cast %173 : vector<2x160xf32> to vector<2x1x160xf32>
    %175 = vector.broadcast %174 : vector<2x1x160xf32> to vector<2x32x160xf32>
    %176 = arith.mulf %156, %175 : vector<2x32x160xf32>
    %177 = vector.shape_cast %176 : vector<2x32x160xf32> to vector<64x160xf32>
    %cst_55 = arith.constant dense<0.000000e+00> : vector<64x10xf32>
    %178 = tpu.matmul %177, %157, %cst_55 {dimension_numbers = #tpu.dot_dimension_numbers<[1], [0], [0], [1], [0, 0, 1, 1], [], []>} : vector<64x160xf32>, vector<160x10xf32>, vector<64x10xf32> -> vector<64x10xf32>
    %179 = vector.shape_cast %178 : vector<64x10xf32> to vector<2x32x10xf32>
    %cst_56 = arith.constant dense<0xFF800000> : vector<2x32xf32>
    %180 = vector.multi_reduction <maximumf>, %179, %cst_56 [2] : vector<2x32x10xf32> to vector<2x32xf32>
    %181 = vector.shape_cast %180 : vector<2x32xf32> to vector<2x32x1xf32>
    %182 = vector.broadcast %181 : vector<2x32x1xf32> to vector<2x32x10xf32>
    %183 = arith.subf %179, %182 : vector<2x32x10xf32>
    %184 = math.exp %183 : vector<2x32x10xf32>
    %cst_57 = arith.constant dense<0.000000e+00> : vector<2x32xf32>
    %185 = vector.multi_reduction <add>, %184, %cst_57 [2] : vector<2x32x10xf32> to vector<2x32xf32>
    %186 = vector.shape_cast %185 : vector<2x32xf32> to vector<2x32x1xf32>
    %187 = vector.broadcast %186 : vector<2x32x1xf32> to vector<2x32x10xf32>
    %188 = arith.divf %184, %187 : vector<2x32x10xf32>
    %189 = vector.shape_cast %188 : vector<2x32x10xf32> to vector<64x10xf32>
    %cst_58 = arith.constant dense<0.000000e+00> : vector<64x160xf32>
    %190 = tpu.matmul %189, %158, %cst_58 {dimension_numbers = #tpu.dot_dimension_numbers<[1], [0], [0], [1], [0, 0, 1, 1], [], []>} : vector<64x10xf32>, vector<10x160xf32>, vector<64x160xf32> -> vector<64x160xf32>
    %191 = vector.shape_cast %190 : vector<64x160xf32> to vector<2x32x160xf32>
    %192 = arith.mulf %191, %156 : vector<2x32x160xf32>
    %cst_59 = arith.constant dense<0.000000e+00> : vector<2x160xf32>
    %193 = vector.multi_reduction <add>, %192, %cst_59 [1] : vector<2x32x160xf32> to vector<2x160xf32>
    %194 = arith.mulf %193, %193 : vector<2x160xf32>
    %cst_60 = arith.constant dense<0.000000e+00> : vector<2x10xf32>
    %195 = tpu.matmul %194, %157, %cst_60 {dimension_numbers = #tpu.dot_dimension_numbers<[1], [0], [0], [1], [0, 0, 1, 1], [], []>} : vector<2x160xf32>, vector<160x10xf32>, vector<2x10xf32> -> vector<2x10xf32>
    %cst_61 = arith.constant 1.000000e+00 : f32
    %196 = vector.broadcast %cst_61 : f32 to vector<2x10xf32>
    %197 = arith.addf %196, %195 : vector<2x10xf32>
    %198 = tpu.reciprocal %197 {approx = true} : vector<2x10xf32> -> vector<2x10xf32>
    %199 = arith.mulf %195, %198 : vector<2x10xf32>
    %cst_62 = arith.constant 9.99999993E-9 : f32
    %200 = vector.broadcast %cst_62 : f32 to vector<2x10xf32>
    %201 = arith.addf %195, %200 : vector<2x10xf32>
    %202 = math.rsqrt %201 : vector<2x10xf32>
    %203 = arith.mulf %199, %202 : vector<2x10xf32>
    %cst_63 = arith.constant dense<0.000000e+00> : vector<2x160xf32>
    %204 = tpu.matmul %203, %158, %cst_63 {dimension_numbers = #tpu.dot_dimension_numbers<[1], [0], [0], [1], [0, 0, 1, 1], [], []>} : vector<2x10xf32>, vector<10x160xf32>, vector<2x160xf32> -> vector<2x160xf32>
    %205 = arith.mulf %193, %204 : vector<2x160xf32>
    %206 = vector.shape_cast %205 : vector<2x160xf32> to vector<2x1x160xf32>
    %207 = vector.broadcast %206 : vector<2x1x160xf32> to vector<2x32x160xf32>
    %208 = arith.mulf %156, %207 : vector<2x32x160xf32>
    %209 = vector.shape_cast %208 : vector<2x32x160xf32> to vector<64x160xf32>
    %cst_64 = arith.constant dense<0.000000e+00> : vector<64x10xf32>
    %210 = tpu.matmul %209, %157, %cst_64 {dimension_numbers = #tpu.dot_dimension_numbers<[1], [0], [0], [1], [0, 0, 1, 1], [], []>} : vector<64x160xf32>, vector<160x10xf32>, vector<64x10xf32> -> vector<64x10xf32>
    %211 = vector.shape_cast %210 : vector<64x10xf32> to vector<2x32x10xf32>
    %212 = arith.addf %179, %211 : vector<2x32x10xf32>
    %cst_65 = arith.constant dense<0xFF800000> : vector<2x32xf32>
    %213 = vector.multi_reduction <maximumf>, %212, %cst_65 [2] : vector<2x32x10xf32> to vector<2x32xf32>
    %214 = vector.shape_cast %213 : vector<2x32xf32> to vector<2x32x1xf32>
    %215 = vector.broadcast %214 : vector<2x32x1xf32> to vector<2x32x10xf32>
    %216 = arith.subf %212, %215 : vector<2x32x10xf32>
    %217 = math.exp %216 : vector<2x32x10xf32>
    %cst_66 = arith.constant dense<0.000000e+00> : vector<2x32xf32>
    %218 = vector.multi_reduction <add>, %217, %cst_66 [2] : vector<2x32x10xf32> to vector<2x32xf32>
    %219 = vector.shape_cast %218 : vector<2x32xf32> to vector<2x32x1xf32>
    %220 = vector.broadcast %219 : vector<2x32x1xf32> to vector<2x32x10xf32>
    %221 = arith.divf %217, %220 : vector<2x32x10xf32>
    %222 = vector.shape_cast %221 : vector<2x32x10xf32> to vector<64x10xf32>
    %cst_67 = arith.constant dense<0.000000e+00> : vector<64x160xf32>
    %223 = tpu.matmul %222, %158, %cst_67 {dimension_numbers = #tpu.dot_dimension_numbers<[1], [0], [0], [1], [0, 0, 1, 1], [], []>} : vector<64x10xf32>, vector<10x160xf32>, vector<64x160xf32> -> vector<64x160xf32>
    %224 = vector.shape_cast %223 : vector<64x160xf32> to vector<2x32x160xf32>
    %225 = arith.mulf %224, %156 : vector<2x32x160xf32>
    %cst_68 = arith.constant dense<0.000000e+00> : vector<2x160xf32>
    %226 = vector.multi_reduction <add>, %225, %cst_68 [1] : vector<2x32x160xf32> to vector<2x160xf32>
    %227 = arith.mulf %226, %226 : vector<2x160xf32>
    %cst_69 = arith.constant dense<0.000000e+00> : vector<2x10xf32>
    %228 = tpu.matmul %227, %157, %cst_69 {dimension_numbers = #tpu.dot_dimension_numbers<[1], [0], [0], [1], [0, 0, 1, 1], [], []>} : vector<2x160xf32>, vector<160x10xf32>, vector<2x10xf32> -> vector<2x10xf32>
    %cst_70 = arith.constant 1.000000e+00 : f32
    %229 = vector.broadcast %cst_70 : f32 to vector<2x10xf32>
    %230 = arith.addf %229, %228 : vector<2x10xf32>
    %231 = tpu.reciprocal %230 {approx = true} : vector<2x10xf32> -> vector<2x10xf32>
    %232 = arith.mulf %228, %231 : vector<2x10xf32>
    %cst_71 = arith.constant 9.99999993E-9 : f32
    %233 = vector.broadcast %cst_71 : f32 to vector<2x10xf32>
    %234 = arith.addf %228, %233 : vector<2x10xf32>
    %235 = math.rsqrt %234 : vector<2x10xf32>
    %236 = arith.mulf %232, %235 : vector<2x10xf32>
    %cst_72 = arith.constant dense<0.000000e+00> : vector<2x160xf32>
    %237 = tpu.matmul %236, %158, %cst_72 {dimension_numbers = #tpu.dot_dimension_numbers<[1], [0], [0], [1], [0, 0, 1, 1], [], []>} : vector<2x10xf32>, vector<10x160xf32>, vector<2x160xf32> -> vector<2x160xf32>
    %238 = arith.mulf %226, %237 : vector<2x160xf32>
    %239 = arith.mulf %238, %238 : vector<2x160xf32>
    %cst_73 = arith.constant dense<0.000000e+00> : vector<2x10xf32>
    %240 = tpu.matmul %239, %157, %cst_73 {dimension_numbers = #tpu.dot_dimension_numbers<[1], [0], [0], [1], [0, 0, 1, 1], [], []>} : vector<2x160xf32>, vector<160x10xf32>, vector<2x10xf32> -> vector<2x10xf32>
    %cst_74 = arith.constant 1.000000e+00 : f32
    %241 = vector.broadcast %cst_74 : f32 to vector<2x10xf32>
    %242 = arith.addf %241, %240 : vector<2x10xf32>
    %243 = tpu.reciprocal %242 {approx = true} : vector<2x10xf32> -> vector<2x10xf32>
    %244 = arith.mulf %240, %243 : vector<2x10xf32>
    %cst_75 = arith.constant 9.99999993E-9 : f32
    %245 = vector.broadcast %cst_75 : f32 to vector<2x10xf32>
    %246 = arith.addf %240, %245 : vector<2x10xf32>
    %247 = math.rsqrt %246 : vector<2x10xf32>
    %248 = arith.mulf %244, %247 : vector<2x10xf32>
    %cst_76 = arith.constant dense<0.000000e+00> : vector<2x160xf32>
    %249 = tpu.matmul %248, %158, %cst_76 {dimension_numbers = #tpu.dot_dimension_numbers<[1], [0], [0], [1], [0, 0, 1, 1], [], []>} : vector<2x10xf32>, vector<10x160xf32>, vector<2x160xf32> -> vector<2x160xf32>
    %250 = arith.mulf %238, %249 : vector<2x160xf32>
    %251 = arith.mulf %250, %250 : vector<2x160xf32>
    %cst_77 = arith.constant dense<0.000000e+00> : vector<2x10xf32>
    %252 = tpu.matmul %251, %157, %cst_77 {dimension_numbers = #tpu.dot_dimension_numbers<[1], [0], [0], [1], [0, 0, 1, 1], [], []>} : vector<2x160xf32>, vector<160x10xf32>, vector<2x10xf32> -> vector<2x10xf32>
    %253 = math.sqrt %252 : vector<2x10xf32>
    %cst_78 = arith.constant 1.000000e+00 : f32
    %254 = vector.broadcast %cst_78 : f32 to vector<2x10xf32>
    %255 = arith.addf %253, %254 : vector<2x10xf32>
    %cst_79 = arith.constant dense<0.000000e+00> : vector<2x160xf32>
    %256 = tpu.matmul %255, %158, %cst_79 {dimension_numbers = #tpu.dot_dimension_numbers<[1], [0], [0], [1], [0, 0, 1, 1], [], []>} : vector<2x10xf32>, vector<10x160xf32>, vector<2x160xf32> -> vector<2x160xf32>
    %257 = arith.mulf %250, %256 : vector<2x160xf32>
    %c0_80 = arith.constant 0 : index
    %c0_81 = arith.constant 0 : index
    %258 = vector.load %arg13[%c0_80, %c0_81] : memref<160x52xf32, #tpu.memory_space<vmem>>, vector<160x52xf32>
    %cst_82 = arith.constant dense<0.000000e+00> : vector<2x52xf32>
    %259 = tpu.matmul %257, %258, %cst_82 {dimension_numbers = #tpu.dot_dimension_numbers<[1], [0], [0], [1], [0, 0, 1, 1], [], []>} : vector<2x160xf32>, vector<160x52xf32>, vector<2x52xf32> -> vector<2x52xf32>
    %260 = arith.mulf %259, %259 : vector<2x52xf32>
    %cst_83 = arith.constant dense<0.000000e+00> : vector<2xf32>
    %261 = vector.multi_reduction <add>, %260, %cst_83 [1] : vector<2x52xf32> to vector<2xf32>
    %262 = vector.shape_cast %261 : vector<2xf32> to vector<2x1xf32>
    %cst_84 = arith.constant 1.000000e+00 : f32
    %263 = vector.broadcast %cst_84 : f32 to vector<2x1xf32>
    %264 = arith.addf %263, %262 : vector<2x1xf32>
    %265 = tpu.reciprocal %264 {approx = true} : vector<2x1xf32> -> vector<2x1xf32>
    %266 = arith.mulf %262, %265 : vector<2x1xf32>
    %cst_85 = arith.constant 9.99999993E-9 : f32
    %267 = vector.broadcast %cst_85 : f32 to vector<2x1xf32>
    %268 = arith.addf %262, %267 : vector<2x1xf32>
    %269 = math.rsqrt %268 : vector<2x1xf32>
    %270 = arith.mulf %266, %269 : vector<2x1xf32>
    %271 = vector.broadcast %270 : vector<2x1xf32> to vector<2x52xf32>
    %272 = arith.mulf %259, %271 : vector<2x52xf32>
    %c0_86 = arith.constant 0 : index
    %c0_87 = arith.constant 0 : index
    %273 = vector.load %arg14[%c0_86, %c0_87] : memref<1x52xf32, #tpu.memory_space<vmem>>, vector<1x52xf32>
    %274 = vector.broadcast %273 : vector<1x52xf32> to vector<2x52xf32>
    %275 = arith.mulf %272, %274 : vector<2x52xf32>
    %cst_88 = arith.constant dense<0.000000e+00> : vector<2xf32>
    %276 = vector.multi_reduction <add>, %275, %cst_88 [1] : vector<2x52xf32> to vector<2xf32>
    %277 = vector.shape_cast %276 : vector<2xf32> to vector<2x1xf32>
    %c0_89 = arith.constant 0 : index
    %c0_90 = arith.constant 0 : index
    %278 = vector.load %arg15[%c0_89, %c0_90] : memref<1x1xf32, #tpu.memory_space<vmem>>, vector<1x1xf32>
    %279 = vector.broadcast %278 : vector<1x1xf32> to vector<2x1xf32>
    %280 = arith.addf %277, %279 : vector<2x1xf32>
    %cst_91 = arith.constant 0.000000e+00 : f32
    %281 = vector.broadcast %cst_91 : f32 to vector<2x1xf32>
    %282 = arith.subf %281, %280 : vector<2x1xf32>
    %283 = math.exp %282 : vector<2x1xf32>
    %cst_92 = arith.constant 1.000000e+00 : f32
    %284 = vector.broadcast %cst_92 : f32 to vector<2x1xf32>
    %285 = arith.addf %284, %283 : vector<2x1xf32>
    %cst_93 = arith.constant 1.000000e+00 : f32
    %286 = vector.broadcast %cst_93 : f32 to vector<2x1xf32>
    %287 = arith.divf %286, %285 : vector<2x1xf32>
    %cst_94 = arith.constant 0.000000e+00 : f32
    %288 = vector.broadcast %cst_94 : f32 to vector<2x33xf32>
    %289 = tpu.concatenate %257, %272, %253, %287, %288 in 1 : vector<2x160xf32>, vector<2x52xf32>, vector<2x10xf32>, vector<2x1xf32>, vector<2x33xf32> -> vector<2x256xf32>
    %c0_95 = arith.constant 0 : index
    %c0_96 = arith.constant 0 : index
    %290 = vector.load %arg17[%c0_95, %c0_96] : memref<2x256xf32, #tpu.memory_space<vmem>>, vector<2x256xf32>
    tpu.vector_store %arg17[%c0_95, %c0_96], %289 {strides = array<i32>} : memref<2x256xf32, #tpu.memory_space<vmem>>, vector<2x256xf32>,
    return
  }
}

</mosaic_0001>

<llo_original>
// kernel: discriminator_forward.1
$region0: #{discriminator_forward.1}
  #allocation0 [shape = 'u32[]', space=smem, size = 0x4, offset = 0x4, fixed_abs, tag = 'smem constant byte address 0x4 - core index']
  #allocation1 [shape = 'u32[144,128]{1,0:T(1,128)}', space=vmem, size = 0x12000, scoped, tag = 'internal scratch']
  #allocation2 [shape = 'f32[1,1]{1,0:T(1,128)S(1)}', space=vmem, size = 0x200, scoped, tag = 'scoped memory for discriminator_forward.1']
  %s0 = inlined_call_operand.vmem [shape: f32[48,24], index: 0, kind: input, shape index: {}]
  %s1 = inlined_call_operand.vmem [shape: f32[24,1152], index: 1, kind: input, shape index: {}]
  %s2 = inlined_call_operand.vmem [shape: f32[1,128], index: 2, kind: input, shape index: {}]
  %s3 = inlined_call_operand.vmem [shape: f32[1,128], index: 3, kind: input, shape index: {}]
  %s4 = inlined_call_operand.vmem [shape: f32[1,128], index: 4, kind: input, shape index: {}]
  %s5 = inlined_call_operand.vmem [shape: f32[128,8], index: 5, kind: input, shape index: {}]
  %s6 = inlined_call_operand.vmem [shape: f32[8,128], index: 6, kind: input, shape index: {}]
  %s7 = inlined_call_operand.vmem [shape: f32[72,32], index: 7, kind: input, shape index: {}]
  %s8 = inlined_call_operand.vmem [shape: f32[1152,32], index: 8, kind: input, shape index: {}]
  %s9 = inlined_call_operand.vmem [shape: f32[1,32], index: 9, kind: input, shape index: {}]
  %s10 = inlined_call_operand.vmem [shape: f32[4,32,160], index: 10, kind: input, shape index: {}]
  %s11 = inlined_call_operand.vmem [shape: f32[160,10], index: 11, kind: input, shape index: {}]
  %s12 = inlined_call_operand.vmem [shape: f32[10,160], index: 12, kind: input, shape index: {}]
  %s13 = inlined_call_operand.vmem [shape: f32[160,52], index: 13, kind: input, shape index: {}]
  %s14 = inlined_call_operand.vmem [shape: f32[1,52], index: 14, kind: input, shape index: {}]
  %s15 = inlined_call_operand.<no memory space> [shape: f32[1,1], index: 15, kind: input, shape index: {}]
  %s16 = inlined_call_operand.vmem [shape: f32[2,32,4], index: 16, kind: output, shape index: {0}]
  %s17 = inlined_call_operand.vmem [shape: f32[2,256], index: 17, kind: output, shape index: {1}]
  %18 = xla_tuple %s16, %s17
  %s19 = sld [smem:[#allocation0]]
  $region82: #{discriminator_forward.1} parent=0
    _
  %s21 = ssub.s32 1, %s19
  %s22 = scalar_select 0, %s21, %s19
  %v23 = vstv %s15
  %24 = vst [vmem:[#allocation2] sm:$0x1] %v23
  // Predicated region
  $region2: #{discriminator_forward.1} parent=0 // pred_check
    _
  $region3: #{discriminator_forward.1} parent=0 // pred_check_branch
    %26 = sbr.rel (0) target = $region5
  $region4: #{discriminator_forward.1} parent=0 // pred_region
    _
  $region5: #{discriminator_forward.1} parent=0 // pred_fallthru
    _
  // Predicated region
  $region6: #{discriminator_forward.1} parent=0 // pred_check
    _
  $region7: #{discriminator_forward.1} parent=0 // pred_check_branch
    %28 = sbr.rel (0) target = $region9
  $region8: #{discriminator_forward.1} parent=0 // pred_region
    _
  $region9: #{discriminator_forward.1} parent=0 // pred_fallthru
    _
  // Predicated region
  $region10: #{discriminator_forward.1} parent=0 // pred_check
    _
  $region11: #{discriminator_forward.1} parent=0 // pred_check_branch
    %30 = sbr.rel (0) target = $region13
  $region12: #{discriminator_forward.1} parent=0 // pred_region
    _
  $region13: #{discriminator_forward.1} parent=0 // pred_fallthru
    _
  // Predicated region
  $region14: #{discriminator_forward.1} parent=0 // pred_check
    _
  $region15: #{discriminator_forward.1} parent=0 // pred_check_branch
    %32 = sbr.rel (0) target = $region17
  $region16: #{discriminator_forward.1} parent=0 // pred_region
    _
  $region17: #{discriminator_forward.1} parent=0 // pred_fallthru
    _
  // Predicated region
  $region18: #{discriminator_forward.1} parent=0 // pred_check
    _
  $region19: #{discriminator_forward.1} parent=0 // pred_check_branch
    %34 = sbr.rel (0) target = $region21
  $region20: #{discriminator_forward.1} parent=0 // pred_region
    _
  $region21: #{discriminator_forward.1} parent=0 // pred_fallthru
    _
  // Predicated region
  $region22: #{discriminator_forward.1} parent=0 // pred_check
    _
  $region23: #{discriminator_forward.1} parent=0 // pred_check_branch
    %36 = sbr.rel (0) target = $region25
  $region24: #{discriminator_forward.1} parent=0 // pred_region
    _
  $region25: #{discriminator_forward.1} parent=0 // pred_fallthru
    _
  // Predicated region
  $region26: #{discriminator_forward.1} parent=0 // pred_check
    _
  $region27: #{discriminator_forward.1} parent=0 // pred_check_branch
    %38 = sbr.rel (0) target = $region29
  $region28: #{discriminator_forward.1} parent=0 // pred_region
    _
  $region29: #{discriminator_forward.1} parent=0 // pred_fallthru
    _
  // Predicated region
  $region30: #{discriminator_forward.1} parent=0 // pred_check
    _
  $region31: #{discriminator_forward.1} parent=0 // pred_check_branch
    %40 = sbr.rel (0) target = $region33
  $region32: #{discriminator_forward.1} parent=0 // pred_region
    _
  $region33: #{discriminator_forward.1} parent=0 // pred_fallthru
    _
  // Predicated region
  $region34: #{discriminator_forward.1} parent=0 // pred_check
    _
  $region35: #{discriminator_forward.1} parent=0 // pred_check_branch
    %42 = sbr.rel (0) target = $region37
  $region36: #{discriminator_forward.1} parent=0 // pred_region
    _
  $region37: #{discriminator_forward.1} parent=0 // pred_fallthru
    _
  // Predicated region
  $region38: #{discriminator_forward.1} parent=0 // pred_check
    _
  $region39: #{discriminator_forward.1} parent=0 // pred_check_branch
    %44 = sbr.rel (0) target = $region41
  $region40: #{discriminator_forward.1} parent=0 // pred_region
    _
  $region41: #{discriminator_forward.1} parent=0 // pred_fallthru
    _
  // Predicated region
  $region42: #{discriminator_forward.1} parent=0 // pred_check
    _
  $region43: #{discriminator_forward.1} parent=0 // pred_check_branch
    %46 = sbr.rel (0) target = $region45
  $region44: #{discriminator_forward.1} parent=0 // pred_region
    _
  $region45: #{discriminator_forward.1} parent=0 // pred_fallthru
    _
  // Predicated region
  $region46: #{discriminator_forward.1} parent=0 // pred_check
    _
  $region47: #{discriminator_forward.1} parent=0 // pred_check_branch
    %48 = sbr.rel (0) target = $region49
  $region48: #{discriminator_forward.1} parent=0 // pred_region
    _
  $region49: #{discriminator_forward.1} parent=0 // pred_fallthru
    _
  // Predicated region
  $region50: #{discriminator_forward.1} parent=0 // pred_check
    _
  $region51: #{discriminator_forward.1} parent=0 // pred_check_branch
    %50 = sbr.rel (0) target = $region53
  $region52: #{discriminator_forward.1} parent=0 // pred_region
    _
  $region53: #{discriminator_forward.1} parent=0 // pred_fallthru
    _
  // Predicated region
  $region54: #{discriminator_forward.1} parent=0 // pred_check
    _
  $region55: #{discriminator_forward.1} parent=0 // pred_check_branch
    %52 = sbr.rel (0) target = $region57
  $region56: #{discriminator_forward.1} parent=0 // pred_region
    _
  $region57: #{discriminator_forward.1} parent=0 // pred_fallthru
    _
  // Predicated region
  $region58: #{discriminator_forward.1} parent=0 // pred_check
    _
  $region59: #{discriminator_forward.1} parent=0 // pred_check_branch
    %54 = sbr.rel (0) target = $region61
  $region60: #{discriminator_forward.1} parent=0 // pred_region
    _
  $region61: #{discriminator_forward.1} parent=0 // pred_fallthru
    _
  // Predicated region
  $region62: #{discriminator_forward.1} parent=0 // pred_check
    _
  $region63: #{discriminator_forward.1} parent=0 // pred_check_branch
    %56 = sbr.rel (0) target = $region65
  $region64: #{discriminator_forward.1} parent=0 // pred_region
    _
  $region65: #{discriminator_forward.1} parent=0 // pred_fallthru
    _
  %v57 = vld [vmem:[%s0] sm:$0xff]
  %v58 = vld [vmem:[%s0 + $0x8] sm:$0xff]
  %v59 = vld [vmem:[%s0 + $0x10] sm:$0xff]
  %v60 = vld [vmem:[%s0 + $0x18] sm:$0xff]
  %v61 = vld [vmem:[%s0 + $0x20] sm:$0xff]
  %v62 = vld [vmem:[%s0 + $0x28] sm:$0xff]
  %v63 = vld [vmem:[%s1] sm:$0xff]
  %v64 = vld [vmem:[%s1 + $0x8] sm:$0xff]
  %v65 = vld [vmem:[%s1 + $0x10] sm:$0xff]
  %v66 = vld [vmem:[%s1 + $0x18] sm:$0xff]
  %v67 = vld [vmem:[%s1 + $0x20] sm:$0xff]
  %v68 = vld [vmem:[%s1 + $0x28] sm:$0xff]
  %v69 = vld [vmem:[%s1 + $0x30] sm:$0xff]
  %v70 = vld [vmem:[%s1 + $0x38] sm:$0xff]
  %v71 = vld [vmem:[%s1 + $0x40] sm:$0xff]
  %v72 = vld [vmem:[%s1 + $0x48] sm:$0xff]
  %v73 = vld [vmem:[%s1 + $0x50] sm:$0xff]
  %v74 = vld [vmem:[%s1 + $0x58] sm:$0xff]
  %v75 = vld [vmem:[%s1 + $0x60] sm:$0xff]
  %v76 = vld [vmem:[%s1 + $0x68] sm:$0xff]
  %v77 = vld [vmem:[%s1 + $0x70] sm:$0xff]
  %v78 = vld [vmem:[%s1 + $0x78] sm:$0xff]
  %v79 = vld [vmem:[%s1 + $0x80] sm:$0xff]
  %v80 = vld [vmem:[%s1 + $0x88] sm:$0xff]
  %v81 = vld [vmem:[%s1 + $0x90] sm:$0xff]
  %v82 = vld [vmem:[%s1 + $0x98] sm:$0xff]
  %v83 = vld [vmem:[%s1 + $0xa0] sm:$0xff]
  %v84 = vld [vmem:[%s1 + $0xa8] sm:$0xff]
  %v85 = vld [vmem:[%s1 + $0xb0] sm:$0xff]
  %v86 = vld [vmem:[%s1 + $0xb8] sm:$0xff]
  %v87 = vld [vmem:[%s1 + $0xc0] sm:$0xff]
  %v88 = vld [vmem:[%s1 + $0xc8] sm:$0xff]
  %v89 = vld [vmem:[%s1 + $0xd0] sm:$0xff]
  %vm90 = vcmask 195584
  %v92 = vsel %vm90, %v57, 0
  %v95 = vsel %vm90, %v58, 0
  %v98 = vsel %vm90, %v59, 0
  %v101 = vsel %vm90, %v60, 0
  %v104 = vsel %vm90, %v61, 0
  %v107 = vsel %vm90, %v62, 0
  %109 = vmatprep.subr.mxu0 0.0
  %110 = vmatpush1.msra.mxu0 0.0
  %111 = vmatprep.subr.mxu0 0.0
  %112 = vmatpush1.msra.mxu0 0.0
  %113 = vmatprep.subr.mxu0 0.0
  %114 = vmatpush1.msra.mxu0 0.0
  %115 = vmatprep.subr.mxu0 0.0
  %116 = vmatpush1.msra.mxu0 0.0
  %117 = vmatprep.subr.mxu0 0.0
  %118 = vmatpush1.msra.mxu0 0.0
  %119 = vmatprep.subr.mxu0 0.0
  %120 = vmatpush1.msra.mxu0 0.0
  %121 = vmatprep.subr.mxu0 0.0
  %122 = vmatpush1.msra.mxu0 0.0
  %123 = vmatprep.subr.mxu0 0.0
  %124 = vmatpush1.msra.mxu0 0.0
  %125 = vmatprep.subr.mxu0 0.0
  %126 = vmatpush1.msra.mxu0 0.0
  %127 = vmatprep.subr.mxu0 0.0
  %128 = vmatpush1.msra.mxu0 0.0
  %129 = vmatprep.subr.mxu0 0.0
  %130 = vmatpush1.msra.mxu0 0.0
  %131 = vmatprep.subr.mxu0 0.0
  %132 = vmatpush1.msra.mxu0 0.0
  %133 = vmatprep.subr.mxu0 0.0
  %134 = vmatpush1.msra.mxu0 0.0
  %135 = vmatprep.subr.mxu0 %v82
  %136 = vmatpush1.msra.mxu0 %v81
  %137 = vmatprep.subr.mxu0 %v73
  %138 = vmatpush1.msra.mxu0 %v72
  %139 = vmatprep.subr.mxu0 %v64
  %140 = vmatpush1.msra.mxu0 %v63
  %141 = vmatprep.subr.mxu0 0.0
  %142 = vmatpush2.msra.mxu0 0.0
  %143 = vmatprep.subr.mxu0 0.0
  %144 = vmatpush2.msra.mxu0 0.0
  %145 = vmatprep.subr.mxu0 0.0
  %146 = vmatpush2.msra.mxu0 0.0
  %147 = vmatprep.subr.mxu0 0.0
  %148 = vmatpush2.msra.mxu0 0.0
  %149 = vmatprep.subr.mxu0 0.0
  %150 = vmatpush2.msra.mxu0 0.0
  %151 = vmatprep.subr.mxu0 0.0
  %152 = vmatpush2.msra.mxu0 0.0
  %153 = vmatprep.subr.mxu0 0.0
  %154 = vmatpush2.msra.mxu0 0.0
  %155 = vmatprep.subr.mxu0 0.0
  %156 = vmatpush2.msra.mxu0 0.0
  %157 = vmatprep.subr.mxu0 0.0
  %158 = vmatpush2.msra.mxu0 0.0
  %159 = vmatprep.subr.mxu0 0.0
  %160 = vmatpush2.msra.mxu0 0.0
  %161 = vmatprep.subr.mxu0 0.0
  %162 = vmatpush2.msra.mxu0 0.0
  %163 = vmatprep.subr.mxu0 0.0
  %164 = vmatpush2.msra.mxu0 0.0
  %165 = vmatprep.subr.mxu0 0.0
  %166 = vmatpush2.msra.mxu0 0.0
  %167 = vmatprep.subr.mxu0 0.0
  %168 = vmatpush2.msra.mxu0 0.0
  %169 = vmatprep.subr.mxu0 0.0
  %170 = vmatpush2.msra.mxu0 0.0
  %171 = vmatprep.subr.mxu0 0.0
  %172 = vmatpush2.msra.mxu0 0.0
  %173 = vmatprep.mubr.f32.mxu0 0.0
  %174 = vmatmul.mubr.f32.gmra.mxu0 %v92
  %v175 = vpop.f32.mrf.mxu0
  %v176 = vadd.f32 0.0, %v175
  %v177 = vpop.f32.mrf.mxu0
  %v178 = vadd.f32 0.0, %v177
  %179 = vmatprep.mubr.f32.mxu0 0.0
  %180 = vmatmul.mubr.f32.gmra.mxu0 %v95
  %v181 = vpop.f32.mrf.mxu0
  %v182 = vadd.f32 0.0, %v181
  %v183 = vpop.f32.mrf.mxu0
  %v184 = vadd.f32 0.0, %v183
  %185 = vmatprep.mubr.f32.mxu0 0.0
  %186 = vmatmul.mubr.f32.gmra.mxu0 %v98
  %v187 = vpop.f32.mrf.mxu0
  %v188 = vpop.f32.mrf.mxu0
  %v189 = vadd.f32 0.0, %v188
  %190 = vmatprep.mubr.f32.mxu0 0.0
  %191 = vmatmul.mubr.f32.gmra.mxu0 %v101
  %v192 = vpop.f32.mrf.mxu0
  %v193 = vadd.f32 0.0, %v192
  %v194 = vpop.f32.mrf.mxu0
  %v195 = vadd.f32 0.0, %v194
  %196 = vmatprep.mubr.f32.mxu0 0.0
  %197 = vmatmul.mubr.f32.gmra.mxu0 %v104
  %v198 = vpop.f32.mrf.mxu0
  %v199 = vadd.f32 0.0, %v198
  %v200 = vpop.f32.mrf.mxu0
  %v201 = vadd.f32 0.0, %v200
  %202 = vmatprep.mubr.f32.mxu0 0.0
  %203 = vmatmul.mubr.f32.gmra.mxu0 %v107
  %v204 = vpop.f32.mrf.mxu0
  %v205 = vpop.f32.mrf.mxu0
  %v206 = vadd.f32 0.0, %v205
  %207 = vdwg.mxu0
  %208 = vmatprep.subr.mxu0 0.0
  %209 = vmatpush1.msra.mxu0 0.0
  %210 = vmatprep.subr.mxu0 0.0
  %211 = vmatpush1.msra.mxu0 0.0
  %212 = vmatprep.subr.mxu0 0.0
  %213 = vmatpush1.msra.mxu0 0.0
  %214 = vmatprep.subr.mxu0 0.0
  %215 = vmatpush1.msra.mxu0 0.0
  %216 = vmatprep.subr.mxu0 0.0
  %217 = vmatpush1.msra.mxu0 0.0
  %218 = vmatprep.subr.mxu0 0.0
  %219 = vmatpush1.msra.mxu0 0.0
  %220 = vmatprep.subr.mxu0 0.0
  %221 = vmatpush1.msra.mxu0 0.0
  %222 = vmatprep.subr.mxu0 0.0
  %223 = vmatpush1.msra.mxu0 0.0
  %224 = vmatprep.subr.mxu0 0.0
  %225 = vmatpush1.msra.mxu0 0.0
  %226 = vmatprep.subr.mxu0 0.0
  %227 = vmatpush1.msra.mxu0 0.0
  %228 = vmatprep.subr.mxu0 0.0
  %229 = vmatpush1.msra.mxu0 0.0
  %230 = vmatprep.subr.mxu0 0.0
  %231 = vmatpush1.msra.mxu0 0.0
  %232 = vmatprep.subr.mxu0 0.0
  %233 = vmatpush1.msra.mxu0 0.0
  %234 = vmatprep.subr.mxu0 %v84
  %235 = vmatpush1.msra.mxu0 %v83
  %236 = vmatprep.subr.mxu0 %v75
  %237 = vmatpush1.msra.mxu0 %v74
  %238 = vmatprep.subr.mxu0 %v66
  %239 = vmatpush1.msra.mxu0 %v65
  %240 = vmatprep.subr.mxu0 0.0
  %241 = vmatpush2.msra.mxu0 0.0
  %242 = vmatprep.subr.mxu0 0.0
  %243 = vmatpush2.msra.mxu0 0.0
  %244 = vmatprep.subr.mxu0 0.0
  %245 = vmatpush2.msra.mxu0 0.0
  %246 = vmatprep.subr.mxu0 0.0
  %247 = vmatpush2.msra.mxu0 0.0
  %248 = vmatprep.subr.mxu0 0.0
  %249 = vmatpush2.msra.mxu0 0.0
  %250 = vmatprep.subr.mxu0 0.0
  %251 = vmatpush2.msra.mxu0 0.0
  %252 = vmatprep.subr.mxu0 0.0
  %253 = vmatpush2.msra.mxu0 0.0
  %254 = vmatprep.subr.mxu0 0.0
  %255 = vmatpush2.msra.mxu0 0.0
  %256 = vmatprep.subr.mxu0 0.0
  %257 = vmatpush2.msra.mxu0 0.0
  %258 = vmatprep.subr.mxu0 0.0
  %259 = vmatpush2.msra.mxu0 0.0
  %260 = vmatprep.subr.mxu0 0.0
  %261 = vmatpush2.msra.mxu0 0.0
  %262 = vmatprep.subr.mxu0 0.0
  %263 = vmatpush2.msra.mxu0 0.0
  %264 = vmatprep.subr.mxu0 0.0
  %265 = vmatpush2.msra.mxu0 0.0
  %266 = vmatprep.subr.mxu0 0.0
  %267 = vmatpush2.msra.mxu0 0.0
  %268 = vmatprep.subr.mxu0 0.0
  %269 = vmatpush2.msra.mxu0 0.0
  %270 = vmatprep.subr.mxu0 0.0
  %271 = vmatpush2.msra.mxu0 0.0
  %272 = vmatprep.mubr.f32.mxu0 0.0
  %273 = vmatmul.mubr.f32.gmra.mxu0 %v92
  %v274 = vpop.f32.mrf.mxu0
  %v275 = vadd.f32 0.0, %v274
  %v276 = vpop.f32.mrf.mxu0
  %v277 = vadd.f32 0.0, %v276
  %278 = vmatprep.mubr.f32.mxu0 0.0
  %279 = vmatmul.mubr.f32.gmra.mxu0 %v95
  %v280 = vpop.f32.mrf.mxu0
  %v281 = vadd.f32 0.0, %v280
  %v282 = vpop.f32.mrf.mxu0
  %v283 = vadd.f32 0.0, %v282
  %284 = vmatprep.mubr.f32.mxu0 0.0
  %285 = vmatmul.mubr.f32.gmra.mxu0 %v98
  %v286 = vpop.f32.mrf.mxu0
  %v287 = vadd.f32 0.0, %v286
  %v288 = vpop.f32.mrf.mxu0
  %v289 = vadd.f32 0.0, %v288
  %290 = vmatprep.mubr.f32.mxu0 0.0
  %291 = vmatmul.mubr.f32.gmra.mxu0 %v101
  %v292 = vpop.f32.mrf.mxu0
  %v293 = vadd.f32 0.0, %v292
  %v294 = vpop.f32.mrf.mxu0
  %v295 = vadd.f32 0.0, %v294
  %296 = vmatprep.mubr.f32.mxu0 0.0
  %297 = vmatmul.mubr.f32.gmra.mxu0 %v104
  %v298 = vpop.f32.mrf.mxu0
  %v299 = vadd.f32 0.0, %v298
  %v300 = vpop.f32.mrf.mxu0
  %v301 = vadd.f32 0.0, %v300
  %302 = vmatprep.mubr.f32.mxu0 0.0
  %303 = vmatmul.mubr.f32.gmra.mxu0 %v107
  %v304 = vpop.f32.mrf.mxu0
  %v305 = vadd.f32 0.0, %v304
  %v306 = vpop.f32.mrf.mxu0
  %v307 = vadd.f32 0.0, %v306
  %308 = vdwg.mxu0
  %309 = vmatprep.subr.mxu0 0.0
  %310 = vmatpush1.msra.mxu0 0.0
  %311 = vmatprep.subr.mxu0 0.0
  %312 = vmatpush1.msra.mxu0 0.0
  %313 = vmatprep.subr.mxu0 0.0
  %314 = vmatpush1.msra.mxu0 0.0
  %315 = vmatprep.subr.mxu0 0.0
  %316 = vmatpush1.msra.mxu0 0.0
  %317 = vmatprep.subr.mxu0 0.0
  %318 = vmatpush1.msra.mxu0 0.0
  %319 = vmatprep.subr.mxu0 0.0
  %320 = vmatpush1.msra.mxu0 0.0
  %321 = vmatprep.subr.mxu0 0.0
  %322 = vmatpush1.msra.mxu0 0.0
  %323 = vmatprep.subr.mxu0 0.0
  %324 = vmatpush1.msra.mxu0 0.0
  %325 = vmatprep.subr.mxu0 0.0
  %326 = vmatpush1.msra.mxu0 0.0
  %327 = vmatprep.subr.mxu0 0.0
  %328 = vmatpush1.msra.mxu0 0.0
  %329 = vmatprep.subr.mxu0 0.0
  %330 = vmatpush1.msra.mxu0 0.0
  %331 = vmatprep.subr.mxu0 0.0
  %332 = vmatpush1.msra.mxu0 0.0
  %333 = vmatprep.subr.mxu0 0.0
  %334 = vmatpush1.msra.mxu0 0.0
  %335 = vmatprep.subr.mxu0 %v86
  %336 = vmatpush1.msra.mxu0 %v85
  %337 = vmatprep.subr.mxu0 %v77
  %338 = vmatpush1.msra.mxu0 %v76
  %339 = vmatprep.subr.mxu0 %v68
  %340 = vmatpush1.msra.mxu0 %v67
  %341 = vmatprep.subr.mxu0 0.0
  %342 = vmatpush2.msra.mxu0 0.0
  %343 = vmatprep.subr.mxu0 0.0
  %344 = vmatpush2.msra.mxu0 0.0
  %345 = vmatprep.subr.mxu0 0.0
  %346 = vmatpush2.msra.mxu0 0.0
  %347 = vmatprep.subr.mxu0 0.0
  %348 = vmatpush2.msra.mxu0 0.0
  %349 = vmatprep.subr.mxu0 0.0
  %350 = vmatpush2.msra.mxu0 0.0
  %351 = vmatprep.subr.mxu0 0.0
  %352 = vmatpush2.msra.mxu0 0.0
  %353 = vmatprep.subr.mxu0 0.0
  %354 = vmatpush2.msra.mxu0 0.0
  %355 = vmatprep.subr.mxu0 0.0
  %356 = vmatpush2.msra.mxu0 0.0
  %357 = vmatprep.subr.mxu0 0.0
  %358 = vmatpush2.msra.mxu0 0.0
  %359 = vmatprep.subr.mxu0 0.0
  %360 = vmatpush2.msra.mxu0 0.0
  %361 = vmatprep.subr.mxu0 0.0
  %362 = vmatpush2.msra.mxu0 0.0
  %363 = vmatprep.subr.mxu0 0.0
  %364 = vmatpush2.msra.mxu0 0.0
  %365 = vmatprep.subr.mxu0 0.0
  %366 = vmatpush2.msra.mxu0 0.0
  %367 = vmatprep.subr.mxu0 0.0
  %368 = vmatpush2.msra.mxu0 0.0
  %369 = vmatprep.subr.mxu0 0.0
  %370 = vmatpush2.msra.mxu0 0.0
  %371 = vmatprep.subr.mxu0 0.0
  %372 = vmatpush2.msra.mxu0 0.0
  %373 = vmatprep.mubr.f32.mxu0 0.0
  %374 = vmatmul.mubr.f32.gmra.mxu0 %v92
  %v375 = vpop.f32.mrf.mxu0
  %v376 = vadd.f32 0.0, %v375
  %v377 = vpop.f32.mrf.mxu0
  %v378 = vadd.f32 0.0, %v377
  %379 = vmatprep.mubr.f32.mxu0 0.0
  %380 = vmatmul.mubr.f32.gmra.mxu0 %v95
  %v381 = vpop.f32.mrf.mxu0
  %v382 = vadd.f32 0.0, %v381
  %v383 = vpop.f32.mrf.mxu0
  %v384 = vadd.f32 0.0, %v383
  %385 = vmatprep.mubr.f32.mxu0 0.0
  %386 = vmatmul.mubr.f32.gmra.mxu0 %v98
  %v387 = vpop.f32.mrf.mxu0
  %v388 = vadd.f32 0.0, %v387
  %v389 = vpop.f32.mrf.mxu0
  %v390 = vadd.f32 0.0, %v389
  %391 = vmatprep.mubr.f32.mxu0 0.0
  %392 = vmatmul.mubr.f32.gmra.mxu0 %v101
  %v393 = vpop.f32.mrf.mxu0
  %v394 = vadd.f32 0.0, %v393
  %v395 = vpop.f32.mrf.mxu0
  %v396 = vadd.f32 0.0, %v395
  %397 = vmatprep.mubr.f32.mxu0 0.0
  %398 = vmatmul.mubr.f32.gmra.mxu0 %v104
  %v399 = vpop.f32.mrf.mxu0
  %v400 = vadd.f32 0.0, %v399
  %v401 = vpop.f32.mrf.mxu0
  %v402 = vadd.f32 0.0, %v401
  %403 = vmatprep.mubr.f32.mxu0 0.0
  %404 = vmatmul.mubr.f32.gmra.mxu0 %v107
  %v405 = vpop.f32.mrf.mxu0
  %v406 = vadd.f32 0.0, %v405
  %v407 = vpop.f32.mrf.mxu0
  %v408 = vadd.f32 0.0, %v407
  %409 = vdwg.mxu0
  %410 = vmatprep.subr.mxu0 0.0
  %411 = vmatpush1.msra.mxu0 0.0
  %412 = vmatprep.subr.mxu0 0.0
  %413 = vmatpush1.msra.mxu0 0.0
  %414 = vmatprep.subr.mxu0 0.0
  %415 = vmatpush1.msra.mxu0 0.0
  %416 = vmatprep.subr.mxu0 0.0
  %417 = vmatpush1.msra.mxu0 0.0
  %418 = vmatprep.subr.mxu0 0.0
  %419 = vmatpush1.msra.mxu0 0.0
  %420 = vmatprep.subr.mxu0 0.0
  %421 = vmatpush1.msra.mxu0 0.0
  %422 = vmatprep.subr.mxu0 0.0
  %423 = vmatpush1.msra.mxu0 0.0
  %424 = vmatprep.subr.mxu0 0.0
  %425 = vmatpush1.msra.mxu0 0.0
  %426 = vmatprep.subr.mxu0 0.0
  %427 = vmatpush1.msra.mxu0 0.0
  %428 = vmatprep.subr.mxu0 0.0
  %429 = vmatpush1.msra.mxu0 0.0
  %430 = vmatprep.subr.mxu0 0.0
  %431 = vmatpush1.msra.mxu0 0.0
  %432 = vmatprep.subr.mxu0 0.0
  %433 = vmatpush1.msra.mxu0 0.0
  %434 = vmatprep.subr.mxu0 0.0
  %435 = vmatpush1.msra.mxu0 0.0
  %436 = vmatprep.subr.mxu0 %v88
  %437 = vmatpush1.msra.mxu0 %v87
  %438 = vmatprep.subr.mxu0 %v79
  %439 = vmatpush1.msra.mxu0 %v78
  %440 = vmatprep.subr.mxu0 %v70
  %441 = vmatpush1.msra.mxu0 %v69
  %442 = vmatprep.subr.mxu0 0.0
  %443 = vmatpush2.msra.mxu0 0.0
  %444 = vmatprep.subr.mxu0 0.0
  %445 = vmatpush2.msra.mxu0 0.0
  %446 = vmatprep.subr.mxu0 0.0
  %447 = vmatpush2.msra.mxu0 0.0
  %448 = vmatprep.subr.mxu0 0.0
  %449 = vmatpush2.msra.mxu0 0.0
  %450 = vmatprep.subr.mxu0 0.0
  %451 = vmatpush2.msra.mxu0 0.0
  %452 = vmatprep.subr.mxu0 0.0
  %453 = vmatpush2.msra.mxu0 0.0
  %454 = vmatprep.subr.mxu0 0.0
  %455 = vmatpush2.msra.mxu0 0.0
  %456 = vmatprep.subr.mxu0 0.0
  %457 = vmatpush2.msra.mxu0 0.0
  %458 = vmatprep.subr.mxu0 0.0
  %459 = vmatpush2.msra.mxu0 0.0
  %460 = vmatprep.subr.mxu0 0.0
  %461 = vmatpush2.msra.mxu0 0.0
  %462 = vmatprep.subr.mxu0 0.0
  %463 = vmatpush2.msra.mxu0 0.0
  %464 = vmatprep.subr.mxu0 0.0
  %465 = vmatpush2.msra.mxu0 0.0
  %466 = vmatprep.subr.mxu0 0.0
  %467 = vmatpush2.msra.mxu0 0.0
  %468 = vmatprep.subr.mxu0 0.0
  %469 = vmatpush2.msra.mxu0 0.0
  %470 = vmatprep.subr.mxu0 0.0
  %471 = vmatpush2.msra.mxu0 0.0
  %472 = vmatprep.subr.mxu0 0.0
  %473 = vmatpush2.msra.mxu0 0.0
  %474 = vmatprep.mubr.f32.mxu0 0.0
  %475 = vmatmul.mubr.f32.gmra.mxu0 %v92
  %v476 = vpop.f32.mrf.mxu0
  %v477 = vadd.f32 0.0, %v476
  %v478 = vpop.f32.mrf.mxu0
  %v479 = vadd.f32 0.0, %v478
  %480 = vmatprep.mubr.f32.mxu0 0.0
  %481 = vmatmul.mubr.f32.gmra.mxu0 %v95
  %v482 = vpop.f32.mrf.mxu0
  %v483 = vadd.f32 0.0, %v482
  %v484 = vpop.f32.mrf.mxu0
  %v485 = vadd.f32 0.0, %v484
  %486 = vmatprep.mubr.f32.mxu0 0.0
  %487 = vmatmul.mubr.f32.gmra.mxu0 %v98
  %v488 = vpop.f32.mrf.mxu0
  %v489 = vadd.f32 0.0, %v488
  %v490 = vpop.f32.mrf.mxu0
  %v491 = vadd.f32 0.0, %v490
  %492 = vmatprep.mubr.f32.mxu0 0.0
  %493 = vmatmul.mubr.f32.gmra.mxu0 %v101
  %v494 = vpop.f32.mrf.mxu0
  %v495 = vadd.f32 0.0, %v494
  %v496 = vpop.f32.mrf.mxu0
  %v497 = vadd.f32 0.0, %v496
  %498 = vmatprep.mubr.f32.mxu0 0.0
  %499 = vmatmul.mubr.f32.gmra.mxu0 %v104
  %v500 = vpop.f32.mrf.mxu0
  %v501 = vadd.f32 0.0, %v500
  %v502 = vpop.f32.mrf.mxu0
  %v503 = vadd.f32 0.0, %v502
  %504 = vmatprep.mubr.f32.mxu0 0.0
  %505 = vmatmul.mubr.f32.gmra.mxu0 %v107
  %v506 = vpop.f32.mrf.mxu0
  %v507 = vadd.f32 0.0, %v506
  %v508 = vpop.f32.mrf.mxu0
  %v509 = vadd.f32 0.0, %v508
  %510 = vdwg.mxu0
  %511 = vmatprep.subr.mxu0 0.0
  %512 = vmatpush1.msra.mxu0 0.0
  %513 = vmatprep.subr.mxu0 0.0
  %514 = vmatpush1.msra.mxu0 0.0
  %515 = vmatprep.subr.mxu0 0.0
  %516 = vmatpush1.msra.mxu0 0.0
  %517 = vmatprep.subr.mxu0 0.0
  %518 = vmatpush1.msra.mxu0 0.0
  %519 = vmatprep.subr.mxu0 0.0
  %520 = vmatpush1.msra.mxu0 0.0
  %521 = vmatprep.subr.mxu0 0.0
  %522 = vmatpush1.msra.mxu0 0.0
  %523 = vmatprep.subr.mxu0 0.0
  %524 = vmatpush1.msra.mxu0 0.0
  %525 = vmatprep.subr.mxu0 0.0
  %526 = vmatpush1.msra.mxu0 0.0
  %527 = vmatprep.subr.mxu0 0.0
  %528 = vmatpush1.msra.mxu0 0.0
  %529 = vmatprep.subr.mxu0 0.0
  %530 = vmatpush1.msra.mxu0 0.0
  %531 = vmatprep.subr.mxu0 0.0
  %532 = vmatpush1.msra.mxu0 0.0
  %533 = vmatprep.subr.mxu0 0.0
  %534 = vmatpush1.msra.mxu0 0.0
  %535 = vmatprep.subr.mxu0 0.0
  %536 = vmatpush1.msra.mxu0 0.0
  %537 = vmatprep.subr.mxu0 0.0
  %538 = vmatpush1.msra.mxu0 %v89
  %539 = vmatprep.subr.mxu0 0.0
  %540 = vmatpush1.msra.mxu0 %v80
  %541 = vmatprep.subr.mxu0 0.0
  %542 = vmatpush1.msra.mxu0 %v71
  %543 = vmatprep.subr.mxu0 0.0
  %544 = vmatpush2.msra.mxu0 0.0
  %545 = vmatprep.subr.mxu0 0.0
  %546 = vmatpush2.msra.mxu0 0.0
  %547 = vmatprep.subr.mxu0 0.0
  %548 = vmatpush2.msra.mxu0 0.0
  %549 = vmatprep.subr.mxu0 0.0
  %550 = vmatpush2.msra.mxu0 0.0
  %551 = vmatprep.subr.mxu0 0.0
  %552 = vmatpush2.msra.mxu0 0.0
  %553 = vmatprep.subr.mxu0 0.0
  %554 = vmatpush2.msra.mxu0 0.0
  %555 = vmatprep.subr.mxu0 0.0
  %556 = vmatpush2.msra.mxu0 0.0
  %557 = vmatprep.subr.mxu0 0.0
  %558 = vmatpush2.msra.mxu0 0.0
  %559 = vmatprep.subr.mxu0 0.0
  %560 = vmatpush2.msra.mxu0 0.0
  %561 = vmatprep.subr.mxu0 0.0
  %562 = vmatpush2.msra.mxu0 0.0
  %563 = vmatprep.subr.mxu0 0.0
  %564 = vmatpush2.msra.mxu0 0.0
  %565 = vmatprep.subr.mxu0 0.0
  %566 = vmatpush2.msra.mxu0 0.0
  %567 = vmatprep.subr.mxu0 0.0
  %568 = vmatpush2.msra.mxu0 0.0
  %569 = vmatprep.subr.mxu0 0.0
  %570 = vmatpush2.msra.mxu0 0.0
  %571 = vmatprep.subr.mxu0 0.0
  %572 = vmatpush2.msra.mxu0 0.0
  %573 = vmatprep.subr.mxu0 0.0
  %574 = vmatpush2.msra.mxu0 0.0
  %575 = vmatprep.mubr.f32.mxu0 0.0
  %576 = vmatmul.mubr.f32.gmra.mxu0 %v92
  %v577 = vpop.f32.mrf.mxu0
  %v578 = vpop.f32.mrf.mxu0
  %579 = vmatprep.mubr.f32.mxu0 0.0
  %580 = vmatmul.mubr.f32.gmra.mxu0 %v95
  %v581 = vpop.f32.mrf.mxu0
  %v582 = vadd.f32 0.0, %v581
  %v583 = vpop.f32.mrf.mxu0
  %584 = vmatprep.mubr.f32.mxu0 0.0
  %585 = vmatmul.mubr.f32.gmra.mxu0 %v98
  %v586 = vpop.f32.mrf.mxu0
  %v587 = vadd.f32 0.0, %v586
  %v588 = vpop.f32.mrf.mxu0
  %589 = vmatprep.mubr.f32.mxu0 0.0
  %590 = vmatmul.mubr.f32.gmra.mxu0 %v101
  %v591 = vpop.f32.mrf.mxu0
  %v592 = vpop.f32.mrf.mxu0
  %593 = vmatprep.mubr.f32.mxu0 0.0
  %594 = vmatmul.mubr.f32.gmra.mxu0 %v104
  %v595 = vpop.f32.mrf.mxu0
  %v596 = vadd.f32 0.0, %v595
  %v597 = vpop.f32.mrf.mxu0
  %598 = vmatprep.mubr.f32.mxu0 0.0
  %599 = vmatmul.mubr.f32.gmra.mxu0 %v107
  %v600 = vpop.f32.mrf.mxu0
  %v601 = vadd.f32 0.0, %v600
  %v602 = vpop.f32.mrf.mxu0
  %603 = vdwg.mxu0
  %vm607 = vcmask 1046528
  %v608 = vrot.slane %v178, 1
  %v609 = vrot.slane %v184, 1
  %v610 = vsel %vm607, %v608, %v609
  %v611 = vrot.slane %v189, 1
  %v612 = vsel %vm607, %v609, %v611
  %v615 = vadd.f32 %v176, %v610
  %v616 = vadd.f32 %v182, %v612
  %vm620 = vcmask 1045504
  %v621 = vrot.slane %v275, 2
  %v622 = vrot.slane %v281, 2
  %v623 = vsel %vm620, %v621, %v622
  %v624 = vrot.slane %v287, 2
  %v625 = vsel %vm620, %v622, %v624
  %v628 = vadd.f32 %v615, %v623
  %v629 = vadd.f32 %v616, %v625
  %vm633 = vcmask 1044480
  %v634 = vrot.slane %v277, 3
  %v635 = vrot.slane %v283, 3
  %v636 = vsel %vm633, %v634, %v635
  %v637 = vrot.slane %v289, 3
  %v638 = vsel %vm633, %v635, %v637
  %v641 = vadd.f32 %v628, %v636
  %v642 = vadd.f32 %v629, %v638
  %vm646 = vcmask 1043456
  %v647 = vrot.slane %v376, 4
  %v648 = vrot.slane %v382, 4
  %v649 = vsel %vm646, %v647, %v648
  %v650 = vrot.slane %v388, 4
  %v651 = vsel %vm646, %v648, %v650
  %v654 = vadd.f32 %v641, %v649
  %v655 = vadd.f32 %v642, %v651
  %vm659 = vcmask 1042432
  %v660 = vrot.slane %v378, 5
  %v661 = vrot.slane %v384, 5
  %v662 = vsel %vm659, %v660, %v661
  %v663 = vrot.slane %v390, 5
  %v664 = vsel %vm659, %v661, %v663
  %v667 = vadd.f32 %v654, %v662
  %v668 = vadd.f32 %v655, %v664
  %vm672 = vcmask 1041408
  %v673 = vrot.slane %v477, 6
  %v674 = vrot.slane %v483, 6
  %v675 = vsel %vm672, %v673, %v674
  %v676 = vrot.slane %v489, 6
  %v677 = vsel %vm672, %v674, %v676
  %v680 = vadd.f32 %v667, %v675
  %v681 = vadd.f32 %v668, %v677
  %vm685 = vcmask 1040384
  %v686 = vrot.slane %v479, 7
  %v687 = vrot.slane %v485, 7
  %v688 = vsel %vm685, %v686, %v687
  %v689 = vrot.slane %v491, 7
  %v690 = vsel %vm685, %v687, %v689
  %v693 = vadd.f32 %v680, %v688
  %v694 = vadd.f32 %v681, %v690
  %v695 = vadd.f32 %v693, %v582
  %v696 = vadd.f32 %v694, %v587
  %v700 = vrot.slane %v195, 1
  %v701 = vrot.slane %v201, 1
  %v702 = vsel %vm607, %v700, %v701
  %v703 = vrot.slane %v206, 1
  %v704 = vsel %vm607, %v701, %v703
  %v707 = vadd.f32 %v193, %v702
  %v708 = vadd.f32 %v199, %v704
  %v712 = vrot.slane %v293, 2
  %v713 = vrot.slane %v299, 2
  %v714 = vsel %vm620, %v712, %v713
  %v715 = vrot.slane %v305, 2
  %v716 = vsel %vm620, %v713, %v715
  %v719 = vadd.f32 %v707, %v714
  %v720 = vadd.f32 %v708, %v716
  %v724 = vrot.slane %v295, 3
  %v725 = vrot.slane %v301, 3
  %v726 = vsel %vm633, %v724, %v725
  %v727 = vrot.slane %v307, 3
  %v728 = vsel %vm633, %v725, %v727
  %v731 = vadd.f32 %v719, %v726
  %v732 = vadd.f32 %v720, %v728
  %v736 = vrot.slane %v394, 4
  %v737 = vrot.slane %v400, 4
  %v738 = vsel %vm646, %v736, %v737
  %v739 = vrot.slane %v406, 4
  %v740 = vsel %vm646, %v737, %v739
  %v743 = vadd.f32 %v731, %v738
  %v744 = vadd.f32 %v732, %v740
  %v748 = vrot.slane %v396, 5
  %v749 = vrot.slane %v402, 5
  %v750 = vsel %vm659, %v748, %v749
  %v751 = vrot.slane %v408, 5
  %v752 = vsel %vm659, %v749, %v751
  %v755 = vadd.f32 %v743, %v750
  %v756 = vadd.f32 %v744, %v752
  %v760 = vrot.slane %v495, 6
  %v761 = vrot.slane %v501, 6
  %v762 = vsel %vm672, %v760, %v761
  %v763 = vrot.slane %v507, 6
  %v764 = vsel %vm672, %v761, %v763
  %v767 = vadd.f32 %v755, %v762
  %v768 = vadd.f32 %v756, %v764
  %v772 = vrot.slane %v497, 7
  %v773 = vrot.slane %v503, 7
  %v774 = vsel %vm685, %v772, %v773
  %v775 = vrot.slane %v509, 7
  %v776 = vsel %vm685, %v773, %v775
  %v779 = vadd.f32 %v767, %v774
  %v780 = vadd.f32 %v768, %v776
  %v781 = vadd.f32 %v779, %v596
  %v782 = vadd.f32 %v780, %v601
  %v783 = vld [vmem:[%s2] sm:$0x1]
  %v785 = vlaneseq
  %v786 = vshrl.u32 %v785, 7
  %v787 = vsub.s32 0, %v786
  %v788 = vrot.slane %v783, %v787
  %v790 = vadd.f32 %v695, %v788
  %v791 = vadd.f32 %v696, %v788
  %v792 = vadd.f32 %v781, %v788
  %v793 = vadd.f32 %v782, %v788
  %v794 = vadd.f32 %v790, %v791
  %v795 = vadd.f32 %v794, %v792
  %v796 = vadd.f32 %v795, %v793
  %v797 = vrot.slane %v796, 4
  %v798 = vadd.f32 %v796, %v797
  %v799 = vrot.slane %v798, 2
  %v800 = vadd.f32 %v798, %v799
  %v801 = vrot.slane %v800, 1
  %v802 = vadd.f32 %v800, %v801
  %v803 = vmul.f32 %v790, %v790
  %v804 = vmul.f32 %v791, %v791
  %v805 = vmul.f32 %v792, %v792
  %v806 = vmul.f32 %v793, %v793
  %v807 = vadd.f32 %v803, %v804
  %v808 = vadd.f32 %v807, %v805
  %v809 = vadd.f32 %v808, %v806
  %v810 = vrot.slane %v809, 4
  %v811 = vadd.f32 %v809, %v810
  %v812 = vrot.slane %v811, 2
  %v813 = vadd.f32 %v811, %v812
  %v814 = vrot.slane %v813, 1
  %v815 = vadd.f32 %v813, %v814
  %v816 = vld [vmem:[%s5] sm:$0xff]
  %v817 = vld [vmem:[%s5 + $0x8] sm:$0xff]
  %v818 = vld [vmem:[%s5 + $0x10] sm:$0xff]
  %v819 = vld [vmem:[%s5 + $0x18] sm:$0xff]
  %v820 = vld [vmem:[%s5 + $0x20] sm:$0xff]
  %v821 = vld [vmem:[%s5 + $0x28] sm:$0xff]
  %v822 = vld [vmem:[%s5 + $0x30] sm:$0xff]
  %v823 = vld [vmem:[%s5 + $0x38] sm:$0xff]
  %v824 = vld [vmem:[%s5 + $0x40] sm:$0xff]
  %v825 = vld [vmem:[%s5 + $0x48] sm:$0xff]
  %v826 = vld [vmem:[%s5 + $0x50] sm:$0xff]
  %v827 = vld [vmem:[%s5 + $0x58] sm:$0xff]
  %v828 = vld [vmem:[%s5 + $0x60] sm:$0xff]
  %v829 = vld [vmem:[%s5 + $0x68] sm:$0xff]
  %v830 = vld [vmem:[%s5 + $0x70] sm:$0xff]
  %v831 = vld [vmem:[%s5 + $0x78] sm:$0xff]
  %832 = vmatprep.subr.mxu0 0.0
  %833 = vmatpush1.msra.mxu0 %v831
  %834 = vmatprep.subr.mxu0 0.0
  %835 = vmatpush1.msra.mxu0 %v830
  %836 = vmatprep.subr.mxu0 0.0
  %837 = vmatpush1.msra.mxu0 %v829
  %838 = vmatprep.subr.mxu0 0.0
  %839 = vmatpush1.msra.mxu0 %v828
  %840 = vmatprep.subr.mxu0 0.0
  %841 = vmatpush1.msra.mxu0 %v827
  %842 = vmatprep.subr.mxu0 0.0
  %843 = vmatpush1.msra.mxu0 %v826
  %844 = vmatprep.subr.mxu0 0.0
  %845 = vmatpush1.msra.mxu0 %v825
  %846 = vmatprep.subr.mxu0 0.0
  %847 = vmatpush1.msra.mxu0 %v824
  %848 = vmatprep.subr.mxu0 0.0
  %849 = vmatpush1.msra.mxu0 %v823
  %850 = vmatprep.subr.mxu0 0.0
  %851 = vmatpush1.msra.mxu0 %v822
  %852 = vmatprep.subr.mxu0 0.0
  %853 = vmatpush1.msra.mxu0 %v821
  %854 = vmatprep.subr.mxu0 0.0
  %855 = vmatpush1.msra.mxu0 %v820
  %856 = vmatprep.subr.mxu0 0.0
  %857 = vmatpush1.msra.mxu0 %v819
  %858 = vmatprep.subr.mxu0 0.0
  %859 = vmatpush1.msra.mxu0 %v818
  %860 = vmatprep.subr.mxu0 0.0
  %861 = vmatpush1.msra.mxu0 %v817
  %862 = vmatprep.subr.mxu0 0.0
  %863 = vmatpush1.msra.mxu0 %v816
  %864 = vmatprep.subr.mxu0 0.0
  %865 = vmatpush2.msra.mxu0 0.0
  %866 = vmatprep.subr.mxu0 0.0
  %867 = vmatpush2.msra.mxu0 0.0
  %868 = vmatprep.subr.mxu0 0.0
  %869 = vmatpush2.msra.mxu0 0.0
  %870 = vmatprep.subr.mxu0 0.0
  %871 = vmatpush2.msra.mxu0 0.0
  %872 = vmatprep.subr.mxu0 0.0
  %873 = vmatpush2.msra.mxu0 0.0
  %874 = vmatprep.subr.mxu0 0.0
  %875 = vmatpush2.msra.mxu0 0.0
  %876 = vmatprep.subr.mxu0 0.0
  %877 = vmatpush2.msra.mxu0 0.0
  %878 = vmatprep.subr.mxu0 0.0
  %879 = vmatpush2.msra.mxu0 0.0
  %880 = vmatprep.subr.mxu0 0.0
  %881 = vmatpush2.msra.mxu0 0.0
  %882 = vmatprep.subr.mxu0 0.0
  %883 = vmatpush2.msra.mxu0 0.0
  %884 = vmatprep.subr.mxu0 0.0
  %885 = vmatpush2.msra.mxu0 0.0
  %886 = vmatprep.subr.mxu0 0.0
  %887 = vmatpush2.msra.mxu0 0.0
  %888 = vmatprep.subr.mxu0 0.0
  %889 = vmatpush2.msra.mxu0 0.0
  %890 = vmatprep.subr.mxu0 0.0
  %891 = vmatpush2.msra.mxu0 0.0
  %892 = vmatprep.subr.mxu0 0.0
  %893 = vmatpush2.msra.mxu0 0.0
  %894 = vmatprep.subr.mxu0 0.0
  %895 = vmatpush2.msra.mxu0 0.0
  %896 = vmatprep.mubr.f32.mxu0 0.0
  %897 = vmatmul.mubr.f32.gmra.mxu0 %v802
  %v898 = vpop.f32.mrf.mxu0
  %v899 = vadd.f32 0.0, %v898
  %v900 = vpop.f32.mrf.mxu0
  %901 = vdwg.mxu0
  %v902 = vmul.f32 %v899, 0.001953125
  %903 = vmatprep.subr.mxu0 0.0
  %904 = vmatpush1.msra.mxu0 %v831
  %905 = vmatprep.subr.mxu0 0.0
  %906 = vmatpush1.msra.mxu0 %v830
  %907 = vmatprep.subr.mxu0 0.0
  %908 = vmatpush1.msra.mxu0 %v829
  %909 = vmatprep.subr.mxu0 0.0
  %910 = vmatpush1.msra.mxu0 %v828
  %911 = vmatprep.subr.mxu0 0.0
  %912 = vmatpush1.msra.mxu0 %v827
  %913 = vmatprep.subr.mxu0 0.0
  %914 = vmatpush1.msra.mxu0 %v826
  %915 = vmatprep.subr.mxu0 0.0
  %916 = vmatpush1.msra.mxu0 %v825
  %917 = vmatprep.subr.mxu0 0.0
  %918 = vmatpush1.msra.mxu0 %v824
  %919 = vmatprep.subr.mxu0 0.0
  %920 = vmatpush1.msra.mxu0 %v823
  %921 = vmatprep.subr.mxu0 0.0
  %922 = vmatpush1.msra.mxu0 %v822
  %923 = vmatprep.subr.mxu0 0.0
  %924 = vmatpush1.msra.mxu0 %v821
  %925 = vmatprep.subr.mxu0 0.0
  %926 = vmatpush1.msra.mxu0 %v820
  %927 = vmatprep.subr.mxu0 0.0
  %928 = vmatpush1.msra.mxu0 %v819
  %929 = vmatprep.subr.mxu0 0.0
  %930 = vmatpush1.msra.mxu0 %v818
  %931 = vmatprep.subr.mxu0 0.0
  %932 = vmatpush1.msra.mxu0 %v817
  %933 = vmatprep.subr.mxu0 0.0
  %934 = vmatpush1.msra.mxu0 %v816
  %935 = vmatprep.subr.mxu0 0.0
  %936 = vmatpush2.msra.mxu0 0.0
  %937 = vmatprep.subr.mxu0 0.0
  %938 = vmatpush2.msra.mxu0 0.0
  %939 = vmatprep.subr.mxu0 0.0
  %940 = vmatpush2.msra.mxu0 0.0
  %941 = vmatprep.subr.mxu0 0.0
  %942 = vmatpush2.msra.mxu0 0.0
  %943 = vmatprep.subr.mxu0 0.0
  %944 = vmatpush2.msra.mxu0 0.0
  %945 = vmatprep.subr.mxu0 0.0
  %946 = vmatpush2.msra.mxu0 0.0
  %947 = vmatprep.subr.mxu0 0.0
  %948 = vmatpush2.msra.mxu0 0.0
  %949 = vmatprep.subr.mxu0 0.0
  %950 = vmatpush2.msra.mxu0 0.0
  %951 = vmatprep.subr.mxu0 0.0
  %952 = vmatpush2.msra.mxu0 0.0
  %953 = vmatprep.subr.mxu0 0.0
  %954 = vmatpush2.msra.mxu0 0.0
  %955 = vmatprep.subr.mxu0 0.0
  %956 = vmatpush2.msra.mxu0 0.0
  %957 = vmatprep.subr.mxu0 0.0
  %958 = vmatpush2.msra.mxu0 0.0
  %959 = vmatprep.subr.mxu0 0.0
  %960 = vmatpush2.msra.mxu0 0.0
  %961 = vmatprep.subr.mxu0 0.0
  %962 = vmatpush2.msra.mxu0 0.0
  %963 = vmatprep.subr.mxu0 0.0
  %964 = vmatpush2.msra.mxu0 0.0
  %965 = vmatprep.subr.mxu0 0.0
  %966 = vmatpush2.msra.mxu0 0.0
  %967 = vmatprep.mubr.f32.mxu0 0.0
  %968 = vmatmul.mubr.f32.gmra.mxu0 %v815
  %v969 = vpop.f32.mrf.mxu0
  %v970 = vadd.f32 0.0, %v969
  %v971 = vpop.f32.mrf.mxu0
  %972 = vdwg.mxu0
  %v973 = vmul.f32 %v970, 0.001953125
  %v974 = vmul.f32 %v902, %v902
  %v975 = vsub.f32 %v973, %v974
  %v976 = vmax.f32 %v975, 0.0
  %v977 = vld [vmem:[%s6] sm:$0xff]
  %vm978 = vcmask 64512
  %v980 = vsel %vm978, %v902, 0
  %982 = vmatprep.subr.mxu0 0.0
  %983 = vmatpush1.msra.mxu0 0.0
  %984 = vmatprep.subr.mxu0 0.0
  %985 = vmatpush1.msra.mxu0 0.0
  %986 = vmatprep.subr.mxu0 0.0
  %987 = vmatpush1.msra.mxu0 0.0
  %988 = vmatprep.subr.mxu0 0.0
  %989 = vmatpush1.msra.mxu0 0.0
  %990 = vmatprep.subr.mxu0 0.0
  %991 = vmatpush1.msra.mxu0 0.0
  %992 = vmatprep.subr.mxu0 0.0
  %993 = vmatpush1.msra.mxu0 0.0
  %994 = vmatprep.subr.mxu0 0.0
  %995 = vmatpush1.msra.mxu0 0.0
  %996 = vmatprep.subr.mxu0 0.0
  %997 = vmatpush1.msra.mxu0 0.0
  %998 = vmatprep.subr.mxu0 0.0
  %999 = vmatpush1.msra.mxu0 0.0
  %1000 = vmatprep.subr.mxu0 0.0
  %1001 = vmatpush1.msra.mxu0 0.0
  %1002 = vmatprep.subr.mxu0 0.0
  %1003 = vmatpush1.msra.mxu0 0.0
  %1004 = vmatprep.subr.mxu0 0.0
  %1005 = vmatpush1.msra.mxu0 0.0
  %1006 = vmatprep.subr.mxu0 0.0
  %1007 = vmatpush1.msra.mxu0 0.0
  %1008 = vmatprep.subr.mxu0 0.0
  %1009 = vmatpush1.msra.mxu0 0.0
  %1010 = vmatprep.subr.mxu0 0.0
  %1011 = vmatpush1.msra.mxu0 0.0
  %1012 = vmatprep.subr.mxu0 0.0
  %1013 = vmatpush1.msra.mxu0 %v977
  %1014 = vmatprep.subr.mxu0 0.0
  %1015 = vmatpush2.msra.mxu0 0.0
  %1016 = vmatprep.subr.mxu0 0.0
  %1017 = vmatpush2.msra.mxu0 0.0
  %1018 = vmatprep.subr.mxu0 0.0
  %1019 = vmatpush2.msra.mxu0 0.0
  %1020 = vmatprep.subr.mxu0 0.0
  %1021 = vmatpush2.msra.mxu0 0.0
  %1022 = vmatprep.subr.mxu0 0.0
  %1023 = vmatpush2.msra.mxu0 0.0
  %1024 = vmatprep.subr.mxu0 0.0
  %1025 = vmatpush2.msra.mxu0 0.0
  %1026 = vmatprep.subr.mxu0 0.0
  %1027 = vmatpush2.msra.mxu0 0.0
  %1028 = vmatprep.subr.mxu0 0.0
  %1029 = vmatpush2.msra.mxu0 0.0
  %1030 = vmatprep.subr.mxu0 0.0
  %1031 = vmatpush2.msra.mxu0 0.0
  %1032 = vmatprep.subr.mxu0 0.0
  %1033 = vmatpush2.msra.mxu0 0.0
  %1034 = vmatprep.subr.mxu0 0.0
  %1035 = vmatpush2.msra.mxu0 0.0
  %1036 = vmatprep.subr.mxu0 0.0
  %1037 = vmatpush2.msra.mxu0 0.0
  %1038 = vmatprep.subr.mxu0 0.0
  %1039 = vmatpush2.msra.mxu0 0.0
  %1040 = vmatprep.subr.mxu0 0.0
  %1041 = vmatpush2.msra.mxu0 0.0
  %1042 = vmatprep.subr.mxu0 0.0
  %1043 = vmatpush2.msra.mxu0 0.0
  %1044 = vmatprep.subr.mxu0 0.0
  %1045 = vmatpush2.msra.mxu0 0.0
  %1046 = vmatprep.mubr.f32.mxu0 0.0
  %1047 = vmatmul.mubr.f32.gmra.mxu0 %v980
  %v1048 = vpop.f32.mrf.mxu0
  %v1049 = vadd.f32 0.0, %v1048
  %v1050 = vpop.f32.mrf.mxu0
  %1051 = vdwg.mxu0
  %v1052 = vadd.f32 %v976, 1e-05
  %v1053 = vrsqrt.pop %v1052
  %v1055 = vsel %vm978, %v1053, 0
  %1057 = vmatprep.subr.mxu0 0.0
  %1058 = vmatpush1.msra.mxu0 0.0
  %1059 = vmatprep.subr.mxu0 0.0
  %1060 = vmatpush1.msra.mxu0 0.0
  %1061 = vmatprep.subr.mxu0 0.0
  %1062 = vmatpush1.msra.mxu0 0.0
  %1063 = vmatprep.subr.mxu0 0.0
  %1064 = vmatpush1.msra.mxu0 0.0
  %1065 = vmatprep.subr.mxu0 0.0
  %1066 = vmatpush1.msra.mxu0 0.0
  %1067 = vmatprep.subr.mxu0 0.0
  %1068 = vmatpush1.msra.mxu0 0.0
  %1069 = vmatprep.subr.mxu0 0.0
  %1070 = vmatpush1.msra.mxu0 0.0
  %1071 = vmatprep.subr.mxu0 0.0
  %1072 = vmatpush1.msra.mxu0 0.0
  %1073 = vmatprep.subr.mxu0 0.0
  %1074 = vmatpush1.msra.mxu0 0.0
  %1075 = vmatprep.subr.mxu0 0.0
  %1076 = vmatpush1.msra.mxu0 0.0
  %1077 = vmatprep.subr.mxu0 0.0
  %1078 = vmatpush1.msra.mxu0 0.0
  %1079 = vmatprep.subr.mxu0 0.0
  %1080 = vmatpush1.msra.mxu0 0.0
  %1081 = vmatprep.subr.mxu0 0.0
  %1082 = vmatpush1.msra.mxu0 0.0
  %1083 = vmatprep.subr.mxu0 0.0
  %1084 = vmatpush1.msra.mxu0 0.0
  %1085 = vmatprep.subr.mxu0 0.0
  %1086 = vmatpush1.msra.mxu0 0.0
  %1087 = vmatprep.subr.mxu0 0.0
  %1088 = vmatpush1.msra.mxu0 %v977
  %1089 = vmatprep.subr.mxu0 0.0
  %1090 = vmatpush2.msra.mxu0 0.0
  %1091 = vmatprep.subr.mxu0 0.0
  %1092 = vmatpush2.msra.mxu0 0.0
  %1093 = vmatprep.subr.mxu0 0.0
  %1094 = vmatpush2.msra.mxu0 0.0
  %1095 = vmatprep.subr.mxu0 0.0
  %1096 = vmatpush2.msra.mxu0 0.0
  %1097 = vmatprep.subr.mxu0 0.0
  %1098 = vmatpush2.msra.mxu0 0.0
  %1099 = vmatprep.subr.mxu0 0.0
  %1100 = vmatpush2.msra.mxu0 0.0
  %1101 = vmatprep.subr.mxu0 0.0
  %1102 = vmatpush2.msra.mxu0 0.0
  %1103 = vmatprep.subr.mxu0 0.0
  %1104 = vmatpush2.msra.mxu0 0.0
  %1105 = vmatprep.subr.mxu0 0.0
  %1106 = vmatpush2.msra.mxu0 0.0
  %1107 = vmatprep.subr.mxu0 0.0
  %1108 = vmatpush2.msra.mxu0 0.0
  %1109 = vmatprep.subr.mxu0 0.0
  %1110 = vmatpush2.msra.mxu0 0.0
  %1111 = vmatprep.subr.mxu0 0.0
  %1112 = vmatpush2.msra.mxu0 0.0
  %1113 = vmatprep.subr.mxu0 0.0
  %1114 = vmatpush2.msra.mxu0 0.0
  %1115 = vmatprep.subr.mxu0 0.0
  %1116 = vmatpush2.msra.mxu0 0.0
  %1117 = vmatprep.subr.mxu0 0.0
  %1118 = vmatpush2.msra.mxu0 0.0
  %1119 = vmatprep.subr.mxu0 0.0
  %1120 = vmatpush2.msra.mxu0 0.0
  %1121 = vmatprep.mubr.f32.mxu0 0.0
  %1122 = vmatmul.mubr.f32.gmra.mxu0 %v1055
  %v1123 = vpop.f32.mrf.mxu0
  %v1124 = vadd.f32 0.0, %v1123
  %v1125 = vpop.f32.mrf.mxu0
  %1126 = vdwg.mxu0
  %v1127 = vld [vmem:[%s3] sm:$0x1]
  %v1128 = vmul.f32 %v1127, %v1124
  %v1129 = vld [vmem:[%s4] sm:$0x1]
  %v1130 = vmul.f32 %v1049, %v1128
  %v1131 = vsub.f32 %v1129, %v1130
  %v1133 = vlaneseq
  %v1134 = vshrl.u32 %v1133, 7
  %v1135 = vsub.s32 0, %v1134
  %v1136 = vrot.slane %v1128, %v1135
  %v1138 = vmul.f32 %v790, %v1136
  %v1139 = vmul.f32 %v791, %v1136
  %v1140 = vmul.f32 %v792, %v1136
  %v1141 = vmul.f32 %v793, %v1136
  %v1143 = vlaneseq
  %v1144 = vshrl.u32 %v1143, 7
  %v1145 = vsub.s32 0, %v1144
  %v1146 = vrot.slane %v1131, %v1145
  %v1148 = vadd.f32 %v1138, %v1146
  %v1149 = vadd.f32 %v1139, %v1146
  %v1150 = vadd.f32 %v1140, %v1146
  %v1151 = vadd.f32 %v1141, %v1146
  %v1152 = vmax.f32 %v1148, 0.0
  %v1153 = vmax.f32 %v1149, 0.0
  %v1154 = vmax.f32 %v1150, 0.0
  %v1155 = vmax.f32 %v1151, 0.0
  %v1156 = vld [vmem:[%s7] sm:$0xff]
  %v1157 = vld [vmem:[%s7 + $0x8] sm:$0xff]
  %v1158 = vld [vmem:[%s7 + $0x10] sm:$0xff]
  %v1159 = vld [vmem:[%s7 + $0x18] sm:$0xff]
  %v1160 = vld [vmem:[%s7 + $0x20] sm:$0xff]
  %v1161 = vld [vmem:[%s7 + $0x28] sm:$0xff]
  %v1162 = vld [vmem:[%s7 + $0x30] sm:$0xff]
  %v1163 = vld [vmem:[%s7 + $0x38] sm:$0xff]
  %v1164 = vld [vmem:[%s7 + $0x40] sm:$0xff]
  %vm1165 = vcmask 261120
  %v1167 = vsel %vm1165, %v1156, 0
  %v1170 = vsel %vm1165, %v1157, 0
  %v1173 = vsel %vm1165, %v1158, 0
  %v1176 = vsel %vm1165, %v1159, 0
  %v1179 = vsel %vm1165, %v1160, 0
  %v1182 = vsel %vm1165, %v1161, 0
  %v1185 = vsel %vm1165, %v1162, 0
  %v1188 = vsel %vm1165, %v1163, 0
  %v1191 = vsel %vm1165, %v1164, 0
  %1193 = vmatprep.subr.mxu0 0.0
  %1194 = vmatpush1.msra.mxu0 0.0
  %1195 = vmatprep.subr.mxu0 0.0
  %1196 = vmatpush1.msra.mxu0 0.0
  %1197 = vmatprep.subr.mxu0 0.0
  %1198 = vmatpush1.msra.mxu0 0.0
  %1199 = vmatprep.subr.mxu0 0.0
  %1200 = vmatpush1.msra.mxu0 0.0
  %1201 = vmatprep.subr.mxu0 0.0
  %1202 = vmatpush1.msra.mxu0 0.0
  %1203 = vmatprep.subr.mxu0 0.0
  %1204 = vmatpush1.msra.mxu0 0.0
  %1205 = vmatprep.subr.mxu0 0.0
  %1206 = vmatpush1.msra.mxu0 0.0
  %1207 = vmatprep.subr.mxu0 0.0
  %1208 = vmatpush1.msra.mxu0 0.0
  %1209 = vmatprep.subr.mxu0 0.0
  %1210 = vmatpush1.msra.mxu0 0.0
  %1211 = vmatprep.subr.mxu0 0.0
  %1212 = vmatpush1.msra.mxu0 0.0
  %1213 = vmatprep.subr.mxu0 0.0
  %1214 = vmatpush1.msra.mxu0 0.0
  %1215 = vmatprep.subr.mxu0 0.0
  %1216 = vmatpush1.msra.mxu0 0.0
  %1217 = vmatprep.subr.mxu0 0.0
  %1218 = vmatpush1.msra.mxu0 %v1155
  %1219 = vmatprep.subr.mxu0 0.0
  %1220 = vmatpush1.msra.mxu0 %v1154
  %1221 = vmatprep.subr.mxu0 0.0
  %1222 = vmatpush1.msra.mxu0 %v1153
  %1223 = vmatprep.subr.mxu0 0.0
  %1224 = vmatpush1.msra.mxu0 %v1152
  %1225 = vmatprep.subr.mxu0 0.0
  %1226 = vmatpush2.msra.mxu0 0.0
  %1227 = vmatprep.subr.mxu0 0.0
  %1228 = vmatpush2.msra.mxu0 0.0
  %1229 = vmatprep.subr.mxu0 0.0
  %1230 = vmatpush2.msra.mxu0 0.0
  %1231 = vmatprep.subr.mxu0 0.0
  %1232 = vmatpush2.msra.mxu0 0.0
  %1233 = vmatprep.subr.mxu0 0.0
  %1234 = vmatpush2.msra.mxu0 0.0
  %1235 = vmatprep.subr.mxu0 0.0
  %1236 = vmatpush2.msra.mxu0 0.0
  %1237 = vmatprep.subr.mxu0 0.0
  %1238 = vmatpush2.msra.mxu0 0.0
  %1239 = vmatprep.subr.mxu0 0.0
  %1240 = vmatpush2.msra.mxu0 0.0
  %1241 = vmatprep.subr.mxu0 0.0
  %1242 = vmatpush2.msra.mxu0 0.0
  %1243 = vmatprep.subr.mxu0 0.0
  %1244 = vmatpush2.msra.mxu0 0.0
  %1245 = vmatprep.subr.mxu0 0.0
  %1246 = vmatpush2.msra.mxu0 0.0
  %1247 = vmatprep.subr.mxu0 0.0
  %1248 = vmatpush2.msra.mxu0 0.0
  %1249 = vmatprep.subr.mxu0 0.0
  %1250 = vmatpush2.msra.mxu0 0.0
  %1251 = vmatprep.subr.mxu0 0.0
  %1252 = vmatpush2.msra.mxu0 0.0
  %1253 = vmatprep.subr.mxu0 0.0
  %1254 = vmatpush2.msra.mxu0 0.0
  %1255 = vmatprep.subr.mxu0 0.0
  %1256 = vmatpush2.msra.mxu0 0.0
  %1257 = vmatprep.mubr.f32.mxu0 0.0
  %1258 = vmatmul.mubr.f32.gmra.mxu0 %v1167
  %v1259 = vpop.f32.mrf.mxu0
  %v1260 = vadd.f32 0.0, %v1259
  %v1261 = vpop.f32.mrf.mxu0
  %1262 = vmatprep.mubr.f32.mxu0 0.0
  %1263 = vmatmul.mubr.f32.gmra.mxu0 %v1170
  %v1264 = vpop.f32.mrf.mxu0
  %v1265 = vadd.f32 0.0, %v1264
  %v1266 = vpop.f32.mrf.mxu0
  %1267 = vmatprep.mubr.f32.mxu0 0.0
  %1268 = vmatmul.mubr.f32.gmra.mxu0 %v1173
  %v1269 = vpop.f32.mrf.mxu0
  %v1270 = vadd.f32 0.0, %v1269
  %v1271 = vpop.f32.mrf.mxu0
  %1272 = vmatprep.mubr.f32.mxu0 0.0
  %1273 = vmatmul.mubr.f32.gmra.mxu0 %v1176
  %v1274 = vpop.f32.mrf.mxu0
  %v1275 = vadd.f32 0.0, %v1274
  %v1276 = vpop.f32.mrf.mxu0
  %1277 = vmatprep.mubr.f32.mxu0 0.0
  %1278 = vmatmul.mubr.f32.gmra.mxu0 %v1179
  %v1279 = vpop.f32.mrf.mxu0
  %v1280 = vadd.f32 0.0, %v1279
  %v1281 = vpop.f32.mrf.mxu0
  %1282 = vmatprep.mubr.f32.mxu0 0.0
  %1283 = vmatmul.mubr.f32.gmra.mxu0 %v1182
  %v1284 = vpop.f32.mrf.mxu0
  %v1285 = vadd.f32 0.0, %v1284
  %v1286 = vpop.f32.mrf.mxu0
  %1287 = vmatprep.mubr.f32.mxu0 0.0
  %1288 = vmatmul.mubr.f32.gmra.mxu0 %v1185
  %v1289 = vpop.f32.mrf.mxu0
  %v1290 = vadd.f32 0.0, %v1289
  %v1291 = vpop.f32.mrf.mxu0
  %1292 = vmatprep.mubr.f32.mxu0 0.0
  %1293 = vmatmul.mubr.f32.gmra.mxu0 %v1188
  %v1294 = vpop.f32.mrf.mxu0
  %v1295 = vadd.f32 0.0, %v1294
  %v1296 = vpop.f32.mrf.mxu0
  %1297 = vmatprep.mubr.f32.mxu0 0.0
  %1298 = vmatmul.mubr.f32.gmra.mxu0 %v1191
  %v1299 = vpop.f32.mrf.mxu0
  %v1300 = vadd.f32 0.0, %v1299
  %v1301 = vpop.f32.mrf.mxu0
  %1302 = vdwg.mxu0
  %v1303 = vld [vmem:[%s8] sm:$0xff]
  %v1304 = vld [vmem:[%s8 + $0x8] sm:$0xff]
  %v1305 = vld [vmem:[%s8 + $0x10] sm:$0xff]
  %v1306 = vld [vmem:[%s8 + $0x18] sm:$0xff]
  %v1307 = vld [vmem:[%s8 + $0x20] sm:$0xff]
  %v1308 = vld [vmem:[%s8 + $0x28] sm:$0xff]
  %v1309 = vld [vmem:[%s8 + $0x30] sm:$0xff]
  %v1310 = vld [vmem:[%s8 + $0x38] sm:$0xff]
  %v1311 = vld [vmem:[%s8 + $0x40] sm:$0xff]
  %v1312 = vld [vmem:[%s8 + $0x48] sm:$0xff]
  %v1313 = vld [vmem:[%s8 + $0x50] sm:$0xff]
  %v1314 = vld [vmem:[%s8 + $0x58] sm:$0xff]
  %v1315 = vld [vmem:[%s8 + $0x60] sm:$0xff]
  %v1316 = vld [vmem:[%s8 + $0x68] sm:$0xff]
  %v1317 = vld [vmem:[%s8 + $0x70] sm:$0xff]
  %v1318 = vld [vmem:[%s8 + $0x78] sm:$0xff]
  %v1319 = vld [vmem:[%s8 + $0x80] sm:$0xff]
  %v1320 = vld [vmem:[%s8 + $0x88] sm:$0xff]
  %v1321 = vld [vmem:[%s8 + $0x90] sm:$0xff]
  %v1322 = vld [vmem:[%s8 + $0x98] sm:$0xff]
  %v1323 = vld [vmem:[%s8 + $0xa0] sm:$0xff]
  %v1324 = vld [vmem:[%s8 + $0xa8] sm:$0xff]
  %v1325 = vld [vmem:[%s8 + $0xb0] sm:$0xff]
  %v1326 = vld [vmem:[%s8 + $0xb8] sm:$0xff]
  %v1327 = vld [vmem:[%s8 + $0xc0] sm:$0xff]
  %v1328 = vld [vmem:[%s8 + $0xc8] sm:$0xff]
  %v1329 = vld [vmem:[%s8 + $0xd0] sm:$0xff]
  %v1330 = vld [vmem:[%s8 + $0xd8] sm:$0xff]
  %v1331 = vld [vmem:[%s8 + $0xe0] sm:$0xff]
  %v1332 = vld [vmem:[%s8 + $0xe8] sm:$0xff]
  %v1333 = vld [vmem:[%s8 + $0xf0] sm:$0xff]
  %v1334 = vld [vmem:[%s8 + $0xf8] sm:$0xff]
  %v1335 = vld [vmem:[%s8 + $0x100] sm:$0xff]
  %v1336 = vld [vmem:[%s8 + $0x108] sm:$0xff]
  %v1337 = vld [vmem:[%s8 + $0x110] sm:$0xff]
  %v1338 = vld [vmem:[%s8 + $0x118] sm:$0xff]
  %v1339 = vld [vmem:[%s8 + $0x120] sm:$0xff]
  %v1340 = vld [vmem:[%s8 + $0x128] sm:$0xff]
  %v1341 = vld [vmem:[%s8 + $0x130] sm:$0xff]
  %v1342 = vld [vmem:[%s8 + $0x138] sm:$0xff]
  %v1343 = vld [vmem:[%s8 + $0x140] sm:$0xff]
  %v1344 = vld [vmem:[%s8 + $0x148] sm:$0xff]
  %v1345 = vld [vmem:[%s8 + $0x150] sm:$0xff]
  %v1346 = vld [vmem:[%s8 + $0x158] sm:$0xff]
  %v1347 = vld [vmem:[%s8 + $0x160] sm:$0xff]
  %v1348 = vld [vmem:[%s8 + $0x168] sm:$0xff]
  %v1349 = vld [vmem:[%s8 + $0x170] sm:$0xff]
  %v1350 = vld [vmem:[%s8 + $0x178] sm:$0xff]
  %v1351 = vld [vmem:[%s8 + $0x180] sm:$0xff]
  %v1352 = vld [vmem:[%s8 + $0x188] sm:$0xff]
  %v1353 = vld [vmem:[%s8 + $0x190] sm:$0xff]
  %v1354 = vld [vmem:[%s8 + $0x198] sm:$0xff]
  %v1355 = vld [vmem:[%s8 + $0x1a0] sm:$0xff]
  %v1356 = vld [vmem:[%s8 + $0x1a8] sm:$0xff]
  %v1357 = vld [vmem:[%s8 + $0x1b0] sm:$0xff]
  %v1358 = vld [vmem:[%s8 + $0x1b8] sm:$0xff]
  %v1359 = vld [vmem:[%s8 + $0x1c0] sm:$0xff]
  %v1360 = vld [vmem:[%s8 + $0x1c8] sm:$0xff]
  %v1361 = vld [vmem:[%s8 + $0x1d0] sm:$0xff]
  %v1362 = vld [vmem:[%s8 + $0x1d8] sm:$0xff]
  %v1363 = vld [vmem:[%s8 + $0x1e0] sm:$0xff]
  %v1364 = vld [vmem:[%s8 + $0x1e8] sm:$0xff]
  %v1365 = vld [vmem:[%s8 + $0x1f0] sm:$0xff]
  %v1366 = vld [vmem:[%s8 + $0x1f8] sm:$0xff]
  %v1367 = vld [vmem:[%s8 + $0x200] sm:$0xff]
  %v1368 = vld [vmem:[%s8 + $0x208] sm:$0xff]
  %v1369 = vld [vmem:[%s8 + $0x210] sm:$0xff]
  %v1370 = vld [vmem:[%s8 + $0x218] sm:$0xff]
  %v1371 = vld [vmem:[%s8 + $0x220] sm:$0xff]
  %v1372 = vld [vmem:[%s8 + $0x228] sm:$0xff]
  %v1373 = vld [vmem:[%s8 + $0x230] sm:$0xff]
  %v1374 = vld [vmem:[%s8 + $0x238] sm:$0xff]
  %v1375 = vld [vmem:[%s8 + $0x240] sm:$0xff]
  %v1376 = vld [vmem:[%s8 + $0x248] sm:$0xff]
  %v1377 = vld [vmem:[%s8 + $0x250] sm:$0xff]
  %v1378 = vld [vmem:[%s8 + $0x258] sm:$0xff]
  %v1379 = vld [vmem:[%s8 + $0x260] sm:$0xff]
  %v1380 = vld [vmem:[%s8 + $0x268] sm:$0xff]
  %v1381 = vld [vmem:[%s8 + $0x270] sm:$0xff]
  %v1382 = vld [vmem:[%s8 + $0x278] sm:$0xff]
  %v1383 = vld [vmem:[%s8 + $0x280] sm:$0xff]
  %v1384 = vld [vmem:[%s8 + $0x288] sm:$0xff]
  %v1385 = vld [vmem:[%s8 + $0x290] sm:$0xff]
  %v1386 = vld [vmem:[%s8 + $0x298] sm:$0xff]
  %v1387 = vld [vmem:[%s8 + $0x2a0] sm:$0xff]
  %v1388 = vld [vmem:[%s8 + $0x2a8] sm:$0xff]
  %v1389 = vld [vmem:[%s8 + $0x2b0] sm:$0xff]
  %v1390 = vld [vmem:[%s8 + $0x2b8] sm:$0xff]
  %v1391 = vld [vmem:[%s8 + $0x2c0] sm:$0xff]
  %v1392 = vld [vmem:[%s8 + $0x2c8] sm:$0xff]
  %v1393 = vld [vmem:[%s8 + $0x2d0] sm:$0xff]
  %v1394 = vld [vmem:[%s8 + $0x2d8] sm:$0xff]
  %v1395 = vld [vmem:[%s8 + $0x2e0] sm:$0xff]
  %v1396 = vld [vmem:[%s8 + $0x2e8] sm:$0xff]
  %v1397 = vld [vmem:[%s8 + $0x2f0] sm:$0xff]
  %v1398 = vld [vmem:[%s8 + $0x2f8] sm:$0xff]
  %v1399 = vld [vmem:[%s8 + $0x300] sm:$0xff]
  %v1400 = vld [vmem:[%s8 + $0x308] sm:$0xff]
  %v1401 = vld [vmem:[%s8 + $0x310] sm:$0xff]
  %v1402 = vld [vmem:[%s8 + $0x318] sm:$0xff]
  %v1403 = vld [vmem:[%s8 + $0x320] sm:$0xff]
  %v1404 = vld [vmem:[%s8 + $0x328] sm:$0xff]
  %v1405 = vld [vmem:[%s8 + $0x330] sm:$0xff]
  %v1406 = vld [vmem:[%s8 + $0x338] sm:$0xff]
  %v1407 = vld [vmem:[%s8 + $0x340] sm:$0xff]
  %v1408 = vld [vmem:[%s8 + $0x348] sm:$0xff]
  %v1409 = vld [vmem:[%s8 + $0x350] sm:$0xff]
  %v1410 = vld [vmem:[%s8 + $0x358] sm:$0xff]
  %v1411 = vld [vmem:[%s8 + $0x360] sm:$0xff]
  %v1412 = vld [vmem:[%s8 + $0x368] sm:$0xff]
  %v1413 = vld [vmem:[%s8 + $0x370] sm:$0xff]
  %v1414 = vld [vmem:[%s8 + $0x378] sm:$0xff]
  %v1415 = vld [vmem:[%s8 + $0x380] sm:$0xff]
  %v1416 = vld [vmem:[%s8 + $0x388] sm:$0xff]
  %v1417 = vld [vmem:[%s8 + $0x390] sm:$0xff]
  %v1418 = vld [vmem:[%s8 + $0x398] sm:$0xff]
  %v1419 = vld [vmem:[%s8 + $0x3a0] sm:$0xff]
  %v1420 = vld [vmem:[%s8 + $0x3a8] sm:$0xff]
  %v1421 = vld [vmem:[%s8 + $0x3b0] sm:$0xff]
  %v1422 = vld [vmem:[%s8 + $0x3b8] sm:$0xff]
  %v1423 = vld [vmem:[%s8 + $0x3c0] sm:$0xff]
  %v1424 = vld [vmem:[%s8 + $0x3c8] sm:$0xff]
  %v1425 = vld [vmem:[%s8 + $0x3d0] sm:$0xff]
  %v1426 = vld [vmem:[%s8 + $0x3d8] sm:$0xff]
  %v1427 = vld [vmem:[%s8 + $0x3e0] sm:$0xff]
  %v1428 = vld [vmem:[%s8 + $0x3e8] sm:$0xff]
  %v1429 = vld [vmem:[%s8 + $0x3f0] sm:$0xff]
  %v1430 = vld [vmem:[%s8 + $0x3f8] sm:$0xff]
  %v1431 = vld [vmem:[%s8 + $0x400] sm:$0xff]
  %v1432 = vld [vmem:[%s8 + $0x408] sm:$0xff]
  %v1433 = vld [vmem:[%s8 + $0x410] sm:$0xff]
  %v1434 = vld [vmem:[%s8 + $0x418] sm:$0xff]
  %v1435 = vld [vmem:[%s8 + $0x420] sm:$0xff]
  %v1436 = vld [vmem:[%s8 + $0x428] sm:$0xff]
  %v1437 = vld [vmem:[%s8 + $0x430] sm:$0xff]
  %v1438 = vld [vmem:[%s8 + $0x438] sm:$0xff]
  %v1439 = vld [vmem:[%s8 + $0x440] sm:$0xff]
  %v1440 = vld [vmem:[%s8 + $0x448] sm:$0xff]
  %v1441 = vld [vmem:[%s8 + $0x450] sm:$0xff]
  %v1442 = vld [vmem:[%s8 + $0x458] sm:$0xff]
  %v1443 = vld [vmem:[%s8 + $0x460] sm:$0xff]
  %v1444 = vld [vmem:[%s8 + $0x468] sm:$0xff]
  %v1445 = vld [vmem:[%s8 + $0x470] sm:$0xff]
  %v1446 = vld [vmem:[%s8 + $0x478] sm:$0xff]
  %v1447 = vld [vmem:[%s9] sm:$0x1]
  %v1449 = vlaneseq
  %v1450 = vshrl.u32 %v1449, 7
  %v1451 = vsub.s32 0, %v1450
  %v1452 = vrot.slane %v1447, %v1451
  %1454 = vmatprep.subr.mxu0 0.0
  %1455 = vmatpush1.msra.mxu0 %v1318
  %1456 = vmatprep.subr.mxu0 0.0
  %1457 = vmatpush1.msra.mxu0 %v1317
  %1458 = vmatprep.subr.mxu0 0.0
  %1459 = vmatpush1.msra.mxu0 %v1316
  %1460 = vmatprep.subr.mxu0 0.0
  %1461 = vmatpush1.msra.mxu0 %v1315
  %1462 = vmatprep.subr.mxu0 0.0
  %1463 = vmatpush1.msra.mxu0 %v1314
  %1464 = vmatprep.subr.mxu0 0.0
  %1465 = vmatpush1.msra.mxu0 %v1313
  %1466 = vmatprep.subr.mxu0 0.0
  %1467 = vmatpush1.msra.mxu0 %v1312
  %1468 = vmatprep.subr.mxu0 0.0
  %1469 = vmatpush1.msra.mxu0 %v1311
  %1470 = vmatprep.subr.mxu0 0.0
  %1471 = vmatpush1.msra.mxu0 %v1310
  %1472 = vmatprep.subr.mxu0 0.0
  %1473 = vmatpush1.msra.mxu0 %v1309
  %1474 = vmatprep.subr.mxu0 0.0
  %1475 = vmatpush1.msra.mxu0 %v1308
  %1476 = vmatprep.subr.mxu0 0.0
  %1477 = vmatpush1.msra.mxu0 %v1307
  %1478 = vmatprep.subr.mxu0 0.0
  %1479 = vmatpush1.msra.mxu0 %v1306
  %1480 = vmatprep.subr.mxu0 0.0
  %1481 = vmatpush1.msra.mxu0 %v1305
  %1482 = vmatprep.subr.mxu0 0.0
  %1483 = vmatpush1.msra.mxu0 %v1304
  %1484 = vmatprep.subr.mxu0 0.0
  %1485 = vmatpush1.msra.mxu0 %v1303
  %1486 = vmatprep.subr.mxu0 0.0
  %1487 = vmatpush2.msra.mxu0 %v1334
  %1488 = vmatprep.subr.mxu0 0.0
  %1489 = vmatpush2.msra.mxu0 %v1333
  %1490 = vmatprep.subr.mxu0 0.0
  %1491 = vmatpush2.msra.mxu0 %v1332
  %1492 = vmatprep.subr.mxu0 0.0
  %1493 = vmatpush2.msra.mxu0 %v1331
  %1494 = vmatprep.subr.mxu0 0.0
  %1495 = vmatpush2.msra.mxu0 %v1330
  %1496 = vmatprep.subr.mxu0 0.0
  %1497 = vmatpush2.msra.mxu0 %v1329
  %1498 = vmatprep.subr.mxu0 0.0
  %1499 = vmatpush2.msra.mxu0 %v1328
  %1500 = vmatprep.subr.mxu0 0.0
  %1501 = vmatpush2.msra.mxu0 %v1327
  %1502 = vmatprep.subr.mxu0 0.0
  %1503 = vmatpush2.msra.mxu0 %v1326
  %1504 = vmatprep.subr.mxu0 0.0
  %1505 = vmatpush2.msra.mxu0 %v1325
  %1506 = vmatprep.subr.mxu0 0.0
  %1507 = vmatpush2.msra.mxu0 %v1324
  %1508 = vmatprep.subr.mxu0 0.0
  %1509 = vmatpush2.msra.mxu0 %v1323
  %1510 = vmatprep.subr.mxu0 0.0
  %1511 = vmatpush2.msra.mxu0 %v1322
  %1512 = vmatprep.subr.mxu0 0.0
  %1513 = vmatpush2.msra.mxu0 %v1321
  %1514 = vmatprep.subr.mxu0 0.0
  %1515 = vmatpush2.msra.mxu0 %v1320
  %1516 = vmatprep.subr.mxu0 0.0
  %1517 = vmatpush2.msra.mxu0 %v1319
  %1518 = vmatprep.mubr.f32.mxu0 %v1265
  %1519 = vmatmul.mubr.f32.gmra.mxu0 %v1260
  %v1520 = vpop.f32.mrf.mxu0
  %v1521 = vadd.f32 %v1452, %v1520
  %v1522 = vpop.f32.mrf.mxu0
  %1523 = vdwg.mxu0
  %1524 = vmatprep.subr.mxu0 0.0
  %1525 = vmatpush1.msra.mxu0 %v1350
  %1526 = vmatprep.subr.mxu0 0.0
  %1527 = vmatpush1.msra.mxu0 %v1349
  %1528 = vmatprep.subr.mxu0 0.0
  %1529 = vmatpush1.msra.mxu0 %v1348
  %1530 = vmatprep.subr.mxu0 0.0
  %1531 = vmatpush1.msra.mxu0 %v1347
  %1532 = vmatprep.subr.mxu0 0.0
  %1533 = vmatpush1.msra.mxu0 %v1346
  %1534 = vmatprep.subr.mxu0 0.0
  %1535 = vmatpush1.msra.mxu0 %v1345
  %1536 = vmatprep.subr.mxu0 0.0
  %1537 = vmatpush1.msra.mxu0 %v1344
  %1538 = vmatprep.subr.mxu0 0.0
  %1539 = vmatpush1.msra.mxu0 %v1343
  %1540 = vmatprep.subr.mxu0 0.0
  %1541 = vmatpush1.msra.mxu0 %v1342
  %1542 = vmatprep.subr.mxu0 0.0
  %1543 = vmatpush1.msra.mxu0 %v1341
  %1544 = vmatprep.subr.mxu0 0.0
  %1545 = vmatpush1.msra.mxu0 %v1340
  %1546 = vmatprep.subr.mxu0 0.0
  %1547 = vmatpush1.msra.mxu0 %v1339
  %1548 = vmatprep.subr.mxu0 0.0
  %1549 = vmatpush1.msra.mxu0 %v1338
  %1550 = vmatprep.subr.mxu0 0.0
  %1551 = vmatpush1.msra.mxu0 %v1337
  %1552 = vmatprep.subr.mxu0 0.0
  %1553 = vmatpush1.msra.mxu0 %v1336
  %1554 = vmatprep.subr.mxu0 0.0
  %1555 = vmatpush1.msra.mxu0 %v1335
  %1556 = vmatprep.subr.mxu0 0.0
  %1557 = vmatpush2.msra.mxu0 %v1366
  %1558 = vmatprep.subr.mxu0 0.0
  %1559 = vmatpush2.msra.mxu0 %v1365
  %1560 = vmatprep.subr.mxu0 0.0
  %1561 = vmatpush2.msra.mxu0 %v1364
  %1562 = vmatprep.subr.mxu0 0.0
  %1563 = vmatpush2.msra.mxu0 %v1363
  %1564 = vmatprep.subr.mxu0 0.0
  %1565 = vmatpush2.msra.mxu0 %v1362
  %1566 = vmatprep.subr.mxu0 0.0
  %1567 = vmatpush2.msra.mxu0 %v1361
  %1568 = vmatprep.subr.mxu0 0.0
  %1569 = vmatpush2.msra.mxu0 %v1360
  %1570 = vmatprep.subr.mxu0 0.0
  %1571 = vmatpush2.msra.mxu0 %v1359
  %1572 = vmatprep.subr.mxu0 0.0
  %1573 = vmatpush2.msra.mxu0 %v1358
  %1574 = vmatprep.subr.mxu0 0.0
  %1575 = vmatpush2.msra.mxu0 %v1357
  %1576 = vmatprep.subr.mxu0 0.0
  %1577 = vmatpush2.msra.mxu0 %v1356
  %1578 = vmatprep.subr.mxu0 0.0
  %1579 = vmatpush2.msra.mxu0 %v1355
  %1580 = vmatprep.subr.mxu0 0.0
  %1581 = vmatpush2.msra.mxu0 %v1354
  %1582 = vmatprep.subr.mxu0 0.0
  %1583 = vmatpush2.msra.mxu0 %v1353
  %1584 = vmatprep.subr.mxu0 0.0
  %1585 = vmatpush2.msra.mxu0 %v1352
  %1586 = vmatprep.subr.mxu0 0.0
  %1587 = vmatpush2.msra.mxu0 %v1351
  %1588 = vmatprep.mubr.f32.mxu0 %v1275
  %1589 = vmatmul.mubr.f32.gmra.mxu0 %v1270
  %v1590 = vpop.f32.mrf.mxu0
  %v1591 = vadd.f32 %v1521, %v1590
  %v1592 = vpop.f32.mrf.mxu0
  %1593 = vdwg.mxu0
  %1594 = vmatprep.subr.mxu0 0.0
  %1595 = vmatpush1.msra.mxu0 %v1382
  %1596 = vmatprep.subr.mxu0 0.0
  %1597 = vmatpush1.msra.mxu0 %v1381
  %1598 = vmatprep.subr.mxu0 0.0
  %1599 = vmatpush1.msra.mxu0 %v1380
  %1600 = vmatprep.subr.mxu0 0.0
  %1601 = vmatpush1.msra.mxu0 %v1379
  %1602 = vmatprep.subr.mxu0 0.0
  %1603 = vmatpush1.msra.mxu0 %v1378
  %1604 = vmatprep.subr.mxu0 0.0
  %1605 = vmatpush1.msra.mxu0 %v1377
  %1606 = vmatprep.subr.mxu0 0.0
  %1607 = vmatpush1.msra.mxu0 %v1376
  %1608 = vmatprep.subr.mxu0 0.0
  %1609 = vmatpush1.msra.mxu0 %v1375
  %1610 = vmatprep.subr.mxu0 0.0
  %1611 = vmatpush1.msra.mxu0 %v1374
  %1612 = vmatprep.subr.mxu0 0.0
  %1613 = vmatpush1.msra.mxu0 %v1373
  %1614 = vmatprep.subr.mxu0 0.0
  %1615 = vmatpush1.msra.mxu0 %v1372
  %1616 = vmatprep.subr.mxu0 0.0
  %1617 = vmatpush1.msra.mxu0 %v1371
  %1618 = vmatprep.subr.mxu0 0.0
  %1619 = vmatpush1.msra.mxu0 %v1370
  %1620 = vmatprep.subr.mxu0 0.0
  %1621 = vmatpush1.msra.mxu0 %v1369
  %1622 = vmatprep.subr.mxu0 0.0
  %1623 = vmatpush1.msra.mxu0 %v1368
  %1624 = vmatprep.subr.mxu0 0.0
  %1625 = vmatpush1.msra.mxu0 %v1367
  %1626 = vmatprep.subr.mxu0 0.0
  %1627 = vmatpush2.msra.mxu0 %v1398
  %1628 = vmatprep.subr.mxu0 0.0
  %1629 = vmatpush2.msra.mxu0 %v1397
  %1630 = vmatprep.subr.mxu0 0.0
  %1631 = vmatpush2.msra.mxu0 %v1396
  %1632 = vmatprep.subr.mxu0 0.0
  %1633 = vmatpush2.msra.mxu0 %v1395
  %1634 = vmatprep.subr.mxu0 0.0
  %1635 = vmatpush2.msra.mxu0 %v1394
  %1636 = vmatprep.subr.mxu0 0.0
  %1637 = vmatpush2.msra.mxu0 %v1393
  %1638 = vmatprep.subr.mxu0 0.0
  %1639 = vmatpush2.msra.mxu0 %v1392
  %1640 = vmatprep.subr.mxu0 0.0
  %1641 = vmatpush2.msra.mxu0 %v1391
  %1642 = vmatprep.subr.mxu0 0.0
  %1643 = vmatpush2.msra.mxu0 %v1390
  %1644 = vmatprep.subr.mxu0 0.0
  %1645 = vmatpush2.msra.mxu0 %v1389
  %1646 = vmatprep.subr.mxu0 0.0
  %1647 = vmatpush2.msra.mxu0 %v1388
  %1648 = vmatprep.subr.mxu0 0.0
  %1649 = vmatpush2.msra.mxu0 %v1387
  %1650 = vmatprep.subr.mxu0 0.0
  %1651 = vmatpush2.msra.mxu0 %v1386
  %1652 = vmatprep.subr.mxu0 0.0
  %1653 = vmatpush2.msra.mxu0 %v1385
  %1654 = vmatprep.subr.mxu0 0.0
  %1655 = vmatpush2.msra.mxu0 %v1384
  %1656 = vmatprep.subr.mxu0 0.0
  %1657 = vmatpush2.msra.mxu0 %v1383
  %1658 = vmatprep.mubr.f32.mxu0 %v1285
  %1659 = vmatmul.mubr.f32.gmra.mxu0 %v1280
  %v1660 = vpop.f32.mrf.mxu0
  %v1661 = vadd.f32 %v1591, %v1660
  %v1662 = vpop.f32.mrf.mxu0
  %1663 = vdwg.mxu0
  %1664 = vmatprep.subr.mxu0 0.0
  %1665 = vmatpush1.msra.mxu0 %v1414
  %1666 = vmatprep.subr.mxu0 0.0
  %1667 = vmatpush1.msra.mxu0 %v1413
  %1668 = vmatprep.subr.mxu0 0.0
  %1669 = vmatpush1.msra.mxu0 %v1412
  %1670 = vmatprep.subr.mxu0 0.0
  %1671 = vmatpush1.msra.mxu0 %v1411
  %1672 = vmatprep.subr.mxu0 0.0
  %1673 = vmatpush1.msra.mxu0 %v1410
  %1674 = vmatprep.subr.mxu0 0.0
  %1675 = vmatpush1.msra.mxu0 %v1409
  %1676 = vmatprep.subr.mxu0 0.0
  %1677 = vmatpush1.msra.mxu0 %v1408
  %1678 = vmatprep.subr.mxu0 0.0
  %1679 = vmatpush1.msra.mxu0 %v1407
  %1680 = vmatprep.subr.mxu0 0.0
  %1681 = vmatpush1.msra.mxu0 %v1406
  %1682 = vmatprep.subr.mxu0 0.0
  %1683 = vmatpush1.msra.mxu0 %v1405
  %1684 = vmatprep.subr.mxu0 0.0
  %1685 = vmatpush1.msra.mxu0 %v1404
  %1686 = vmatprep.subr.mxu0 0.0
  %1687 = vmatpush1.msra.mxu0 %v1403
  %1688 = vmatprep.subr.mxu0 0.0
  %1689 = vmatpush1.msra.mxu0 %v1402
  %1690 = vmatprep.subr.mxu0 0.0
  %1691 = vmatpush1.msra.mxu0 %v1401
  %1692 = vmatprep.subr.mxu0 0.0
  %1693 = vmatpush1.msra.mxu0 %v1400
  %1694 = vmatprep.subr.mxu0 0.0
  %1695 = vmatpush1.msra.mxu0 %v1399
  %1696 = vmatprep.subr.mxu0 0.0
  %1697 = vmatpush2.msra.mxu0 %v1430
  %1698 = vmatprep.subr.mxu0 0.0
  %1699 = vmatpush2.msra.mxu0 %v1429
  %1700 = vmatprep.subr.mxu0 0.0
  %1701 = vmatpush2.msra.mxu0 %v1428
  %1702 = vmatprep.subr.mxu0 0.0
  %1703 = vmatpush2.msra.mxu0 %v1427
  %1704 = vmatprep.subr.mxu0 0.0
  %1705 = vmatpush2.msra.mxu0 %v1426
  %1706 = vmatprep.subr.mxu0 0.0
  %1707 = vmatpush2.msra.mxu0 %v1425
  %1708 = vmatprep.subr.mxu0 0.0
  %1709 = vmatpush2.msra.mxu0 %v1424
  %1710 = vmatprep.subr.mxu0 0.0
  %1711 = vmatpush2.msra.mxu0 %v1423
  %1712 = vmatprep.subr.mxu0 0.0
  %1713 = vmatpush2.msra.mxu0 %v1422
  %1714 = vmatprep.subr.mxu0 0.0
  %1715 = vmatpush2.msra.mxu0 %v1421
  %1716 = vmatprep.subr.mxu0 0.0
  %1717 = vmatpush2.msra.mxu0 %v1420
  %1718 = vmatprep.subr.mxu0 0.0
  %1719 = vmatpush2.msra.mxu0 %v1419
  %1720 = vmatprep.subr.mxu0 0.0
  %1721 = vmatpush2.msra.mxu0 %v1418
  %1722 = vmatprep.subr.mxu0 0.0
  %1723 = vmatpush2.msra.mxu0 %v1417
  %1724 = vmatprep.subr.mxu0 0.0
  %1725 = vmatpush2.msra.mxu0 %v1416
  %1726 = vmatprep.subr.mxu0 0.0
  %1727 = vmatpush2.msra.mxu0 %v1415
  %1728 = vmatprep.mubr.f32.mxu0 %v1295
  %1729 = vmatmul.mubr.f32.gmra.mxu0 %v1290
  %v1730 = vpop.f32.mrf.mxu0
  %v1731 = vadd.f32 %v1661, %v1730
  %v1732 = vpop.f32.mrf.mxu0
  %1733 = vdwg.mxu0
  %1734 = vmatprep.subr.mxu0 0.0
  %1735 = vmatpush1.msra.mxu0 %v1446
  %1736 = vmatprep.subr.mxu0 0.0
  %1737 = vmatpush1.msra.mxu0 %v1445
  %1738 = vmatprep.subr.mxu0 0.0
  %1739 = vmatpush1.msra.mxu0 %v1444
  %1740 = vmatprep.subr.mxu0 0.0
  %1741 = vmatpush1.msra.mxu0 %v1443
  %1742 = vmatprep.subr.mxu0 0.0
  %1743 = vmatpush1.msra.mxu0 %v1442
  %1744 = vmatprep.subr.mxu0 0.0
  %1745 = vmatpush1.msra.mxu0 %v1441
  %1746 = vmatprep.subr.mxu0 0.0
  %1747 = vmatpush1.msra.mxu0 %v1440
  %1748 = vmatprep.subr.mxu0 0.0
  %1749 = vmatpush1.msra.mxu0 %v1439
  %1750 = vmatprep.subr.mxu0 0.0
  %1751 = vmatpush1.msra.mxu0 %v1438
  %1752 = vmatprep.subr.mxu0 0.0
  %1753 = vmatpush1.msra.mxu0 %v1437
  %1754 = vmatprep.subr.mxu0 0.0
  %1755 = vmatpush1.msra.mxu0 %v1436
  %1756 = vmatprep.subr.mxu0 0.0
  %1757 = vmatpush1.msra.mxu0 %v1435
  %1758 = vmatprep.subr.mxu0 0.0
  %1759 = vmatpush1.msra.mxu0 %v1434
  %1760 = vmatprep.subr.mxu0 0.0
  %1761 = vmatpush1.msra.mxu0 %v1433
  %1762 = vmatprep.subr.mxu0 0.0
  %1763 = vmatpush1.msra.mxu0 %v1432
  %1764 = vmatprep.subr.mxu0 0.0
  %1765 = vmatpush1.msra.mxu0 %v1431
  %1766 = vmatprep.subr.mxu0 0.0
  %1767 = vmatpush2.msra.mxu0 0.0
  %1768 = vmatprep.subr.mxu0 0.0
  %1769 = vmatpush2.msra.mxu0 0.0
  %1770 = vmatprep.subr.mxu0 0.0
  %1771 = vmatpush2.msra.mxu0 0.0
  %1772 = vmatprep.subr.mxu0 0.0
  %1773 = vmatpush2.msra.mxu0 0.0
  %1774 = vmatprep.subr.mxu0 0.0
  %1775 = vmatpush2.msra.mxu0 0.0
  %1776 = vmatprep.subr.mxu0 0.0
  %1777 = vmatpush2.msra.mxu0 0.0
  %1778 = vmatprep.subr.mxu0 0.0
  %1779 = vmatpush2.msra.mxu0 0.0
  %1780 = vmatprep.subr.mxu0 0.0
  %1781 = vmatpush2.msra.mxu0 0.0
  %1782 = vmatprep.subr.mxu0 0.0
  %1783 = vmatpush2.msra.mxu0 0.0
  %1784 = vmatprep.subr.mxu0 0.0
  %1785 = vmatpush2.msra.mxu0 0.0
  %1786 = vmatprep.subr.mxu0 0.0
  %1787 = vmatpush2.msra.mxu0 0.0
  %1788 = vmatprep.subr.mxu0 0.0
  %1789 = vmatpush2.msra.mxu0 0.0
  %1790 = vmatprep.subr.mxu0 0.0
  %1791 = vmatpush2.msra.mxu0 0.0
  %1792 = vmatprep.subr.mxu0 0.0
  %1793 = vmatpush2.msra.mxu0 0.0
  %1794 = vmatprep.subr.mxu0 0.0
  %1795 = vmatpush2.msra.mxu0 0.0
  %1796 = vmatprep.subr.mxu0 0.0
  %1797 = vmatpush2.msra.mxu0 0.0
  %1798 = vmatprep.mubr.f32.mxu0 0.0
  %1799 = vmatmul.mubr.f32.gmra.mxu0 %v1300
  %v1800 = vpop.f32.mrf.mxu0
  %v1801 = vadd.f32 %v1731, %v1800
  %v1802 = vpop.f32.mrf.mxu0
  %1803 = vdwg.mxu0
  %v1805 = vrot.slane %v1801, 4
  %1806 = vrot.lane.b32.xlu0 %v1805, 124
  %v1807 = vpop.permute.xlu0 %1806
  %1809 = vrot.lane.b32.xlu0 %v1801, 120
  %v1810 = vpop.permute.xlu0 %1809
  %1812 = vrot.lane.b32.xlu0 %v1805, 116
  %v1813 = vpop.permute.xlu0 %1812
  %1815 = vrot.lane.b32.xlu0 %v1801, 112
  %v1816 = vpop.permute.xlu0 %1815
  %1818 = vrot.lane.b32.xlu0 %v1805, 108
  %v1819 = vpop.permute.xlu0 %1818
  %1821 = vrot.lane.b32.xlu0 %v1801, 104
  %v1822 = vpop.permute.xlu0 %1821
  %1824 = vrot.lane.b32.xlu0 %v1805, 100
  %v1825 = vpop.permute.xlu0 %1824
  %1828 = vrot.lane.b32.xlu0 %v1801, 124
  %v1829 = vpop.permute.xlu0 %1828
  %1831 = vrot.lane.b32.xlu0 %v1805, 120
  %v1832 = vpop.permute.xlu0 %1831
  %1834 = vrot.lane.b32.xlu0 %v1801, 116
  %v1835 = vpop.permute.xlu0 %1834
  %1837 = vrot.lane.b32.xlu0 %v1805, 112
  %v1838 = vpop.permute.xlu0 %1837
  %1840 = vrot.lane.b32.xlu0 %v1801, 108
  %v1841 = vpop.permute.xlu0 %1840
  %1843 = vrot.lane.b32.xlu0 %v1805, 104
  %v1844 = vpop.permute.xlu0 %1843
  %1846 = vrot.lane.b32.xlu0 %v1801, 100
  %v1847 = vpop.permute.xlu0 %1846
  %v1849 = vsel %vm646, %v1801, %v1807
  %v1850 = vsel %vm646, %v1810, %v1813
  %v1851 = vsel %vm646, %v1816, %v1819
  %v1852 = vsel %vm646, %v1822, %v1825
  %v1853 = vsel %vm646, %v1805, %v1829
  %v1854 = vsel %vm646, %v1832, %v1835
  %v1855 = vsel %vm646, %v1838, %v1841
  %v1856 = vsel %vm646, %v1844, %v1847
  %v1857 = vmul.f32 %v1849, %v1849
  %v1858 = vmul.f32 %v1850, %v1850
  %v1859 = vmul.f32 %v1851, %v1851
  %v1860 = vmul.f32 %v1852, %v1852
  %v1861 = vmul.f32 %v1853, %v1853
  %v1862 = vmul.f32 %v1854, %v1854
  %v1863 = vmul.f32 %v1855, %v1855
  %v1864 = vmul.f32 %v1856, %v1856
  %vm1865 = vcmask 31744
  %v1866 = vsel %vm1865, %v1857, 0.0
  %1867 = vadd.xlane.f32.xlu0 %v1866
  %v1868 = vpop.xlane.xlu0 %1867
  %v1869 = vsel %vm1865, %v1858, 0.0
  %1870 = vadd.xlane.f32.xlu0 %v1869
  %v1871 = vpop.xlane.xlu0 %1870
  %v1872 = vsel %vm1865, %v1859, 0.0
  %1873 = vadd.xlane.f32.xlu0 %v1872
  %v1874 = vpop.xlane.xlu0 %1873
  %v1875 = vsel %vm1865, %v1860, 0.0
  %1876 = vadd.xlane.f32.xlu0 %v1875
  %v1877 = vpop.xlane.xlu0 %1876
  %v1878 = vsel %vm1865, %v1861, 0.0
  %1879 = vadd.xlane.f32.xlu0 %v1878
  %v1880 = vpop.xlane.xlu0 %1879
  %v1881 = vsel %vm1865, %v1862, 0.0
  %1882 = vadd.xlane.f32.xlu0 %v1881
  %v1883 = vpop.xlane.xlu0 %1882
  %v1884 = vsel %vm1865, %v1863, 0.0
  %1885 = vadd.xlane.f32.xlu0 %v1884
  %v1886 = vpop.xlane.xlu0 %1885
  %v1887 = vsel %vm1865, %v1864, 0.0
  %1888 = vadd.xlane.f32.xlu0 %v1887
  %v1889 = vpop.xlane.xlu0 %1888
  %v1890 = vadd.f32 %v1868, 1.0
  %v1891 = vadd.f32 %v1871, 1.0
  %v1892 = vadd.f32 %v1874, 1.0
  %v1893 = vadd.f32 %v1877, 1.0
  %v1894 = vadd.f32 %v1880, 1.0
  %v1895 = vadd.f32 %v1883, 1.0
  %v1896 = vadd.f32 %v1886, 1.0
  %v1897 = vadd.f32 %v1889, 1.0
  %v1898 = vrcp.pop %v1890
  %v1899 = vrcp.pop %v1891
  %v1900 = vrcp.pop %v1892
  %v1901 = vrcp.pop %v1893
  %v1902 = vrcp.pop %v1894
  %v1903 = vrcp.pop %v1895
  %v1904 = vrcp.pop %v1896
  %v1905 = vrcp.pop %v1897
  %v1906 = vmul.f32 %v1868, %v1898
  %v1907 = vmul.f32 %v1871, %v1899
  %v1908 = vmul.f32 %v1874, %v1900
  %v1909 = vmul.f32 %v1877, %v1901
  %v1910 = vmul.f32 %v1880, %v1902
  %v1911 = vmul.f32 %v1883, %v1903
  %v1912 = vmul.f32 %v1886, %v1904
  %v1913 = vmul.f32 %v1889, %v1905
  %v1914 = vadd.f32 %v1868, 1e-08
  %v1915 = vadd.f32 %v1871, 1e-08
  %v1916 = vadd.f32 %v1874, 1e-08
  %v1917 = vadd.f32 %v1877, 1e-08
  %v1918 = vadd.f32 %v1880, 1e-08
  %v1919 = vadd.f32 %v1883, 1e-08
  %v1920 = vadd.f32 %v1886, 1e-08
  %v1921 = vadd.f32 %v1889, 1e-08
  %v1922 = vrsqrt.pop %v1914
  %v1923 = vrsqrt.pop %v1915
  %v1924 = vrsqrt.pop %v1916
  %v1925 = vrsqrt.pop %v1917
  %v1926 = vrsqrt.pop %v1918
  %v1927 = vrsqrt.pop %v1919
  %v1928 = vrsqrt.pop %v1920
  %v1929 = vrsqrt.pop %v1921
  %v1930 = vmul.f32 %v1906, %v1922
  %v1931 = vmul.f32 %v1907, %v1923
  %v1932 = vmul.f32 %v1908, %v1924
  %v1933 = vmul.f32 %v1909, %v1925
  %v1934 = vmul.f32 %v1910, %v1926
  %v1935 = vmul.f32 %v1911, %v1927
  %v1936 = vmul.f32 %v1912, %v1928
  %v1937 = vmul.f32 %v1913, %v1929
  %v1938 = vmul.f32 %v1849, %v1930
  %v1939 = vmul.f32 %v1850, %v1931
  %v1940 = vmul.f32 %v1851, %v1932
  %v1941 = vmul.f32 %v1852, %v1933
  %v1942 = vmul.f32 %v1853, %v1934
  %v1943 = vmul.f32 %v1854, %v1935
  %v1944 = vmul.f32 %v1855, %v1936
  %v1945 = vmul.f32 %v1856, %v1937
  %1946 = vst.msk [vmem:[%s16] sm:$0xff] %vm1865, %v1938
  %1947 = vst.msk [vmem:[%s16 + $0x8] sm:$0xff] %vm1865, %v1939
  %1948 = vst.msk [vmem:[%s16 + $0x10] sm:$0xff] %vm1865, %v1940
  %1949 = vst.msk [vmem:[%s16 + $0x18] sm:$0xff] %vm1865, %v1941
  %1950 = vst.msk [vmem:[%s16 + $0x20] sm:$0xff] %vm1865, %v1942
  %1951 = vst.msk [vmem:[%s16 + $0x28] sm:$0xff] %vm1865, %v1943
  %1952 = vst.msk [vmem:[%s16 + $0x30] sm:$0xff] %vm1865, %v1944
  %1953 = vst.msk [vmem:[%s16 + $0x38] sm:$0xff] %vm1865, %v1945
  %v1954 = vld [vmem:[%s10] sm:$0xff]
  %v1955 = vld [vmem:[%s10 + $0x8] sm:$0xff]
  %v1956 = vld [vmem:[%s10 + $0x10] sm:$0xff]
  %v1957 = vld [vmem:[%s10 + $0x18] sm:$0xff]
  %v1958 = vld [vmem:[%s10 + $0x20] sm:$0xff]
  %v1959 = vld [vmem:[%s10 + $0x28] sm:$0xff]
  %v1960 = vld [vmem:[%s10 + $0x30] sm:$0xff]
  %v1961 = vld [vmem:[%s10 + $0x38] sm:$0xff]
  %v1962 = vld [vmem:[%s10 + $0x40] sm:$0xff]
  %v1963 = vld [vmem:[%s10 + $0x48] sm:$0xff]
  %v1964 = vld [vmem:[%s10 + $0x50] sm:$0xff]
  %v1965 = vld [vmem:[%s10 + $0x58] sm:$0xff]
  %v1966 = vld [vmem:[%s10 + $0x60] sm:$0xff]
  %v1967 = vld [vmem:[%s10 + $0x68] sm:$0xff]
  %v1968 = vld [vmem:[%s10 + $0x70] sm:$0xff]
  %v1969 = vld [vmem:[%s10 + $0x78] sm:$0xff]
  %v1970 = vld [vmem:[%s10 + $0x80] sm:$0xff]
  %v1971 = vld [vmem:[%s10 + $0x88] sm:$0xff]
  %v1972 = vld [vmem:[%s10 + $0x90] sm:$0xff]
  %v1973 = vld [vmem:[%s10 + $0x98] sm:$0xff]
  %v1974 = vld [vmem:[%s10 + $0xa0] sm:$0xff]
  %v1975 = vld [vmem:[%s10 + $0xa8] sm:$0xff]
  %v1976 = vld [vmem:[%s10 + $0xb0] sm:$0xff]
  %v1977 = vld [vmem:[%s10 + $0xb8] sm:$0xff]
  %v1978 = vld [vmem:[%s10 + $0xc0] sm:$0xff]
  %v1979 = vld [vmem:[%s10 + $0xc8] sm:$0xff]
  %v1980 = vld [vmem:[%s10 + $0xd0] sm:$0xff]
  %v1981 = vld [vmem:[%s10 + $0xd8] sm:$0xff]
  %v1982 = vld [vmem:[%s10 + $0xe0] sm:$0xff]
  %v1983 = vld [vmem:[%s10 + $0xe8] sm:$0xff]
  %v1984 = vld [vmem:[%s10 + $0xf0] sm:$0xff]
  %v1985 = vld [vmem:[%s10 + $0xf8] sm:$0xff]
  %1987 = vset.pattern.permute.xlu0 0
  %1988 = vperm.xlu0 %1987, %v1938
  %v1989 = vpop.permute.xlu0 %1988
  %1992 = vset.pattern.permute.xlu0 0
  %1993 = vperm.xlu0 %1992, %v1939
  %v1994 = vpop.permute.xlu0 %1993
  %1997 = vset.pattern.permute.xlu0 0
  %1998 = vperm.xlu0 %1997, %v1940
  %v1999 = vpop.permute.xlu0 %1998
  %2002 = vset.pattern.permute.xlu0 0
  %2003 = vperm.xlu0 %2002, %v1941
  %v2004 = vpop.permute.xlu0 %2003
  %2007 = vset.pattern.permute.xlu0 0
  %2008 = vperm.xlu0 %2007, %v1942
  %v2009 = vpop.permute.xlu0 %2008
  %2012 = vset.pattern.permute.xlu0 0
  %2013 = vperm.xlu0 %2012, %v1943
  %v2014 = vpop.permute.xlu0 %2013
  %2017 = vset.pattern.permute.xlu0 0
  %2018 = vperm.xlu0 %2017, %v1944
  %v2019 = vpop.permute.xlu0 %2018
  %2022 = vset.pattern.permute.xlu0 0
  %2023 = vperm.xlu0 %2022, %v1945
  %v2024 = vpop.permute.xlu0 %2023
  %v2026 = vmul.f32 %v1954, %v1989
  %v2027 = vmul.f32 %v1955, %v1989
  %v2028 = vmul.f32 %v1956, %v1994
  %v2029 = vmul.f32 %v1957, %v1994
  %v2030 = vmul.f32 %v1958, %v1999
  %v2031 = vmul.f32 %v1959, %v1999
  %v2032 = vmul.f32 %v1960, %v2004
  %v2033 = vmul.f32 %v1961, %v2004
  %v2034 = vmul.f32 %v1954, %v2009
  %v2035 = vmul.f32 %v1955, %v2009
  %v2036 = vmul.f32 %v1956, %v2014
  %v2037 = vmul.f32 %v1957, %v2014
  %v2038 = vmul.f32 %v1958, %v2019
  %v2039 = vmul.f32 %v1959, %v2019
  %v2040 = vmul.f32 %v1960, %v2024
  %v2041 = vmul.f32 %v1961, %v2024
  %2042 = vset.pattern.permute.xlu0 1
  %2043 = vperm.xlu0 %2042, %v1938
  %v2044 = vpop.permute.xlu0 %2043
  %2046 = vset.pattern.permute.xlu0 1
  %2047 = vperm.xlu0 %2046, %v1939
  %v2048 = vpop.permute.xlu0 %2047
  %2050 = vset.pattern.permute.xlu0 1
  %2051 = vperm.xlu0 %2050, %v1940
  %v2052 = vpop.permute.xlu0 %2051
  %2054 = vset.pattern.permute.xlu0 1
  %2055 = vperm.xlu0 %2054, %v1941
  %v2056 = vpop.permute.xlu0 %2055
  %2058 = vset.pattern.permute.xlu0 1
  %2059 = vperm.xlu0 %2058, %v1942
  %v2060 = vpop.permute.xlu0 %2059
  %2062 = vset.pattern.permute.xlu0 1
  %2063 = vperm.xlu0 %2062, %v1943
  %v2064 = vpop.permute.xlu0 %2063
  %2066 = vset.pattern.permute.xlu0 1
  %2067 = vperm.xlu0 %2066, %v1944
  %v2068 = vpop.permute.xlu0 %2067
  %2070 = vset.pattern.permute.xlu0 1
  %2071 = vperm.xlu0 %2070, %v1945
  %v2072 = vpop.permute.xlu0 %2071
  %v2074 = vmul.f32 %v1962, %v2044
  %v2075 = vmul.f32 %v1963, %v2044
  %v2076 = vmul.f32 %v1964, %v2048
  %v2077 = vmul.f32 %v1965, %v2048
  %v2078 = vmul.f32 %v1966, %v2052
  %v2079 = vmul.f32 %v1967, %v2052
  %v2080 = vmul.f32 %v1968, %v2056
  %v2081 = vmul.f32 %v1969, %v2056
  %v2082 = vmul.f32 %v1962, %v2060
  %v2083 = vmul.f32 %v1963, %v2060
  %v2084 = vmul.f32 %v1964, %v2064
  %v2085 = vmul.f32 %v1965, %v2064
  %v2086 = vmul.f32 %v1966, %v2068
  %v2087 = vmul.f32 %v1967, %v2068
  %v2088 = vmul.f32 %v1968, %v2072
  %v2089 = vmul.f32 %v1969, %v2072
  %v2090 = vadd.f32 %v2026, %v2074
  %v2091 = vadd.f32 %v2027, %v2075
  %v2092 = vadd.f32 %v2028, %v2076
  %v2093 = vadd.f32 %v2029, %v2077
  %v2094 = vadd.f32 %v2030, %v2078
  %v2095 = vadd.f32 %v2031, %v2079
  %v2096 = vadd.f32 %v2032, %v2080
  %v2097 = vadd.f32 %v2033, %v2081
  %v2098 = vadd.f32 %v2034, %v2082
  %v2099 = vadd.f32 %v2035, %v2083
  %v2100 = vadd.f32 %v2036, %v2084
  %v2101 = vadd.f32 %v2037, %v2085
  %v2102 = vadd.f32 %v2038, %v2086
  %v2103 = vadd.f32 %v2039, %v2087
  %v2104 = vadd.f32 %v2040, %v2088
  %v2105 = vadd.f32 %v2041, %v2089
  %2106 = vset.pattern.permute.xlu0 2
  %2107 = vperm.xlu0 %2106, %v1938
  %v2108 = vpop.permute.xlu0 %2107
  %2110 = vset.pattern.permute.xlu0 2
  %2111 = vperm.xlu0 %2110, %v1939
  %v2112 = vpop.permute.xlu0 %2111
  %2114 = vset.pattern.permute.xlu0 2
  %2115 = vperm.xlu0 %2114, %v1940
  %v2116 = vpop.permute.xlu0 %2115
  %2118 = vset.pattern.permute.xlu0 2
  %2119 = vperm.xlu0 %2118, %v1941
  %v2120 = vpop.permute.xlu0 %2119
  %2122 = vset.pattern.permute.xlu0 2
  %2123 = vperm.xlu0 %2122, %v1942
  %v2124 = vpop.permute.xlu0 %2123
  %2126 = vset.pattern.permute.xlu0 2
  %2127 = vperm.xlu0 %2126, %v1943
  %v2128 = vpop.permute.xlu0 %2127
  %2130 = vset.pattern.permute.xlu0 2
  %2131 = vperm.xlu0 %2130, %v1944
  %v2132 = vpop.permute.xlu0 %2131
  %2134 = vset.pattern.permute.xlu0 2
  %2135 = vperm.xlu0 %2134, %v1945
  %v2136 = vpop.permute.xlu0 %2135
  %v2138 = vmul.f32 %v1970, %v2108
  %v2139 = vmul.f32 %v1971, %v2108
  %v2140 = vmul.f32 %v1972, %v2112
  %v2141 = vmul.f32 %v1973, %v2112
  %v2142 = vmul.f32 %v1974, %v2116
  %v2143 = vmul.f32 %v1975, %v2116
  %v2144 = vmul.f32 %v1976, %v2120
  %v2145 = vmul.f32 %v1977, %v2120
  %v2146 = vmul.f32 %v1970, %v2124
  %v2147 = vmul.f32 %v1971, %v2124
  %v2148 = vmul.f32 %v1972, %v2128
  %v2149 = vmul.f32 %v1973, %v2128
  %v2150 = vmul.f32 %v1974, %v2132
  %v2151 = vmul.f32 %v1975, %v2132
  %v2152 = vmul.f32 %v1976, %v2136
  %v2153 = vmul.f32 %v1977, %v2136
  %v2154 = vadd.f32 %v2090, %v2138
  %v2155 = vadd.f32 %v2091, %v2139
  %v2156 = vadd.f32 %v2092, %v2140
  %v2157 = vadd.f32 %v2093, %v2141
  %v2158 = vadd.f32 %v2094, %v2142
  %v2159 = vadd.f32 %v2095, %v2143
  %v2160 = vadd.f32 %v2096, %v2144
  %v2161 = vadd.f32 %v2097, %v2145
  %v2162 = vadd.f32 %v2098, %v2146
  %v2163 = vadd.f32 %v2099, %v2147
  %v2164 = vadd.f32 %v2100, %v2148
  %v2165 = vadd.f32 %v2101, %v2149
  %v2166 = vadd.f32 %v2102, %v2150
  %v2167 = vadd.f32 %v2103, %v2151
  %v2168 = vadd.f32 %v2104, %v2152
  %v2169 = vadd.f32 %v2105, %v2153
  %2170 = vset.pattern.permute.xlu0 3
  %2171 = vperm.xlu0 %2170, %v1938
  %v2172 = vpop.permute.xlu0 %2171
  %2174 = vset.pattern.permute.xlu0 3
  %2175 = vperm.xlu0 %2174, %v1939
  %v2176 = vpop.permute.xlu0 %2175
  %2178 = vset.pattern.permute.xlu0 3
  %2179 = vperm.xlu0 %2178, %v1940
  %v2180 = vpop.permute.xlu0 %2179
  %2182 = vset.pattern.permute.xlu0 3
  %2183 = vperm.xlu0 %2182, %v1941
  %v2184 = vpop.permute.xlu0 %2183
  %2186 = vset.pattern.permute.xlu0 3
  %2187 = vperm.xlu0 %2186, %v1942
  %v2188 = vpop.permute.xlu0 %2187
  %2190 = vset.pattern.permute.xlu0 3
  %2191 = vperm.xlu0 %2190, %v1943
  %v2192 = vpop.permute.xlu0 %2191
  %2194 = vset.pattern.permute.xlu0 3
  %2195 = vperm.xlu0 %2194, %v1944
  %v2196 = vpop.permute.xlu0 %2195
  %2198 = vset.pattern.permute.xlu0 3
  %2199 = vperm.xlu0 %2198, %v1945
  %v2200 = vpop.permute.xlu0 %2199
  %v2202 = vmul.f32 %v1978, %v2172
  %v2203 = vmul.f32 %v1979, %v2172
  %v2204 = vmul.f32 %v1980, %v2176
  %v2205 = vmul.f32 %v1981, %v2176
  %v2206 = vmul.f32 %v1982, %v2180
  %v2207 = vmul.f32 %v1983, %v2180
  %v2208 = vmul.f32 %v1984, %v2184
  %v2209 = vmul.f32 %v1985, %v2184
  %v2210 = vmul.f32 %v1978, %v2188
  %v2211 = vmul.f32 %v1979, %v2188
  %v2212 = vmul.f32 %v1980, %v2192
  %v2213 = vmul.f32 %v1981, %v2192
  %v2214 = vmul.f32 %v1982, %v2196
  %v2215 = vmul.f32 %v1983, %v2196
  %v2216 = vmul.f32 %v1984, %v2200
  %v2217 = vmul.f32 %v1985, %v2200
  %v2218 = vadd.f32 %v2154, %v2202
  %v2219 = vadd.f32 %v2155, %v2203
  %v2220 = vadd.f32 %v2156, %v2204
  %v2221 = vadd.f32 %v2157, %v2205
  %v2222 = vadd.f32 %v2158, %v2206
  %v2223 = vadd.f32 %v2159, %v2207
  %v2224 = vadd.f32 %v2160, %v2208
  %v2225 = vadd.f32 %v2161, %v2209
  %v2226 = vadd.f32 %v2162, %v2210
  %v2227 = vadd.f32 %v2163, %v2211
  %v2228 = vadd.f32 %v2164, %v2212
  %v2229 = vadd.f32 %v2165, %v2213
  %v2230 = vadd.f32 %v2166, %v2214
  %v2231 = vadd.f32 %v2167, %v2215
  %v2232 = vadd.f32 %v2168, %v2216
  %v2233 = vadd.f32 %v2169, %v2217
  %v2234 = vld [vmem:[%s11] sm:$0xff]
  %v2235 = vld [vmem:[%s11 + $0x8] sm:$0xff]
  %v2236 = vld [vmem:[%s11 + $0x10] sm:$0xff]
  %v2237 = vld [vmem:[%s11 + $0x18] sm:$0xff]
  %v2238 = vld [vmem:[%s11 + $0x20] sm:$0xff]
  %v2239 = vld [vmem:[%s11 + $0x28] sm:$0xff]
  %v2240 = vld [vmem:[%s11 + $0x30] sm:$0xff]
  %v2241 = vld [vmem:[%s11 + $0x38] sm:$0xff]
  %v2242 = vld [vmem:[%s11 + $0x40] sm:$0xff]
  %v2243 = vld [vmem:[%s11 + $0x48] sm:$0xff]
  %v2244 = vld [vmem:[%s11 + $0x50] sm:$0xff]
  %v2245 = vld [vmem:[%s11 + $0x58] sm:$0xff]
  %v2246 = vld [vmem:[%s11 + $0x60] sm:$0xff]
  %v2247 = vld [vmem:[%s11 + $0x68] sm:$0xff]
  %v2248 = vld [vmem:[%s11 + $0x70] sm:$0xff]
  %v2249 = vld [vmem:[%s11 + $0x78] sm:$0xff]
  %v2250 = vld [vmem:[%s11 + $0x80] sm:$0xff]
  %v2251 = vld [vmem:[%s11 + $0x88] sm:$0xff]
  %v2252 = vld [vmem:[%s11 + $0x90] sm:$0xff]
  %v2253 = vld [vmem:[%s11 + $0x98] sm:$0xff]
  %v2254 = vld [vmem:[%s12] sm:$0xff]
  %v2255 = vld [vmem:[%s12 + $0x8] sm:$0xff]
  %v2256 = vld [vmem:[%s12 + $0x10] sm:$0x3]
  %v2257 = vld [vmem:[%s12 + $0x18] sm:$0x3]
  %v2258 = vadd.f32 %v2218, %v2220
  %v2259 = vadd.f32 %v2258, %v2222
  %v2260 = vadd.f32 %v2259, %v2224
  %v2261 = vrot.slane %v2260, 4
  %v2262 = vadd.f32 %v2260, %v2261
  %v2263 = vrot.slane %v2262, 2
  %v2264 = vadd.f32 %v2262, %v2263
  %v2265 = vrot.slane %v2264, 1
  %v2266 = vadd.f32 %v2264, %v2265
  %v2267 = vsel %vm1165, %v2219, 0.0
  %v2268 = vsel %vm1165, %v2221, 0.0
  %v2269 = vadd.f32 %v2267, %v2268
  %v2270 = vsel %vm1165, %v2223, 0.0
  %v2271 = vadd.f32 %v2269, %v2270
  %v2272 = vsel %vm1165, %v2225, 0.0
  %v2273 = vadd.f32 %v2271, %v2272
  %v2274 = vrot.slane %v2273, 4
  %v2275 = vadd.f32 %v2273, %v2274
  %v2276 = vrot.slane %v2275, 2
  %v2277 = vadd.f32 %v2275, %v2276
  %v2278 = vrot.slane %v2277, 1
  %v2279 = vadd.f32 %v2277, %v2278
  %v2280 = vadd.f32 %v2226, %v2228
  %v2281 = vadd.f32 %v2280, %v2230
  %v2282 = vadd.f32 %v2281, %v2232
  %v2283 = vrot.slane %v2282, 4
  %v2284 = vadd.f32 %v2282, %v2283
  %v2285 = vrot.slane %v2284, 2
  %v2286 = vadd.f32 %v2284, %v2285
  %v2287 = vrot.slane %v2286, 1
  %v2288 = vadd.f32 %v2286, %v2287
  %v2289 = vsel %vm1165, %v2227, 0.0
  %v2290 = vsel %vm1165, %v2229, 0.0
  %v2291 = vadd.f32 %v2289, %v2290
  %v2292 = vsel %vm1165, %v2231, 0.0
  %v2293 = vadd.f32 %v2291, %v2292
  %v2294 = vsel %vm1165, %v2233, 0.0
  %v2295 = vadd.f32 %v2293, %v2294
  %v2296 = vrot.slane %v2295, 4
  %v2297 = vadd.f32 %v2295, %v2296
  %v2298 = vrot.slane %v2297, 2
  %v2299 = vadd.f32 %v2297, %v2298
  %v2300 = vrot.slane %v2299, 1
  %v2301 = vadd.f32 %v2299, %v2300
  %v2302 = vmul.f32 %v2266, 0.1
  %v2303 = vmul.f32 %v2279, 0.1
  %v2304 = vmul.f32 %v2288, 0.1
  %v2305 = vmul.f32 %v2301, 0.1
  %v2306 = vmul.f32 %v2302, %v2302
  %v2307 = vmul.f32 %v2303, %v2303
  %v2308 = vmul.f32 %v2304, %v2304
  %v2309 = vmul.f32 %v2305, %v2305
  %vm2314 = vcmask 1041409
  %v2315 = vsel %vm2314, %v2308, %v2306
  %v2316 = vsel %vm2314, %v2309, %v2307
  %v2318 = vsel %vm1165, %v2316, 0
  %2320 = vmatprep.subr.mxu0 0.0
  %2321 = vmatpush1.msra.mxu0 %v2249
  %2322 = vmatprep.subr.mxu0 0.0
  %2323 = vmatpush1.msra.mxu0 %v2248
  %2324 = vmatprep.subr.mxu0 0.0
  %2325 = vmatpush1.msra.mxu0 %v2247
  %2326 = vmatprep.subr.mxu0 0.0
  %2327 = vmatpush1.msra.mxu0 %v2246
  %2328 = vmatprep.subr.mxu0 0.0
  %2329 = vmatpush1.msra.mxu0 %v2245
  %2330 = vmatprep.subr.mxu0 0.0
  %2331 = vmatpush1.msra.mxu0 %v2244
  %2332 = vmatprep.subr.mxu0 0.0
  %2333 = vmatpush1.msra.mxu0 %v2243
  %2334 = vmatprep.subr.mxu0 0.0
  %2335 = vmatpush1.msra.mxu0 %v2242
  %2336 = vmatprep.subr.mxu0 0.0
  %2337 = vmatpush1.msra.mxu0 %v2241
  %2338 = vmatprep.subr.mxu0 0.0
  %2339 = vmatpush1.msra.mxu0 %v2240
  %2340 = vmatprep.subr.mxu0 0.0
  %2341 = vmatpush1.msra.mxu0 %v2239
  %2342 = vmatprep.subr.mxu0 0.0
  %2343 = vmatpush1.msra.mxu0 %v2238
  %2344 = vmatprep.subr.mxu0 0.0
  %2345 = vmatpush1.msra.mxu0 %v2237
  %2346 = vmatprep.subr.mxu0 0.0
  %2347 = vmatpush1.msra.mxu0 %v2236
  %2348 = vmatprep.subr.mxu0 0.0
  %2349 = vmatpush1.msra.mxu0 %v2235
  %2350 = vmatprep.subr.mxu0 0.0
  %2351 = vmatpush1.msra.mxu0 %v2234
  %2352 = vmatprep.subr.mxu0 0.0
  %2353 = vmatpush2.msra.mxu0 0.0
  %2354 = vmatprep.subr.mxu0 0.0
  %2355 = vmatpush2.msra.mxu0 0.0
  %2356 = vmatprep.subr.mxu0 0.0
  %2357 = vmatpush2.msra.mxu0 0.0
  %2358 = vmatprep.subr.mxu0 0.0
  %2359 = vmatpush2.msra.mxu0 0.0
  %2360 = vmatprep.subr.mxu0 0.0
  %2361 = vmatpush2.msra.mxu0 0.0
  %2362 = vmatprep.subr.mxu0 0.0
  %2363 = vmatpush2.msra.mxu0 0.0
  %2364 = vmatprep.subr.mxu0 0.0
  %2365 = vmatpush2.msra.mxu0 0.0
  %2366 = vmatprep.subr.mxu0 0.0
  %2367 = vmatpush2.msra.mxu0 0.0
  %2368 = vmatprep.subr.mxu0 0.0
  %2369 = vmatpush2.msra.mxu0 0.0
  %2370 = vmatprep.subr.mxu0 0.0
  %2371 = vmatpush2.msra.mxu0 0.0
  %2372 = vmatprep.subr.mxu0 0.0
  %2373 = vmatpush2.msra.mxu0 0.0
  %2374 = vmatprep.subr.mxu0 0.0
  %2375 = vmatpush2.msra.mxu0 0.0
  %2376 = vmatprep.subr.mxu0 0.0
  %2377 = vmatpush2.msra.mxu0 %v2253
  %2378 = vmatprep.subr.mxu0 0.0
  %2379 = vmatpush2.msra.mxu0 %v2252
  %2380 = vmatprep.subr.mxu0 0.0
  %2381 = vmatpush2.msra.mxu0 %v2251
  %2382 = vmatprep.subr.mxu0 0.0
  %2383 = vmatpush2.msra.mxu0 %v2250
  %2384 = vmatprep.mubr.f32.mxu0 %v2318
  %2385 = vmatmul.mubr.f32.gmra.mxu0 %v2315
  %v2386 = vpop.f32.mrf.mxu0
  %v2387 = vadd.f32 0.0, %v2386
  %v2388 = vpop.f32.mrf.mxu0
  %2389 = vdwg.mxu0
  %v2390 = vadd.f32 %v2387, 1.0
  %v2391 = vrcp.pop %v2390
  %v2392 = vmul.f32 %v2387, %v2391
  %v2393 = vadd.f32 %v2387, 1e-08
  %v2394 = vrsqrt.pop %v2393
  %v2395 = vmul.f32 %v2392, %v2394
  %vm2396 = vcmask 80896
  %v2398 = vsel %vm2396, %v2395, 0
  %v2401 = vsel %vm672, %v2256, 0
  %v2404 = vsel %vm672, %v2257, 0
  %2406 = vmatprep.subr.mxu0 0.0
  %2407 = vmatpush1.msra.mxu0 0.0
  %2408 = vmatprep.subr.mxu0 0.0
  %2409 = vmatpush1.msra.mxu0 0.0
  %2410 = vmatprep.subr.mxu0 0.0
  %2411 = vmatpush1.msra.mxu0 0.0
  %2412 = vmatprep.subr.mxu0 0.0
  %2413 = vmatpush1.msra.mxu0 0.0
  %2414 = vmatprep.subr.mxu0 0.0
  %2415 = vmatpush1.msra.mxu0 0.0
  %2416 = vmatprep.subr.mxu0 0.0
  %2417 = vmatpush1.msra.mxu0 0.0
  %2418 = vmatprep.subr.mxu0 0.0
  %2419 = vmatpush1.msra.mxu0 0.0
  %2420 = vmatprep.subr.mxu0 0.0
  %2421 = vmatpush1.msra.mxu0 0.0
  %2422 = vmatprep.subr.mxu0 0.0
  %2423 = vmatpush1.msra.mxu0 0.0
  %2424 = vmatprep.subr.mxu0 0.0
  %2425 = vmatpush1.msra.mxu0 0.0
  %2426 = vmatprep.subr.mxu0 0.0
  %2427 = vmatpush1.msra.mxu0 0.0
  %2428 = vmatprep.subr.mxu0 0.0
  %2429 = vmatpush1.msra.mxu0 0.0
  %2430 = vmatprep.subr.mxu0 0.0
  %2431 = vmatpush1.msra.mxu0 0.0
  %2432 = vmatprep.subr.mxu0 0.0
  %2433 = vmatpush1.msra.mxu0 0.0
  %2434 = vmatprep.subr.mxu0 %v2404
  %2435 = vmatpush1.msra.mxu0 %v2401
  %2436 = vmatprep.subr.mxu0 %v2255
  %2437 = vmatpush1.msra.mxu0 %v2254
  %2438 = vmatprep.subr.mxu0 0.0
  %2439 = vmatpush2.msra.mxu0 0.0
  %2440 = vmatprep.subr.mxu0 0.0
  %2441 = vmatpush2.msra.mxu0 0.0
  %2442 = vmatprep.subr.mxu0 0.0
  %2443 = vmatpush2.msra.mxu0 0.0
  %2444 = vmatprep.subr.mxu0 0.0
  %2445 = vmatpush2.msra.mxu0 0.0
  %2446 = vmatprep.subr.mxu0 0.0
  %2447 = vmatpush2.msra.mxu0 0.0
  %2448 = vmatprep.subr.mxu0 0.0
  %2449 = vmatpush2.msra.mxu0 0.0
  %2450 = vmatprep.subr.mxu0 0.0
  %2451 = vmatpush2.msra.mxu0 0.0
  %2452 = vmatprep.subr.mxu0 0.0
  %2453 = vmatpush2.msra.mxu0 0.0
  %2454 = vmatprep.subr.mxu0 0.0
  %2455 = vmatpush2.msra.mxu0 0.0
  %2456 = vmatprep.subr.mxu0 0.0
  %2457 = vmatpush2.msra.mxu0 0.0
  %2458 = vmatprep.subr.mxu0 0.0
  %2459 = vmatpush2.msra.mxu0 0.0
  %2460 = vmatprep.subr.mxu0 0.0
  %2461 = vmatpush2.msra.mxu0 0.0
  %2462 = vmatprep.subr.mxu0 0.0
  %2463 = vmatpush2.msra.mxu0 0.0
  %2464 = vmatprep.subr.mxu0 0.0
  %2465 = vmatpush2.msra.mxu0 0.0
  %2466 = vmatprep.subr.mxu0 0.0
  %2467 = vmatpush2.msra.mxu0 0.0
  %2468 = vmatprep.subr.mxu0 0.0
  %2469 = vmatpush2.msra.mxu0 0.0
  %2470 = vmatprep.mubr.f32.mxu0 0.0
  %2471 = vmatmul.mubr.f32.gmra.mxu0 %v2398
  %v2472 = vpop.f32.mrf.mxu0
  %v2473 = vadd.f32 0.0, %v2472
  %v2474 = vpop.f32.mrf.mxu0
  %v2475 = vadd.f32 0.0, %v2474
  %2476 = vdwg.mxu0
  %v2479 = vrot.slane %v2473, 1
  %v2480 = vrot.slane %v2475, 1
  %v2485 = vmul.f32 %v2302, %v2473
  %v2486 = vmul.f32 %v2303, %v2475
  %v2487 = vmul.f32 %v2304, %v2479
  %v2488 = vmul.f32 %v2305, %v2480
  %v2489 = vlaneseq
  %v2490 = vshrl.u32 %v2489, 7
  %v2491 = vsub.s32 0, %v2490
  %v2492 = vrot.slane %v2485, %v2491
  %v2493 = vlaneseq
  %v2494 = vshrl.u32 %v2493, 7
  %v2495 = vsub.s32 0, %v2494
  %v2496 = vrot.slane %v2486, %v2495
  %v2497 = vlaneseq
  %v2498 = vshrl.u32 %v2497, 7
  %v2499 = vsub.s32 0, %v2498
  %v2500 = vrot.slane %v2487, %v2499
  %v2501 = vlaneseq
  %v2502 = vshrl.u32 %v2501, 7
  %v2503 = vsub.s32 0, %v2502
  %v2504 = vrot.slane %v2488, %v2503
  %v2505 = vmul.f32 %v2218, %v2492
  %v2506 = vmul.f32 %v2219, %v2496
  %v2507 = vmul.f32 %v2220, %v2492
  %v2508 = vmul.f32 %v2221, %v2496
  %v2509 = vmul.f32 %v2222, %v2492
  %v2510 = vmul.f32 %v2223, %v2496
  %v2511 = vmul.f32 %v2224, %v2492
  %v2512 = vmul.f32 %v2225, %v2496
  %v2513 = vmul.f32 %v2226, %v2500
  %v2514 = vmul.f32 %v2227, %v2504
  %v2515 = vmul.f32 %v2228, %v2500
  %v2516 = vmul.f32 %v2229, %v2504
  %v2517 = vmul.f32 %v2230, %v2500
  %v2518 = vmul.f32 %v2231, %v2504
  %v2519 = vmul.f32 %v2232, %v2500
  %v2520 = vmul.f32 %v2233, %v2504
  %v2522 = vsel %vm1165, %v2506, 0
  %v2525 = vsel %vm1165, %v2508, 0
  %v2528 = vsel %vm1165, %v2510, 0
  %v2531 = vsel %vm1165, %v2512, 0
  %v2534 = vsel %vm1165, %v2514, 0
  %v2537 = vsel %vm1165, %v2516, 0
  %v2540 = vsel %vm1165, %v2518, 0
  %v2543 = vsel %vm1165, %v2520, 0
  %2545 = vmatprep.subr.mxu0 0.0
  %2546 = vmatpush1.msra.mxu0 %v2249
  %2547 = vmatprep.subr.mxu0 0.0
  %2548 = vmatpush1.msra.mxu0 %v2248
  %2549 = vmatprep.subr.mxu0 0.0
  %2550 = vmatpush1.msra.mxu0 %v2247
  %2551 = vmatprep.subr.mxu0 0.0
  %2552 = vmatpush1.msra.mxu0 %v2246
  %2553 = vmatprep.subr.mxu0 0.0
  %2554 = vmatpush1.msra.mxu0 %v2245
  %2555 = vmatprep.subr.mxu0 0.0
  %2556 = vmatpush1.msra.mxu0 %v2244
  %2557 = vmatprep.subr.mxu0 0.0
  %2558 = vmatpush1.msra.mxu0 %v2243
  %2559 = vmatprep.subr.mxu0 0.0
  %2560 = vmatpush1.msra.mxu0 %v2242
  %2561 = vmatprep.subr.mxu0 0.0
  %2562 = vmatpush1.msra.mxu0 %v2241
  %2563 = vmatprep.subr.mxu0 0.0
  %2564 = vmatpush1.msra.mxu0 %v2240
  %2565 = vmatprep.subr.mxu0 0.0
  %2566 = vmatpush1.msra.mxu0 %v2239
  %2567 = vmatprep.subr.mxu0 0.0
  %2568 = vmatpush1.msra.mxu0 %v2238
  %2569 = vmatprep.subr.mxu0 0.0
  %2570 = vmatpush1.msra.mxu0 %v2237
  %2571 = vmatprep.subr.mxu0 0.0
  %2572 = vmatpush1.msra.mxu0 %v2236
  %2573 = vmatprep.subr.mxu0 0.0
  %2574 = vmatpush1.msra.mxu0 %v2235
  %2575 = vmatprep.subr.mxu0 0.0
  %2576 = vmatpush1.msra.mxu0 %v2234
  %2577 = vmatprep.subr.mxu0 0.0
  %2578 = vmatpush2.msra.mxu0 0.0
  %2579 = vmatprep.subr.mxu0 0.0
  %2580 = vmatpush2.msra.mxu0 0.0
  %2581 = vmatprep.subr.mxu0 0.0
  %2582 = vmatpush2.msra.mxu0 0.0
  %2583 = vmatprep.subr.mxu0 0.0
  %2584 = vmatpush2.msra.mxu0 0.0
  %2585 = vmatprep.subr.mxu0 0.0
  %2586 = vmatpush2.msra.mxu0 0.0
  %2587 = vmatprep.subr.mxu0 0.0
  %2588 = vmatpush2.msra.mxu0 0.0
  %2589 = vmatprep.subr.mxu0 0.0
  %2590 = vmatpush2.msra.mxu0 0.0
  %2591 = vmatprep.subr.mxu0 0.0
  %2592 = vmatpush2.msra.mxu0 0.0
  %2593 = vmatprep.subr.mxu0 0.0
  %2594 = vmatpush2.msra.mxu0 0.0
  %2595 = vmatprep.subr.mxu0 0.0
  %2596 = vmatpush2.msra.mxu0 0.0
  %2597 = vmatprep.subr.mxu0 0.0
  %2598 = vmatpush2.msra.mxu0 0.0
  %2599 = vmatprep.subr.mxu0 0.0
  %2600 = vmatpush2.msra.mxu0 0.0
  %2601 = vmatprep.subr.mxu0 0.0
  %2602 = vmatpush2.msra.mxu0 %v2253
  %2603 = vmatprep.subr.mxu0 0.0
  %2604 = vmatpush2.msra.mxu0 %v2252
  %2605 = vmatprep.subr.mxu0 0.0
  %2606 = vmatpush2.msra.mxu0 %v2251
  %2607 = vmatprep.subr.mxu0 0.0
  %2608 = vmatpush2.msra.mxu0 %v2250
  %2609 = vmatprep.mubr.f32.mxu0 %v2522
  %2610 = vmatmul.mubr.f32.gmra.mxu0 %v2505
  %v2611 = vpop.f32.mrf.mxu0
  %v2612 = vadd.f32 0.0, %v2611
  %v2613 = vpop.f32.mrf.mxu0
  %2614 = vmatprep.mubr.f32.mxu0 %v2525
  %2615 = vmatmul.mubr.f32.gmra.mxu0 %v2507
  %v2616 = vpop.f32.mrf.mxu0
  %v2617 = vadd.f32 0.0, %v2616
  %v2618 = vpop.f32.mrf.mxu0
  %2619 = vmatprep.mubr.f32.mxu0 %v2528
  %2620 = vmatmul.mubr.f32.gmra.mxu0 %v2509
  %v2621 = vpop.f32.mrf.mxu0
  %v2622 = vadd.f32 0.0, %v2621
  %v2623 = vpop.f32.mrf.mxu0
  %2624 = vmatprep.mubr.f32.mxu0 %v2531
  %2625 = vmatmul.mubr.f32.gmra.mxu0 %v2511
  %v2626 = vpop.f32.mrf.mxu0
  %v2627 = vadd.f32 0.0, %v2626
  %v2628 = vpop.f32.mrf.mxu0
  %2629 = vmatprep.mubr.f32.mxu0 %v2534
  %2630 = vmatmul.mubr.f32.gmra.mxu0 %v2513
  %v2631 = vpop.f32.mrf.mxu0
  %v2632 = vadd.f32 0.0, %v2631
  %v2633 = vpop.f32.mrf.mxu0
  %2634 = vmatprep.mubr.f32.mxu0 %v2537
  %2635 = vmatmul.mubr.f32.gmra.mxu0 %v2515
  %v2636 = vpop.f32.mrf.mxu0
  %v2637 = vadd.f32 0.0, %v2636
  %v2638 = vpop.f32.mrf.mxu0
  %2639 = vmatprep.mubr.f32.mxu0 %v2540
  %2640 = vmatmul.mubr.f32.gmra.mxu0 %v2517
  %v2641 = vpop.f32.mrf.mxu0
  %v2642 = vadd.f32 0.0, %v2641
  %v2643 = vpop.f32.mrf.mxu0
  %2644 = vmatprep.mubr.f32.mxu0 %v2543
  %2645 = vmatmul.mubr.f32.gmra.mxu0 %v2519
  %v2646 = vpop.f32.mrf.mxu0
  %v2647 = vadd.f32 0.0, %v2646
  %v2648 = vpop.f32.mrf.mxu0
  %2649 = vdwg.mxu0
  %v2650 = vsel %vm2396, %v2612, -inf
  %2651 = vmax.xlane.f32.xlu0 %v2650
  %v2652 = vpop.xlane.xlu0 %2651
  %v2653 = vsel %vm2396, %v2617, -inf
  %2654 = vmax.xlane.f32.xlu0 %v2653
  %v2655 = vpop.xlane.xlu0 %2654
  %v2656 = vsel %vm2396, %v2622, -inf
  %2657 = vmax.xlane.f32.xlu0 %v2656
  %v2658 = vpop.xlane.xlu0 %2657
  %v2659 = vsel %vm2396, %v2627, -inf
  %2660 = vmax.xlane.f32.xlu0 %v2659
  %v2661 = vpop.xlane.xlu0 %2660
  %v2662 = vsel %vm2396, %v2632, -inf
  %2663 = vmax.xlane.f32.xlu0 %v2662
  %v2664 = vpop.xlane.xlu0 %2663
  %v2665 = vsel %vm2396, %v2637, -inf
  %2666 = vmax.xlane.f32.xlu0 %v2665
  %v2667 = vpop.xlane.xlu0 %2666
  %v2668 = vsel %vm2396, %v2642, -inf
  %2669 = vmax.xlane.f32.xlu0 %v2668
  %v2670 = vpop.xlane.xlu0 %2669
  %v2671 = vsel %vm2396, %v2647, -inf
  %2672 = vmax.xlane.f32.xlu0 %v2671
  %v2673 = vpop.xlane.xlu0 %2672
  %v2674 = vsub.f32 %v2612, %v2652
  %v2675 = vsub.f32 %v2617, %v2655
  %v2676 = vsub.f32 %v2622, %v2658
  %v2677 = vsub.f32 %v2627, %v2661
  %v2678 = vsub.f32 %v2632, %v2664
  %v2679 = vsub.f32 %v2637, %v2667
  %v2680 = vsub.f32 %v2642, %v2670
  %v2681 = vsub.f32 %v2647, %v2673
  %v2682 = vmul.f32 %v2674, 1.442695
  %v2683 = vpow.pop %v2682
  %v2684 = vmul.f32 %v2675, 1.442695
  %v2685 = vpow.pop %v2684
  %v2686 = vmul.f32 %v2676, 1.442695
  %v2687 = vpow.pop %v2686
  %v2688 = vmul.f32 %v2677, 1.442695
  %v2689 = vpow.pop %v2688
  %v2690 = vmul.f32 %v2678, 1.442695
  %v2691 = vpow.pop %v2690
  %v2692 = vmul.f32 %v2679, 1.442695
  %v2693 = vpow.pop %v2692
  %v2694 = vmul.f32 %v2680, 1.442695
  %v2695 = vpow.pop %v2694
  %v2696 = vmul.f32 %v2681, 1.442695
  %v2697 = vpow.pop %v2696
  %v2698 = vsel %vm2396, %v2683, 0.0
  %2699 = vadd.xlane.f32.xlu0 %v2698
  %v2700 = vpop.xlane.xlu0 %2699
  %v2701 = vsel %vm2396, %v2685, 0.0
  %2702 = vadd.xlane.f32.xlu0 %v2701
  %v2703 = vpop.xlane.xlu0 %2702
  %v2704 = vsel %vm2396, %v2687, 0.0
  %2705 = vadd.xlane.f32.xlu0 %v2704
  %v2706 = vpop.xlane.xlu0 %2705
  %v2707 = vsel %vm2396, %v2689, 0.0
  %2708 = vadd.xlane.f32.xlu0 %v2707
  %v2709 = vpop.xlane.xlu0 %2708
  %v2710 = vsel %vm2396, %v2691, 0.0
  %2711 = vadd.xlane.f32.xlu0 %v2710
  %v2712 = vpop.xlane.xlu0 %2711
  %v2713 = vsel %vm2396, %v2693, 0.0
  %2714 = vadd.xlane.f32.xlu0 %v2713
  %v2715 = vpop.xlane.xlu0 %2714
  %v2716 = vsel %vm2396, %v2695, 0.0
  %2717 = vadd.xlane.f32.xlu0 %v2716
  %v2718 = vpop.xlane.xlu0 %2717
  %v2719 = vsel %vm2396, %v2697, 0.0
  %2720 = vadd.xlane.f32.xlu0 %v2719
  %v2721 = vpop.xlane.xlu0 %2720
  %v2722 = vrcp.pop %v2700
  %v2723 = vmul.f32 %v2683, %v2722
  %v2724 = vrcp.pop %v2703
  %v2725 = vmul.f32 %v2685, %v2724
  %v2726 = vrcp.pop %v2706
  %v2727 = vmul.f32 %v2687, %v2726
  %v2728 = vrcp.pop %v2709
  %v2729 = vmul.f32 %v2689, %v2728
  %v2730 = vrcp.pop %v2712
  %v2731 = vmul.f32 %v2691, %v2730
  %v2732 = vrcp.pop %v2715
  %v2733 = vmul.f32 %v2693, %v2732
  %v2734 = vrcp.pop %v2718
  %v2735 = vmul.f32 %v2695, %v2734
  %v2736 = vrcp.pop %v2721
  %v2737 = vmul.f32 %v2697, %v2736
  %v2739 = vsel %vm2396, %v2723, 0
  %v2742 = vsel %vm2396, %v2725, 0
  %v2745 = vsel %vm2396, %v2727, 0
  %v2748 = vsel %vm2396, %v2729, 0
  %v2751 = vsel %vm2396, %v2731, 0
  %v2754 = vsel %vm2396, %v2733, 0
  %v2757 = vsel %vm2396, %v2735, 0
  %v2760 = vsel %vm2396, %v2737, 0
  %2762 = vmatprep.subr.mxu0 0.0
  %2763 = vmatpush1.msra.mxu0 0.0
  %2764 = vmatprep.subr.mxu0 0.0
  %2765 = vmatpush1.msra.mxu0 0.0
  %2766 = vmatprep.subr.mxu0 0.0
  %2767 = vmatpush1.msra.mxu0 0.0
  %2768 = vmatprep.subr.mxu0 0.0
  %2769 = vmatpush1.msra.mxu0 0.0
  %2770 = vmatprep.subr.mxu0 0.0
  %2771 = vmatpush1.msra.mxu0 0.0
  %2772 = vmatprep.subr.mxu0 0.0
  %2773 = vmatpush1.msra.mxu0 0.0
  %2774 = vmatprep.subr.mxu0 0.0
  %2775 = vmatpush1.msra.mxu0 0.0
  %2776 = vmatprep.subr.mxu0 0.0
  %2777 = vmatpush1.msra.mxu0 0.0
  %2778 = vmatprep.subr.mxu0 0.0
  %2779 = vmatpush1.msra.mxu0 0.0
  %2780 = vmatprep.subr.mxu0 0.0
  %2781 = vmatpush1.msra.mxu0 0.0
  %2782 = vmatprep.subr.mxu0 0.0
  %2783 = vmatpush1.msra.mxu0 0.0
  %2784 = vmatprep.subr.mxu0 0.0
  %2785 = vmatpush1.msra.mxu0 0.0
  %2786 = vmatprep.subr.mxu0 0.0
  %2787 = vmatpush1.msra.mxu0 0.0
  %2788 = vmatprep.subr.mxu0 0.0
  %2789 = vmatpush1.msra.mxu0 0.0
  %2790 = vmatprep.subr.mxu0 %v2404
  %2791 = vmatpush1.msra.mxu0 %v2401
  %2792 = vmatprep.subr.mxu0 %v2255
  %2793 = vmatpush1.msra.mxu0 %v2254
  %2794 = vmatprep.subr.mxu0 0.0
  %2795 = vmatpush2.msra.mxu0 0.0
  %2796 = vmatprep.subr.mxu0 0.0
  %2797 = vmatpush2.msra.mxu0 0.0
  %2798 = vmatprep.subr.mxu0 0.0
  %2799 = vmatpush2.msra.mxu0 0.0
  %2800 = vmatprep.subr.mxu0 0.0
  %2801 = vmatpush2.msra.mxu0 0.0
  %2802 = vmatprep.subr.mxu0 0.0
  %2803 = vmatpush2.msra.mxu0 0.0
  %2804 = vmatprep.subr.mxu0 0.0
  %2805 = vmatpush2.msra.mxu0 0.0
  %2806 = vmatprep.subr.mxu0 0.0
  %2807 = vmatpush2.msra.mxu0 0.0
  %2808 = vmatprep.subr.mxu0 0.0
  %2809 = vmatpush2.msra.mxu0 0.0
  %2810 = vmatprep.subr.mxu0 0.0
  %2811 = vmatpush2.msra.mxu0 0.0
  %2812 = vmatprep.subr.mxu0 0.0
  %2813 = vmatpush2.msra.mxu0 0.0
  %2814 = vmatprep.subr.mxu0 0.0
  %2815 = vmatpush2.msra.mxu0 0.0
  %2816 = vmatprep.subr.mxu0 0.0
  %2817 = vmatpush2.msra.mxu0 0.0
  %2818 = vmatprep.subr.mxu0 0.0
  %2819 = vmatpush2.msra.mxu0 0.0
  %2820 = vmatprep.subr.mxu0 0.0
  %2821 = vmatpush2.msra.mxu0 0.0
  %2822 = vmatprep.subr.mxu0 0.0
  %2823 = vmatpush2.msra.mxu0 0.0
  %2824 = vmatprep.subr.mxu0 0.0
  %2825 = vmatpush2.msra.mxu0 0.0
  %2826 = vmatprep.mubr.f32.mxu0 0.0
  %2827 = vmatmul.mubr.f32.gmra.mxu0 %v2739
  %v2828 = vpop.f32.mrf.mxu0
  %v2829 = vadd.f32 0.0, %v2828
  %v2830 = vpop.f32.mrf.mxu0
  %v2831 = vadd.f32 0.0, %v2830
  %2832 = vmatprep.mubr.f32.mxu0 0.0
  %2833 = vmatmul.mubr.f32.gmra.mxu0 %v2742
  %v2834 = vpop.f32.mrf.mxu0
  %v2835 = vadd.f32 0.0, %v2834
  %v2836 = vpop.f32.mrf.mxu0
  %v2837 = vadd.f32 0.0, %v2836
  %2838 = vmatprep.mubr.f32.mxu0 0.0
  %2839 = vmatmul.mubr.f32.gmra.mxu0 %v2745
  %v2840 = vpop.f32.mrf.mxu0
  %v2841 = vadd.f32 0.0, %v2840
  %v2842 = vpop.f32.mrf.mxu0
  %v2843 = vadd.f32 0.0, %v2842
  %2844 = vmatprep.mubr.f32.mxu0 0.0
  %2845 = vmatmul.mubr.f32.gmra.mxu0 %v2748
  %v2846 = vpop.f32.mrf.mxu0
  %v2847 = vadd.f32 0.0, %v2846
  %v2848 = vpop.f32.mrf.mxu0
  %v2849 = vadd.f32 0.0, %v2848
  %2850 = vmatprep.mubr.f32.mxu0 0.0
  %2851 = vmatmul.mubr.f32.gmra.mxu0 %v2751
  %v2852 = vpop.f32.mrf.mxu0
  %v2853 = vadd.f32 0.0, %v2852
  %v2854 = vpop.f32.mrf.mxu0
  %v2855 = vadd.f32 0.0, %v2854
  %2856 = vmatprep.mubr.f32.mxu0 0.0
  %2857 = vmatmul.mubr.f32.gmra.mxu0 %v2754
  %v2858 = vpop.f32.mrf.mxu0
  %v2859 = vadd.f32 0.0, %v2858
  %v2860 = vpop.f32.mrf.mxu0
  %v2861 = vadd.f32 0.0, %v2860
  %2862 = vmatprep.mubr.f32.mxu0 0.0
  %2863 = vmatmul.mubr.f32.gmra.mxu0 %v2757
  %v2864 = vpop.f32.mrf.mxu0
  %v2865 = vadd.f32 0.0, %v2864
  %v2866 = vpop.f32.mrf.mxu0
  %v2867 = vadd.f32 0.0, %v2866
  %2868 = vmatprep.mubr.f32.mxu0 0.0
  %2869 = vmatmul.mubr.f32.gmra.mxu0 %v2760
  %v2870 = vpop.f32.mrf.mxu0
  %v2871 = vadd.f32 0.0, %v2870
  %v2872 = vpop.f32.mrf.mxu0
  %v2873 = vadd.f32 0.0, %v2872
  %2874 = vdwg.mxu0
  %v2875 = vmul.f32 %v2829, %v2218
  %v2876 = vmul.f32 %v2831, %v2219
  %v2877 = vmul.f32 %v2835, %v2220
  %v2878 = vmul.f32 %v2837, %v2221
  %v2879 = vmul.f32 %v2841, %v2222
  %v2880 = vmul.f32 %v2843, %v2223
  %v2881 = vmul.f32 %v2847, %v2224
  %v2882 = vmul.f32 %v2849, %v2225
  %v2883 = vmul.f32 %v2853, %v2226
  %v2884 = vmul.f32 %v2855, %v2227
  %v2885 = vmul.f32 %v2859, %v2228
  %v2886 = vmul.f32 %v2861, %v2229
  %v2887 = vmul.f32 %v2865, %v2230
  %v2888 = vmul.f32 %v2867, %v2231
  %v2889 = vmul.f32 %v2871, %v2232
  %v2890 = vmul.f32 %v2873, %v2233
  %v2891 = vadd.f32 %v2875, %v2877
  %v2892 = vadd.f32 %v2891, %v2879
  %v2893 = vadd.f32 %v2892, %v2881
  %v2894 = vrot.slane %v2893, 4
  %v2895 = vadd.f32 %v2893, %v2894
  %v2896 = vrot.slane %v2895, 2
  %v2897 = vadd.f32 %v2895, %v2896
  %v2898 = vrot.slane %v2897, 1
  %v2899 = vadd.f32 %v2897, %v2898
  %v2900 = vsel %vm1165, %v2876, 0.0
  %v2901 = vsel %vm1165, %v2878, 0.0
  %v2902 = vadd.f32 %v2900, %v2901
  %v2903 = vsel %vm1165, %v2880, 0.0
  %v2904 = vadd.f32 %v2902, %v2903
  %v2905 = vsel %vm1165, %v2882, 0.0
  %v2906 = vadd.f32 %v2904, %v2905
  %v2907 = vrot.slane %v2906, 4
  %v2908 = vadd.f32 %v2906, %v2907
  %v2909 = vrot.slane %v2908, 2
  %v2910 = vadd.f32 %v2908, %v2909
  %v2911 = vrot.slane %v2910, 1
  %v2912 = vadd.f32 %v2910, %v2911
  %v2913 = vadd.f32 %v2883, %v2885
  %v2914 = vadd.f32 %v2913, %v2887
  %v2915 = vadd.f32 %v2914, %v2889
  %v2916 = vrot.slane %v2915, 4
  %v2917 = vadd.f32 %v2915, %v2916
  %v2918 = vrot.slane %v2917, 2
  %v2919 = vadd.f32 %v2917, %v2918
  %v2920 = vrot.slane %v2919, 1
  %v2921 = vadd.f32 %v2919, %v2920
  %v2922 = vsel %vm1165, %v2884, 0.0
  %v2923 = vsel %vm1165, %v2886, 0.0
  %v2924 = vadd.f32 %v2922, %v2923
  %v2925 = vsel %vm1165, %v2888, 0.0
  %v2926 = vadd.f32 %v2924, %v2925
  %v2927 = vsel %vm1165, %v2890, 0.0
  %v2928 = vadd.f32 %v2926, %v2927
  %v2929 = vrot.slane %v2928, 4
  %v2930 = vadd.f32 %v2928, %v2929
  %v2931 = vrot.slane %v2930, 2
  %v2932 = vadd.f32 %v2930, %v2931
  %v2933 = vrot.slane %v2932, 1
  %v2934 = vadd.f32 %v2932, %v2933
  %v2935 = vmul.f32 %v2899, %v2899
  %v2936 = vmul.f32 %v2912, %v2912
  %v2937 = vmul.f32 %v2921, %v2921
  %v2938 = vmul.f32 %v2934, %v2934
  %v2943 = vsel %vm2314, %v2937, %v2935
  %v2944 = vsel %vm2314, %v2938, %v2936
  %v2946 = vsel %vm1165, %v2944, 0
  %2948 = vmatprep.subr.mxu0 0.0
  %2949 = vmatpush1.msra.mxu0 %v2249
  %2950 = vmatprep.subr.mxu0 0.0
  %2951 = vmatpush1.msra.mxu0 %v2248
  %2952 = vmatprep.subr.mxu0 0.0
  %2953 = vmatpush1.msra.mxu0 %v2247
  %2954 = vmatprep.subr.mxu0 0.0
  %2955 = vmatpush1.msra.mxu0 %v2246
  %2956 = vmatprep.subr.mxu0 0.0
  %2957 = vmatpush1.msra.mxu0 %v2245
  %2958 = vmatprep.subr.mxu0 0.0
  %2959 = vmatpush1.msra.mxu0 %v2244
  %2960 = vmatprep.subr.mxu0 0.0
  %2961 = vmatpush1.msra.mxu0 %v2243
  %2962 = vmatprep.subr.mxu0 0.0
  %2963 = vmatpush1.msra.mxu0 %v2242
  %2964 = vmatprep.subr.mxu0 0.0
  %2965 = vmatpush1.msra.mxu0 %v2241
  %2966 = vmatprep.subr.mxu0 0.0
  %2967 = vmatpush1.msra.mxu0 %v2240
  %2968 = vmatprep.subr.mxu0 0.0
  %2969 = vmatpush1.msra.mxu0 %v2239
  %2970 = vmatprep.subr.mxu0 0.0
  %2971 = vmatpush1.msra.mxu0 %v2238
  %2972 = vmatprep.subr.mxu0 0.0
  %2973 = vmatpush1.msra.mxu0 %v2237
  %2974 = vmatprep.subr.mxu0 0.0
  %2975 = vmatpush1.msra.mxu0 %v2236
  %2976 = vmatprep.subr.mxu0 0.0
  %2977 = vmatpush1.msra.mxu0 %v2235
  %2978 = vmatprep.subr.mxu0 0.0
  %2979 = vmatpush1.msra.mxu0 %v2234
  %2980 = vmatprep.subr.mxu0 0.0
  %2981 = vmatpush2.msra.mxu0 0.0
  %2982 = vmatprep.subr.mxu0 0.0
  %2983 = vmatpush2.msra.mxu0 0.0
  %2984 = vmatprep.subr.mxu0 0.0
  %2985 = vmatpush2.msra.mxu0 0.0
  %2986 = vmatprep.subr.mxu0 0.0
  %2987 = vmatpush2.msra.mxu0 0.0
  %2988 = vmatprep.subr.mxu0 0.0
  %2989 = vmatpush2.msra.mxu0 0.0
  %2990 = vmatprep.subr.mxu0 0.0
  %2991 = vmatpush2.msra.mxu0 0.0
  %2992 = vmatprep.subr.mxu0 0.0
  %2993 = vmatpush2.msra.mxu0 0.0
  %2994 = vmatprep.subr.mxu0 0.0
  %2995 = vmatpush2.msra.mxu0 0.0
  %2996 = vmatprep.subr.mxu0 0.0
  %2997 = vmatpush2.msra.mxu0 0.0
  %2998 = vmatprep.subr.mxu0 0.0
  %2999 = vmatpush2.msra.mxu0 0.0
  %3000 = vmatprep.subr.mxu0 0.0
  %3001 = vmatpush2.msra.mxu0 0.0
  %3002 = vmatprep.subr.mxu0 0.0
  %3003 = vmatpush2.msra.mxu0 0.0
  %3004 = vmatprep.subr.mxu0 0.0
  %3005 = vmatpush2.msra.mxu0 %v2253
  %3006 = vmatprep.subr.mxu0 0.0
  %3007 = vmatpush2.msra.mxu0 %v2252
  %3008 = vmatprep.subr.mxu0 0.0
  %3009 = vmatpush2.msra.mxu0 %v2251
  %3010 = vmatprep.subr.mxu0 0.0
  %3011 = vmatpush2.msra.mxu0 %v2250
  %3012 = vmatprep.mubr.f32.mxu0 %v2946
  %3013 = vmatmul.mubr.f32.gmra.mxu0 %v2943
  %v3014 = vpop.f32.mrf.mxu0
  %v3015 = vadd.f32 0.0, %v3014
  %v3016 = vpop.f32.mrf.mxu0
  %3017 = vdwg.mxu0
  %v3018 = vadd.f32 %v3015, 1.0
  %v3019 = vrcp.pop %v3018
  %v3020 = vmul.f32 %v3015, %v3019
  %v3021 = vadd.f32 %v3015, 1e-08
  %v3022 = vrsqrt.pop %v3021
  %v3023 = vmul.f32 %v3020, %v3022
  %v3025 = vsel %vm2396, %v3023, 0
  %3027 = vmatprep.subr.mxu0 0.0
  %3028 = vmatpush1.msra.mxu0 0.0
  %3029 = vmatprep.subr.mxu0 0.0
  %3030 = vmatpush1.msra.mxu0 0.0
  %3031 = vmatprep.subr.mxu0 0.0
  %3032 = vmatpush1.msra.mxu0 0.0
  %3033 = vmatprep.subr.mxu0 0.0
  %3034 = vmatpush1.msra.mxu0 0.0
  %3035 = vmatprep.subr.mxu0 0.0
  %3036 = vmatpush1.msra.mxu0 0.0
  %3037 = vmatprep.subr.mxu0 0.0
  %3038 = vmatpush1.msra.mxu0 0.0
  %3039 = vmatprep.subr.mxu0 0.0
  %3040 = vmatpush1.msra.mxu0 0.0
  %3041 = vmatprep.subr.mxu0 0.0
  %3042 = vmatpush1.msra.mxu0 0.0
  %3043 = vmatprep.subr.mxu0 0.0
  %3044 = vmatpush1.msra.mxu0 0.0
  %3045 = vmatprep.subr.mxu0 0.0
  %3046 = vmatpush1.msra.mxu0 0.0
  %3047 = vmatprep.subr.mxu0 0.0
  %3048 = vmatpush1.msra.mxu0 0.0
  %3049 = vmatprep.subr.mxu0 0.0
  %3050 = vmatpush1.msra.mxu0 0.0
  %3051 = vmatprep.subr.mxu0 0.0
  %3052 = vmatpush1.msra.mxu0 0.0
  %3053 = vmatprep.subr.mxu0 0.0
  %3054 = vmatpush1.msra.mxu0 0.0
  %3055 = vmatprep.subr.mxu0 %v2404
  %3056 = vmatpush1.msra.mxu0 %v2401
  %3057 = vmatprep.subr.mxu0 %v2255
  %3058 = vmatpush1.msra.mxu0 %v2254
  %3059 = vmatprep.subr.mxu0 0.0
  %3060 = vmatpush2.msra.mxu0 0.0
  %3061 = vmatprep.subr.mxu0 0.0
  %3062 = vmatpush2.msra.mxu0 0.0
  %3063 = vmatprep.subr.mxu0 0.0
  %3064 = vmatpush2.msra.mxu0 0.0
  %3065 = vmatprep.subr.mxu0 0.0
  %3066 = vmatpush2.msra.mxu0 0.0
  %3067 = vmatprep.subr.mxu0 0.0
  %3068 = vmatpush2.msra.mxu0 0.0
  %3069 = vmatprep.subr.mxu0 0.0
  %3070 = vmatpush2.msra.mxu0 0.0
  %3071 = vmatprep.subr.mxu0 0.0
  %3072 = vmatpush2.msra.mxu0 0.0
  %3073 = vmatprep.subr.mxu0 0.0
  %3074 = vmatpush2.msra.mxu0 0.0
  %3075 = vmatprep.subr.mxu0 0.0
  %3076 = vmatpush2.msra.mxu0 0.0
  %3077 = vmatprep.subr.mxu0 0.0
  %3078 = vmatpush2.msra.mxu0 0.0
  %3079 = vmatprep.subr.mxu0 0.0
  %3080 = vmatpush2.msra.mxu0 0.0
  %3081 = vmatprep.subr.mxu0 0.0
  %3082 = vmatpush2.msra.mxu0 0.0
  %3083 = vmatprep.subr.mxu0 0.0
  %3084 = vmatpush2.msra.mxu0 0.0
  %3085 = vmatprep.subr.mxu0 0.0
  %3086 = vmatpush2.msra.mxu0 0.0
  %3087 = vmatprep.subr.mxu0 0.0
  %3088 = vmatpush2.msra.mxu0 0.0
  %3089 = vmatprep.subr.mxu0 0.0
  %3090 = vmatpush2.msra.mxu0 0.0
  %3091 = vmatprep.mubr.f32.mxu0 0.0
  %3092 = vmatmul.mubr.f32.gmra.mxu0 %v3025
  %v3093 = vpop.f32.mrf.mxu0
  %v3094 = vadd.f32 0.0, %v3093
  %v3095 = vpop.f32.mrf.mxu0
  %v3096 = vadd.f32 0.0, %v3095
  %3097 = vdwg.mxu0
  %v3100 = vrot.slane %v3094, 1
  %v3101 = vrot.slane %v3096, 1
  %v3106 = vmul.f32 %v2899, %v3094
  %v3107 = vmul.f32 %v2912, %v3096
  %v3108 = vmul.f32 %v2921, %v3100
  %v3109 = vmul.f32 %v2934, %v3101
  %v3110 = vlaneseq
  %v3111 = vshrl.u32 %v3110, 7
  %v3112 = vsub.s32 0, %v3111
  %v3113 = vrot.slane %v3106, %v3112
  %v3114 = vlaneseq
  %v3115 = vshrl.u32 %v3114, 7
  %v3116 = vsub.s32 0, %v3115
  %v3117 = vrot.slane %v3107, %v3116
  %v3118 = vlaneseq
  %v3119 = vshrl.u32 %v3118, 7
  %v3120 = vsub.s32 0, %v3119
  %v3121 = vrot.slane %v3108, %v3120
  %v3122 = vlaneseq
  %v3123 = vshrl.u32 %v3122, 7
  %v3124 = vsub.s32 0, %v3123
  %v3125 = vrot.slane %v3109, %v3124
  %v3126 = vmul.f32 %v2218, %v3113
  %v3127 = vmul.f32 %v2219, %v3117
  %v3128 = vmul.f32 %v2220, %v3113
  %v3129 = vmul.f32 %v2221, %v3117
  %v3130 = vmul.f32 %v2222, %v3113
  %v3131 = vmul.f32 %v2223, %v3117
  %v3132 = vmul.f32 %v2224, %v3113
  %v3133 = vmul.f32 %v2225, %v3117
  %v3134 = vmul.f32 %v2226, %v3121
  %v3135 = vmul.f32 %v2227, %v3125
  %v3136 = vmul.f32 %v2228, %v3121
  %v3137 = vmul.f32 %v2229, %v3125
  %v3138 = vmul.f32 %v2230, %v3121
  %v3139 = vmul.f32 %v2231, %v3125
  %v3140 = vmul.f32 %v2232, %v3121
  %v3141 = vmul.f32 %v2233, %v3125
  %v3143 = vsel %vm1165, %v3127, 0
  %v3146 = vsel %vm1165, %v3129, 0
  %v3149 = vsel %vm1165, %v3131, 0
  %v3152 = vsel %vm1165, %v3133, 0
  %v3155 = vsel %vm1165, %v3135, 0
  %v3158 = vsel %vm1165, %v3137, 0
  %v3161 = vsel %vm1165, %v3139, 0
  %v3164 = vsel %vm1165, %v3141, 0
  %3166 = vmatprep.subr.mxu0 0.0
  %3167 = vmatpush1.msra.mxu0 %v2249
  %3168 = vmatprep.subr.mxu0 0.0
  %3169 = vmatpush1.msra.mxu0 %v2248
  %3170 = vmatprep.subr.mxu0 0.0
  %3171 = vmatpush1.msra.mxu0 %v2247
  %3172 = vmatprep.subr.mxu0 0.0
  %3173 = vmatpush1.msra.mxu0 %v2246
  %3174 = vmatprep.subr.mxu0 0.0
  %3175 = vmatpush1.msra.mxu0 %v2245
  %3176 = vmatprep.subr.mxu0 0.0
  %3177 = vmatpush1.msra.mxu0 %v2244
  %3178 = vmatprep.subr.mxu0 0.0
  %3179 = vmatpush1.msra.mxu0 %v2243
  %3180 = vmatprep.subr.mxu0 0.0
  %3181 = vmatpush1.msra.mxu0 %v2242
  %3182 = vmatprep.subr.mxu0 0.0
  %3183 = vmatpush1.msra.mxu0 %v2241
  %3184 = vmatprep.subr.mxu0 0.0
  %3185 = vmatpush1.msra.mxu0 %v2240
  %3186 = vmatprep.subr.mxu0 0.0
  %3187 = vmatpush1.msra.mxu0 %v2239
  %3188 = vmatprep.subr.mxu0 0.0
  %3189 = vmatpush1.msra.mxu0 %v2238
  %3190 = vmatprep.subr.mxu0 0.0
  %3191 = vmatpush1.msra.mxu0 %v2237
  %3192 = vmatprep.subr.mxu0 0.0
  %3193 = vmatpush1.msra.mxu0 %v2236
  %3194 = vmatprep.subr.mxu0 0.0
  %3195 = vmatpush1.msra.mxu0 %v2235
  %3196 = vmatprep.subr.mxu0 0.0
  %3197 = vmatpush1.msra.mxu0 %v2234
  %3198 = vmatprep.subr.mxu0 0.0
  %3199 = vmatpush2.msra.mxu0 0.0
  %3200 = vmatprep.subr.mxu0 0.0
  %3201 = vmatpush2.msra.mxu0 0.0
  %3202 = vmatprep.subr.mxu0 0.0
  %3203 = vmatpush2.msra.mxu0 0.0
  %3204 = vmatprep.subr.mxu0 0.0
  %3205 = vmatpush2.msra.mxu0 0.0
  %3206 = vmatprep.subr.mxu0 0.0
  %3207 = vmatpush2.msra.mxu0 0.0
  %3208 = vmatprep.subr.mxu0 0.0
  %3209 = vmatpush2.msra.mxu0 0.0
  %3210 = vmatprep.subr.mxu0 0.0
  %3211 = vmatpush2.msra.mxu0 0.0
  %3212 = vmatprep.subr.mxu0 0.0
  %3213 = vmatpush2.msra.mxu0 0.0
  %3214 = vmatprep.subr.mxu0 0.0
  %3215 = vmatpush2.msra.mxu0 0.0
  %3216 = vmatprep.subr.mxu0 0.0
  %3217 = vmatpush2.msra.mxu0 0.0
  %3218 = vmatprep.subr.mxu0 0.0
  %3219 = vmatpush2.msra.mxu0 0.0
  %3220 = vmatprep.subr.mxu0 0.0
  %3221 = vmatpush2.msra.mxu0 0.0
  %3222 = vmatprep.subr.mxu0 0.0
  %3223 = vmatpush2.msra.mxu0 %v2253
  %3224 = vmatprep.subr.mxu0 0.0
  %3225 = vmatpush2.msra.mxu0 %v2252
  %3226 = vmatprep.subr.mxu0 0.0
  %3227 = vmatpush2.msra.mxu0 %v2251
  %3228 = vmatprep.subr.mxu0 0.0
  %3229 = vmatpush2.msra.mxu0 %v2250
  %3230 = vmatprep.mubr.f32.mxu0 %v3143
  %3231 = vmatmul.mubr.f32.gmra.mxu0 %v3126
  %v3232 = vpop.f32.mrf.mxu0
  %v3233 = vadd.f32 0.0, %v3232
  %v3234 = vpop.f32.mrf.mxu0
  %3235 = vmatprep.mubr.f32.mxu0 %v3146
  %3236 = vmatmul.mubr.f32.gmra.mxu0 %v3128
  %v3237 = vpop.f32.mrf.mxu0
  %v3238 = vadd.f32 0.0, %v3237
  %v3239 = vpop.f32.mrf.mxu0
  %3240 = vmatprep.mubr.f32.mxu0 %v3149
  %3241 = vmatmul.mubr.f32.gmra.mxu0 %v3130
  %v3242 = vpop.f32.mrf.mxu0
  %v3243 = vadd.f32 0.0, %v3242
  %v3244 = vpop.f32.mrf.mxu0
  %3245 = vmatprep.mubr.f32.mxu0 %v3152
  %3246 = vmatmul.mubr.f32.gmra.mxu0 %v3132
  %v3247 = vpop.f32.mrf.mxu0
  %v3248 = vadd.f32 0.0, %v3247
  %v3249 = vpop.f32.mrf.mxu0
  %3250 = vmatprep.mubr.f32.mxu0 %v3155
  %3251 = vmatmul.mubr.f32.gmra.mxu0 %v3134
  %v3252 = vpop.f32.mrf.mxu0
  %v3253 = vadd.f32 0.0, %v3252
  %v3254 = vpop.f32.mrf.mxu0
  %3255 = vmatprep.mubr.f32.mxu0 %v3158
  %3256 = vmatmul.mubr.f32.gmra.mxu0 %v3136
  %v3257 = vpop.f32.mrf.mxu0
  %v3258 = vadd.f32 0.0, %v3257
  %v3259 = vpop.f32.mrf.mxu0
  %3260 = vmatprep.mubr.f32.mxu0 %v3161
  %3261 = vmatmul.mubr.f32.gmra.mxu0 %v3138
  %v3262 = vpop.f32.mrf.mxu0
  %v3263 = vadd.f32 0.0, %v3262
  %v3264 = vpop.f32.mrf.mxu0
  %3265 = vmatprep.mubr.f32.mxu0 %v3164
  %3266 = vmatmul.mubr.f32.gmra.mxu0 %v3140
  %v3267 = vpop.f32.mrf.mxu0
  %v3268 = vadd.f32 0.0, %v3267
  %v3269 = vpop.f32.mrf.mxu0
  %3270 = vdwg.mxu0
  %v3271 = vadd.f32 %v2612, %v3233
  %v3272 = vadd.f32 %v2617, %v3238
  %v3273 = vadd.f32 %v2622, %v3243
  %v3274 = vadd.f32 %v2627, %v3248
  %v3275 = vadd.f32 %v2632, %v3253
  %v3276 = vadd.f32 %v2637, %v3258
  %v3277 = vadd.f32 %v2642, %v3263
  %v3278 = vadd.f32 %v2647, %v3268
  %v3279 = vsel %vm2396, %v3271, -inf
  %3280 = vmax.xlane.f32.xlu0 %v3279
  %v3281 = vpop.xlane.xlu0 %3280
  %v3282 = vsel %vm2396, %v3272, -inf
  %3283 = vmax.xlane.f32.xlu0 %v3282
  %v3284 = vpop.xlane.xlu0 %3283
  %v3285 = vsel %vm2396, %v3273, -inf
  %3286 = vmax.xlane.f32.xlu0 %v3285
  %v3287 = vpop.xlane.xlu0 %3286
  %v3288 = vsel %vm2396, %v3274, -inf
  %3289 = vmax.xlane.f32.xlu0 %v3288
  %v3290 = vpop.xlane.xlu0 %3289
  %v3291 = vsel %vm2396, %v3275, -inf
  %3292 = vmax.xlane.f32.xlu0 %v3291
  %v3293 = vpop.xlane.xlu0 %3292
  %v3294 = vsel %vm2396, %v3276, -inf
  %3295 = vmax.xlane.f32.xlu0 %v3294
  %v3296 = vpop.xlane.xlu0 %3295
  %v3297 = vsel %vm2396, %v3277, -inf
  %3298 = vmax.xlane.f32.xlu0 %v3297
  %v3299 = vpop.xlane.xlu0 %3298
  %v3300 = vsel %vm2396, %v3278, -inf
  %3301 = vmax.xlane.f32.xlu0 %v3300
  %v3302 = vpop.xlane.xlu0 %3301
  %v3303 = vsub.f32 %v3271, %v3281
  %v3304 = vsub.f32 %v3272, %v3284
  %v3305 = vsub.f32 %v3273, %v3287
  %v3306 = vsub.f32 %v3274, %v3290
  %v3307 = vsub.f32 %v3275, %v3293
  %v3308 = vsub.f32 %v3276, %v3296
  %v3309 = vsub.f32 %v3277, %v3299
  %v3310 = vsub.f32 %v3278, %v3302
  %v3311 = vmul.f32 %v3303, 1.442695
  %v3312 = vpow.pop %v3311
  %v3313 = vmul.f32 %v3304, 1.442695
  %v3314 = vpow.pop %v3313
  %v3315 = vmul.f32 %v3305, 1.442695
  %v3316 = vpow.pop %v3315
  %v3317 = vmul.f32 %v3306, 1.442695
  %v3318 = vpow.pop %v3317
  %v3319 = vmul.f32 %v3307, 1.442695
  %v3320 = vpow.pop %v3319
  %v3321 = vmul.f32 %v3308, 1.442695
  %v3322 = vpow.pop %v3321
  %v3323 = vmul.f32 %v3309, 1.442695
  %v3324 = vpow.pop %v3323
  %v3325 = vmul.f32 %v3310, 1.442695
  %v3326 = vpow.pop %v3325
  %v3327 = vsel %vm2396, %v3312, 0.0
  %3328 = vadd.xlane.f32.xlu0 %v3327
  %v3329 = vpop.xlane.xlu0 %3328
  %v3330 = vsel %vm2396, %v3314, 0.0
  %3331 = vadd.xlane.f32.xlu0 %v3330
  %v3332 = vpop.xlane.xlu0 %3331
  %v3333 = vsel %vm2396, %v3316, 0.0
  %3334 = vadd.xlane.f32.xlu0 %v3333
  %v3335 = vpop.xlane.xlu0 %3334
  %v3336 = vsel %vm2396, %v3318, 0.0
  %3337 = vadd.xlane.f32.xlu0 %v3336
  %v3338 = vpop.xlane.xlu0 %3337
  %v3339 = vsel %vm2396, %v3320, 0.0
  %3340 = vadd.xlane.f32.xlu0 %v3339
  %v3341 = vpop.xlane.xlu0 %3340
  %v3342 = vsel %vm2396, %v3322, 0.0
  %3343 = vadd.xlane.f32.xlu0 %v3342
  %v3344 = vpop.xlane.xlu0 %3343
  %v3345 = vsel %vm2396, %v3324, 0.0
  %3346 = vadd.xlane.f32.xlu0 %v3345
  %v3347 = vpop.xlane.xlu0 %3346
  %v3348 = vsel %vm2396, %v3326, 0.0
  %3349 = vadd.xlane.f32.xlu0 %v3348
  %v3350 = vpop.xlane.xlu0 %3349
  %v3351 = vrcp.pop %v3329
  %v3352 = vmul.f32 %v3312, %v3351
  %v3353 = vrcp.pop %v3332
  %v3354 = vmul.f32 %v3314, %v3353
  %v3355 = vrcp.pop %v3335
  %v3356 = vmul.f32 %v3316, %v3355
  %v3357 = vrcp.pop %v3338
  %v3358 = vmul.f32 %v3318, %v3357
  %v3359 = vrcp.pop %v3341
  %v3360 = vmul.f32 %v3320, %v3359
  %v3361 = vrcp.pop %v3344
  %v3362 = vmul.f32 %v3322, %v3361
  %v3363 = vrcp.pop %v3347
  %v3364 = vmul.f32 %v3324, %v3363
  %v3365 = vrcp.pop %v3350
  %v3366 = vmul.f32 %v3326, %v3365
  %v3368 = vsel %vm2396, %v3352, 0
  %v3371 = vsel %vm2396, %v3354, 0
  %v3374 = vsel %vm2396, %v3356, 0
  %v3377 = vsel %vm2396, %v3358, 0
  %v3380 = vsel %vm2396, %v3360, 0
  %v3383 = vsel %vm2396, %v3362, 0
  %v3386 = vsel %vm2396, %v3364, 0
  %v3389 = vsel %vm2396, %v3366, 0
  %3391 = vmatprep.subr.mxu0 0.0
  %3392 = vmatpush1.msra.mxu0 0.0
  %3393 = vmatprep.subr.mxu0 0.0
  %3394 = vmatpush1.msra.mxu0 0.0
  %3395 = vmatprep.subr.mxu0 0.0
  %3396 = vmatpush1.msra.mxu0 0.0
  %3397 = vmatprep.subr.mxu0 0.0
  %3398 = vmatpush1.msra.mxu0 0.0
  %3399 = vmatprep.subr.mxu0 0.0
  %3400 = vmatpush1.msra.mxu0 0.0
  %3401 = vmatprep.subr.mxu0 0.0
  %3402 = vmatpush1.msra.mxu0 0.0
  %3403 = vmatprep.subr.mxu0 0.0
  %3404 = vmatpush1.msra.mxu0 0.0
  %3405 = vmatprep.subr.mxu0 0.0
  %3406 = vmatpush1.msra.mxu0 0.0
  %3407 = vmatprep.subr.mxu0 0.0
  %3408 = vmatpush1.msra.mxu0 0.0
  %3409 = vmatprep.subr.mxu0 0.0
  %3410 = vmatpush1.msra.mxu0 0.0
  %3411 = vmatprep.subr.mxu0 0.0
  %3412 = vmatpush1.msra.mxu0 0.0
  %3413 = vmatprep.subr.mxu0 0.0
  %3414 = vmatpush1.msra.mxu0 0.0
  %3415 = vmatprep.subr.mxu0 0.0
  %3416 = vmatpush1.msra.mxu0 0.0
  %3417 = vmatprep.subr.mxu0 0.0
  %3418 = vmatpush1.msra.mxu0 0.0
  %3419 = vmatprep.subr.mxu0 %v2404
  %3420 = vmatpush1.msra.mxu0 %v2401
  %3421 = vmatprep.subr.mxu0 %v2255
  %3422 = vmatpush1.msra.mxu0 %v2254
  %3423 = vmatprep.subr.mxu0 0.0
  %3424 = vmatpush2.msra.mxu0 0.0
  %3425 = vmatprep.subr.mxu0 0.0
  %3426 = vmatpush2.msra.mxu0 0.0
  %3427 = vmatprep.subr.mxu0 0.0
  %3428 = vmatpush2.msra.mxu0 0.0
  %3429 = vmatprep.subr.mxu0 0.0
  %3430 = vmatpush2.msra.mxu0 0.0
  %3431 = vmatprep.subr.mxu0 0.0
  %3432 = vmatpush2.msra.mxu0 0.0
  %3433 = vmatprep.subr.mxu0 0.0
  %3434 = vmatpush2.msra.mxu0 0.0
  %3435 = vmatprep.subr.mxu0 0.0
  %3436 = vmatpush2.msra.mxu0 0.0
  %3437 = vmatprep.subr.mxu0 0.0
  %3438 = vmatpush2.msra.mxu0 0.0
  %3439 = vmatprep.subr.mxu0 0.0
  %3440 = vmatpush2.msra.mxu0 0.0
  %3441 = vmatprep.subr.mxu0 0.0
  %3442 = vmatpush2.msra.mxu0 0.0
  %3443 = vmatprep.subr.mxu0 0.0
  %3444 = vmatpush2.msra.mxu0 0.0
  %3445 = vmatprep.subr.mxu0 0.0
  %3446 = vmatpush2.msra.mxu0 0.0
  %3447 = vmatprep.subr.mxu0 0.0
  %3448 = vmatpush2.msra.mxu0 0.0
  %3449 = vmatprep.subr.mxu0 0.0
  %3450 = vmatpush2.msra.mxu0 0.0
  %3451 = vmatprep.subr.mxu0 0.0
  %3452 = vmatpush2.msra.mxu0 0.0
  %3453 = vmatprep.subr.mxu0 0.0
  %3454 = vmatpush2.msra.mxu0 0.0
  %3455 = vmatprep.mubr.f32.mxu0 0.0
  %3456 = vmatmul.mubr.f32.gmra.mxu0 %v3368
  %v3457 = vpop.f32.mrf.mxu0
  %v3458 = vadd.f32 0.0, %v3457
  %v3459 = vpop.f32.mrf.mxu0
  %v3460 = vadd.f32 0.0, %v3459
  %3461 = vmatprep.mubr.f32.mxu0 0.0
  %3462 = vmatmul.mubr.f32.gmra.mxu0 %v3371
  %v3463 = vpop.f32.mrf.mxu0
  %v3464 = vadd.f32 0.0, %v3463
  %v3465 = vpop.f32.mrf.mxu0
  %v3466 = vadd.f32 0.0, %v3465
  %3467 = vmatprep.mubr.f32.mxu0 0.0
  %3468 = vmatmul.mubr.f32.gmra.mxu0 %v3374
  %v3469 = vpop.f32.mrf.mxu0
  %v3470 = vadd.f32 0.0, %v3469
  %v3471 = vpop.f32.mrf.mxu0
  %v3472 = vadd.f32 0.0, %v3471
  %3473 = vmatprep.mubr.f32.mxu0 0.0
  %3474 = vmatmul.mubr.f32.gmra.mxu0 %v3377
  %v3475 = vpop.f32.mrf.mxu0
  %v3476 = vadd.f32 0.0, %v3475
  %v3477 = vpop.f32.mrf.mxu0
  %v3478 = vadd.f32 0.0, %v3477
  %3479 = vmatprep.mubr.f32.mxu0 0.0
  %3480 = vmatmul.mubr.f32.gmra.mxu0 %v3380
  %v3481 = vpop.f32.mrf.mxu0
  %v3482 = vadd.f32 0.0, %v3481
  %v3483 = vpop.f32.mrf.mxu0
  %v3484 = vadd.f32 0.0, %v3483
  %3485 = vmatprep.mubr.f32.mxu0 0.0
  %3486 = vmatmul.mubr.f32.gmra.mxu0 %v3383
  %v3487 = vpop.f32.mrf.mxu0
  %v3488 = vadd.f32 0.0, %v3487
  %v3489 = vpop.f32.mrf.mxu0
  %v3490 = vadd.f32 0.0, %v3489
  %3491 = vmatprep.mubr.f32.mxu0 0.0
  %3492 = vmatmul.mubr.f32.gmra.mxu0 %v3386
  %v3493 = vpop.f32.mrf.mxu0
  %v3494 = vadd.f32 0.0, %v3493
  %v3495 = vpop.f32.mrf.mxu0
  %v3496 = vadd.f32 0.0, %v3495
  %3497 = vmatprep.mubr.f32.mxu0 0.0
  %3498 = vmatmul.mubr.f32.gmra.mxu0 %v3389
  %v3499 = vpop.f32.mrf.mxu0
  %v3500 = vadd.f32 0.0, %v3499
  %v3501 = vpop.f32.mrf.mxu0
  %v3502 = vadd.f32 0.0, %v3501
  %3503 = vdwg.mxu0
  %v3504 = vmul.f32 %v3458, %v2218
  %v3505 = vmul.f32 %v3460, %v2219
  %v3506 = vmul.f32 %v3464, %v2220
  %v3507 = vmul.f32 %v3466, %v2221
  %v3508 = vmul.f32 %v3470, %v2222
  %v3509 = vmul.f32 %v3472, %v2223
  %v3510 = vmul.f32 %v3476, %v2224
  %v3511 = vmul.f32 %v3478, %v2225
  %v3512 = vmul.f32 %v3482, %v2226
  %v3513 = vmul.f32 %v3484, %v2227
  %v3514 = vmul.f32 %v3488, %v2228
  %v3515 = vmul.f32 %v3490, %v2229
  %v3516 = vmul.f32 %v3494, %v2230
  %v3517 = vmul.f32 %v3496, %v2231
  %v3518 = vmul.f32 %v3500, %v2232
  %v3519 = vmul.f32 %v3502, %v2233
  %v3520 = vadd.f32 %v3504, %v3506
  %v3521 = vadd.f32 %v3520, %v3508
  %v3522 = vadd.f32 %v3521, %v3510
  %v3523 = vrot.slane %v3522, 4
  %v3524 = vadd.f32 %v3522, %v3523
  %v3525 = vrot.slane %v3524, 2
  %v3526 = vadd.f32 %v3524, %v3525
  %v3527 = vrot.slane %v3526, 1
  %v3528 = vadd.f32 %v3526, %v3527
  %v3529 = vsel %vm1165, %v3505, 0.0
  %v3530 = vsel %vm1165, %v3507, 0.0
  %v3531 = vadd.f32 %v3529, %v3530
  %v3532 = vsel %vm1165, %v3509, 0.0
  %v3533 = vadd.f32 %v3531, %v3532
  %v3534 = vsel %vm1165, %v3511, 0.0
  %v3535 = vadd.f32 %v3533, %v3534
  %v3536 = vrot.slane %v3535, 4
  %v3537 = vadd.f32 %v3535, %v3536
  %v3538 = vrot.slane %v3537, 2
  %v3539 = vadd.f32 %v3537, %v3538
  %v3540 = vrot.slane %v3539, 1
  %v3541 = vadd.f32 %v3539, %v3540
  %v3542 = vadd.f32 %v3512, %v3514
  %v3543 = vadd.f32 %v3542, %v3516
  %v3544 = vadd.f32 %v3543, %v3518
  %v3545 = vrot.slane %v3544, 4
  %v3546 = vadd.f32 %v3544, %v3545
  %v3547 = vrot.slane %v3546, 2
  %v3548 = vadd.f32 %v3546, %v3547
  %v3549 = vrot.slane %v3548, 1
  %v3550 = vadd.f32 %v3548, %v3549
  %v3551 = vsel %vm1165, %v3513, 0.0
  %v3552 = vsel %vm1165, %v3515, 0.0
  %v3553 = vadd.f32 %v3551, %v3552
  %v3554 = vsel %vm1165, %v3517, 0.0
  %v3555 = vadd.f32 %v3553, %v3554
  %v3556 = vsel %vm1165, %v3519, 0.0
  %v3557 = vadd.f32 %v3555, %v3556
  %v3558 = vrot.slane %v3557, 4
  %v3559 = vadd.f32 %v3557, %v3558
  %v3560 = vrot.slane %v3559, 2
  %v3561 = vadd.f32 %v3559, %v3560
  %v3562 = vrot.slane %v3561, 1
  %v3563 = vadd.f32 %v3561, %v3562
  %v3564 = vmul.f32 %v3528, %v3528
  %v3565 = vmul.f32 %v3541, %v3541
  %v3566 = vmul.f32 %v3550, %v3550
  %v3567 = vmul.f32 %v3563, %v3563
  %v3572 = vsel %vm2314, %v3566, %v3564
  %v3573 = vsel %vm2314, %v3567, %v3565
  %v3575 = vsel %vm1165, %v3573, 0
  %3577 = vmatprep.subr.mxu0 0.0
  %3578 = vmatpush1.msra.mxu0 %v2249
  %3579 = vmatprep.subr.mxu0 0.0
  %3580 = vmatpush1.msra.mxu0 %v2248
  %3581 = vmatprep.subr.mxu0 0.0
  %3582 = vmatpush1.msra.mxu0 %v2247
  %3583 = vmatprep.subr.mxu0 0.0
  %3584 = vmatpush1.msra.mxu0 %v2246
  %3585 = vmatprep.subr.mxu0 0.0
  %3586 = vmatpush1.msra.mxu0 %v2245
  %3587 = vmatprep.subr.mxu0 0.0
  %3588 = vmatpush1.msra.mxu0 %v2244
  %3589 = vmatprep.subr.mxu0 0.0
  %3590 = vmatpush1.msra.mxu0 %v2243
  %3591 = vmatprep.subr.mxu0 0.0
  %3592 = vmatpush1.msra.mxu0 %v2242
  %3593 = vmatprep.subr.mxu0 0.0
  %3594 = vmatpush1.msra.mxu0 %v2241
  %3595 = vmatprep.subr.mxu0 0.0
  %3596 = vmatpush1.msra.mxu0 %v2240
  %3597 = vmatprep.subr.mxu0 0.0
  %3598 = vmatpush1.msra.mxu0 %v2239
  %3599 = vmatprep.subr.mxu0 0.0
  %3600 = vmatpush1.msra.mxu0 %v2238
  %3601 = vmatprep.subr.mxu0 0.0
  %3602 = vmatpush1.msra.mxu0 %v2237
  %3603 = vmatprep.subr.mxu0 0.0
  %3604 = vmatpush1.msra.mxu0 %v2236
  %3605 = vmatprep.subr.mxu0 0.0
  %3606 = vmatpush1.msra.mxu0 %v2235
  %3607 = vmatprep.subr.mxu0 0.0
  %3608 = vmatpush1.msra.mxu0 %v2234
  %3609 = vmatprep.subr.mxu0 0.0
  %3610 = vmatpush2.msra.mxu0 0.0
  %3611 = vmatprep.subr.mxu0 0.0
  %3612 = vmatpush2.msra.mxu0 0.0
  %3613 = vmatprep.subr.mxu0 0.0
  %3614 = vmatpush2.msra.mxu0 0.0
  %3615 = vmatprep.subr.mxu0 0.0
  %3616 = vmatpush2.msra.mxu0 0.0
  %3617 = vmatprep.subr.mxu0 0.0
  %3618 = vmatpush2.msra.mxu0 0.0
  %3619 = vmatprep.subr.mxu0 0.0
  %3620 = vmatpush2.msra.mxu0 0.0
  %3621 = vmatprep.subr.mxu0 0.0
  %3622 = vmatpush2.msra.mxu0 0.0
  %3623 = vmatprep.subr.mxu0 0.0
  %3624 = vmatpush2.msra.mxu0 0.0
  %3625 = vmatprep.subr.mxu0 0.0
  %3626 = vmatpush2.msra.mxu0 0.0
  %3627 = vmatprep.subr.mxu0 0.0
  %3628 = vmatpush2.msra.mxu0 0.0
  %3629 = vmatprep.subr.mxu0 0.0
  %3630 = vmatpush2.msra.mxu0 0.0
  %3631 = vmatprep.subr.mxu0 0.0
  %3632 = vmatpush2.msra.mxu0 0.0
  %3633 = vmatprep.subr.mxu0 0.0
  %3634 = vmatpush2.msra.mxu0 %v2253
  %3635 = vmatprep.subr.mxu0 0.0
  %3636 = vmatpush2.msra.mxu0 %v2252
  %3637 = vmatprep.subr.mxu0 0.0
  %3638 = vmatpush2.msra.mxu0 %v2251
  %3639 = vmatprep.subr.mxu0 0.0
  %3640 = vmatpush2.msra.mxu0 %v2250
  %3641 = vmatprep.mubr.f32.mxu0 %v3575
  %3642 = vmatmul.mubr.f32.gmra.mxu0 %v3572
  %v3643 = vpop.f32.mrf.mxu0
  %v3644 = vadd.f32 0.0, %v3643
  %v3645 = vpop.f32.mrf.mxu0
  %3646 = vdwg.mxu0
  %v3647 = vadd.f32 %v3644, 1.0
  %v3648 = vrcp.pop %v3647
  %v3649 = vmul.f32 %v3644, %v3648
  %v3650 = vadd.f32 %v3644, 1e-08
  %v3651 = vrsqrt.pop %v3650
  %v3652 = vmul.f32 %v3649, %v3651
  %v3654 = vsel %vm2396, %v3652, 0
  %3656 = vmatprep.subr.mxu0 0.0
  %3657 = vmatpush1.msra.mxu0 0.0
  %3658 = vmatprep.subr.mxu0 0.0
  %3659 = vmatpush1.msra.mxu0 0.0
  %3660 = vmatprep.subr.mxu0 0.0
  %3661 = vmatpush1.msra.mxu0 0.0
  %3662 = vmatprep.subr.mxu0 0.0
  %3663 = vmatpush1.msra.mxu0 0.0
  %3664 = vmatprep.subr.mxu0 0.0
  %3665 = vmatpush1.msra.mxu0 0.0
  %3666 = vmatprep.subr.mxu0 0.0
  %3667 = vmatpush1.msra.mxu0 0.0
  %3668 = vmatprep.subr.mxu0 0.0
  %3669 = vmatpush1.msra.mxu0 0.0
  %3670 = vmatprep.subr.mxu0 0.0
  %3671 = vmatpush1.msra.mxu0 0.0
  %3672 = vmatprep.subr.mxu0 0.0
  %3673 = vmatpush1.msra.mxu0 0.0
  %3674 = vmatprep.subr.mxu0 0.0
  %3675 = vmatpush1.msra.mxu0 0.0
  %3676 = vmatprep.subr.mxu0 0.0
  %3677 = vmatpush1.msra.mxu0 0.0
  %3678 = vmatprep.subr.mxu0 0.0
  %3679 = vmatpush1.msra.mxu0 0.0
  %3680 = vmatprep.subr.mxu0 0.0
  %3681 = vmatpush1.msra.mxu0 0.0
  %3682 = vmatprep.subr.mxu0 0.0
  %3683 = vmatpush1.msra.mxu0 0.0
  %3684 = vmatprep.subr.mxu0 %v2404
  %3685 = vmatpush1.msra.mxu0 %v2401
  %3686 = vmatprep.subr.mxu0 %v2255
  %3687 = vmatpush1.msra.mxu0 %v2254
  %3688 = vmatprep.subr.mxu0 0.0
  %3689 = vmatpush2.msra.mxu0 0.0
  %3690 = vmatprep.subr.mxu0 0.0
  %3691 = vmatpush2.msra.mxu0 0.0
  %3692 = vmatprep.subr.mxu0 0.0
  %3693 = vmatpush2.msra.mxu0 0.0
  %3694 = vmatprep.subr.mxu0 0.0
  %3695 = vmatpush2.msra.mxu0 0.0
  %3696 = vmatprep.subr.mxu0 0.0
  %3697 = vmatpush2.msra.mxu0 0.0
  %3698 = vmatprep.subr.mxu0 0.0
  %3699 = vmatpush2.msra.mxu0 0.0
  %3700 = vmatprep.subr.mxu0 0.0
  %3701 = vmatpush2.msra.mxu0 0.0
  %3702 = vmatprep.subr.mxu0 0.0
  %3703 = vmatpush2.msra.mxu0 0.0
  %3704 = vmatprep.subr.mxu0 0.0
  %3705 = vmatpush2.msra.mxu0 0.0
  %3706 = vmatprep.subr.mxu0 0.0
  %3707 = vmatpush2.msra.mxu0 0.0
  %3708 = vmatprep.subr.mxu0 0.0
  %3709 = vmatpush2.msra.mxu0 0.0
  %3710 = vmatprep.subr.mxu0 0.0
  %3711 = vmatpush2.msra.mxu0 0.0
  %3712 = vmatprep.subr.mxu0 0.0
  %3713 = vmatpush2.msra.mxu0 0.0
  %3714 = vmatprep.subr.mxu0 0.0
  %3715 = vmatpush2.msra.mxu0 0.0
  %3716 = vmatprep.subr.mxu0 0.0
  %3717 = vmatpush2.msra.mxu0 0.0
  %3718 = vmatprep.subr.mxu0 0.0
  %3719 = vmatpush2.msra.mxu0 0.0
  %3720 = vmatprep.mubr.f32.mxu0 0.0
  %3721 = vmatmul.mubr.f32.gmra.mxu0 %v3654
  %v3722 = vpop.f32.mrf.mxu0
  %v3723 = vadd.f32 0.0, %v3722
  %v3724 = vpop.f32.mrf.mxu0
  %v3725 = vadd.f32 0.0, %v3724
  %3726 = vdwg.mxu0
  %v3729 = vrot.slane %v3723, 1
  %v3730 = vrot.slane %v3725, 1
  %v3735 = vmul.f32 %v3528, %v3723
  %v3736 = vmul.f32 %v3541, %v3725
  %v3737 = vmul.f32 %v3550, %v3729
  %v3738 = vmul.f32 %v3563, %v3730
  %v3739 = vmul.f32 %v3735, %v3735
  %v3740 = vmul.f32 %v3736, %v3736
  %v3741 = vmul.f32 %v3737, %v3737
  %v3742 = vmul.f32 %v3738, %v3738
  %v3747 = vrot.slane %v3741, 7
  %v3748 = vsel %vm2314, %v3747, %v3739
  %v3749 = vrot.slane %v3742, 7
  %v3750 = vsel %vm2314, %v3749, %v3740
  %v3752 = vsel %vm1165, %v3750, 0
  %3754 = vmatprep.subr.mxu0 0.0
  %3755 = vmatpush1.msra.mxu0 %v2249
  %3756 = vmatprep.subr.mxu0 0.0
  %3757 = vmatpush1.msra.mxu0 %v2248
  %3758 = vmatprep.subr.mxu0 0.0
  %3759 = vmatpush1.msra.mxu0 %v2247
  %3760 = vmatprep.subr.mxu0 0.0
  %3761 = vmatpush1.msra.mxu0 %v2246
  %3762 = vmatprep.subr.mxu0 0.0
  %3763 = vmatpush1.msra.mxu0 %v2245
  %3764 = vmatprep.subr.mxu0 0.0
  %3765 = vmatpush1.msra.mxu0 %v2244
  %3766 = vmatprep.subr.mxu0 0.0
  %3767 = vmatpush1.msra.mxu0 %v2243
  %3768 = vmatprep.subr.mxu0 0.0
  %3769 = vmatpush1.msra.mxu0 %v2242
  %3770 = vmatprep.subr.mxu0 0.0
  %3771 = vmatpush1.msra.mxu0 %v2241
  %3772 = vmatprep.subr.mxu0 0.0
  %3773 = vmatpush1.msra.mxu0 %v2240
  %3774 = vmatprep.subr.mxu0 0.0
  %3775 = vmatpush1.msra.mxu0 %v2239
  %3776 = vmatprep.subr.mxu0 0.0
  %3777 = vmatpush1.msra.mxu0 %v2238
  %3778 = vmatprep.subr.mxu0 0.0
  %3779 = vmatpush1.msra.mxu0 %v2237
  %3780 = vmatprep.subr.mxu0 0.0
  %3781 = vmatpush1.msra.mxu0 %v2236
  %3782 = vmatprep.subr.mxu0 0.0
  %3783 = vmatpush1.msra.mxu0 %v2235
  %3784 = vmatprep.subr.mxu0 0.0
  %3785 = vmatpush1.msra.mxu0 %v2234
  %3786 = vmatprep.subr.mxu0 0.0
  %3787 = vmatpush2.msra.mxu0 0.0
  %3788 = vmatprep.subr.mxu0 0.0
  %3789 = vmatpush2.msra.mxu0 0.0
  %3790 = vmatprep.subr.mxu0 0.0
  %3791 = vmatpush2.msra.mxu0 0.0
  %3792 = vmatprep.subr.mxu0 0.0
  %3793 = vmatpush2.msra.mxu0 0.0
  %3794 = vmatprep.subr.mxu0 0.0
  %3795 = vmatpush2.msra.mxu0 0.0
  %3796 = vmatprep.subr.mxu0 0.0
  %3797 = vmatpush2.msra.mxu0 0.0
  %3798 = vmatprep.subr.mxu0 0.0
  %3799 = vmatpush2.msra.mxu0 0.0
  %3800 = vmatprep.subr.mxu0 0.0
  %3801 = vmatpush2.msra.mxu0 0.0
  %3802 = vmatprep.subr.mxu0 0.0
  %3803 = vmatpush2.msra.mxu0 0.0
  %3804 = vmatprep.subr.mxu0 0.0
  %3805 = vmatpush2.msra.mxu0 0.0
  %3806 = vmatprep.subr.mxu0 0.0
  %3807 = vmatpush2.msra.mxu0 0.0
  %3808 = vmatprep.subr.mxu0 0.0
  %3809 = vmatpush2.msra.mxu0 0.0
  %3810 = vmatprep.subr.mxu0 0.0
  %3811 = vmatpush2.msra.mxu0 %v2253
  %3812 = vmatprep.subr.mxu0 0.0
  %3813 = vmatpush2.msra.mxu0 %v2252
  %3814 = vmatprep.subr.mxu0 0.0
  %3815 = vmatpush2.msra.mxu0 %v2251
  %3816 = vmatprep.subr.mxu0 0.0
  %3817 = vmatpush2.msra.mxu0 %v2250
  %3818 = vmatprep.mubr.f32.mxu0 %v3752
  %3819 = vmatmul.mubr.f32.gmra.mxu0 %v3748
  %v3820 = vpop.f32.mrf.mxu0
  %v3821 = vadd.f32 0.0, %v3820
  %v3822 = vpop.f32.mrf.mxu0
  %3823 = vdwg.mxu0
  %v3824 = vadd.f32 %v3821, 1.0
  %v3825 = vrcp.pop %v3824
  %v3826 = vmul.f32 %v3821, %v3825
  %v3827 = vadd.f32 %v3821, 1e-08
  %v3828 = vrsqrt.pop %v3827
  %v3829 = vmul.f32 %v3826, %v3828
  %v3831 = vsel %vm2396, %v3829, 0
  %3833 = vmatprep.subr.mxu0 0.0
  %3834 = vmatpush1.msra.mxu0 0.0
  %3835 = vmatprep.subr.mxu0 0.0
  %3836 = vmatpush1.msra.mxu0 0.0
  %3837 = vmatprep.subr.mxu0 0.0
  %3838 = vmatpush1.msra.mxu0 0.0
  %3839 = vmatprep.subr.mxu0 0.0
  %3840 = vmatpush1.msra.mxu0 0.0
  %3841 = vmatprep.subr.mxu0 0.0
  %3842 = vmatpush1.msra.mxu0 0.0
  %3843 = vmatprep.subr.mxu0 0.0
  %3844 = vmatpush1.msra.mxu0 0.0
  %3845 = vmatprep.subr.mxu0 0.0
  %3846 = vmatpush1.msra.mxu0 0.0
  %3847 = vmatprep.subr.mxu0 0.0
  %3848 = vmatpush1.msra.mxu0 0.0
  %3849 = vmatprep.subr.mxu0 0.0
  %3850 = vmatpush1.msra.mxu0 0.0
  %3851 = vmatprep.subr.mxu0 0.0
  %3852 = vmatpush1.msra.mxu0 0.0
  %3853 = vmatprep.subr.mxu0 0.0
  %3854 = vmatpush1.msra.mxu0 0.0
  %3855 = vmatprep.subr.mxu0 0.0
  %3856 = vmatpush1.msra.mxu0 0.0
  %3857 = vmatprep.subr.mxu0 0.0
  %3858 = vmatpush1.msra.mxu0 0.0
  %3859 = vmatprep.subr.mxu0 0.0
  %3860 = vmatpush1.msra.mxu0 0.0
  %3861 = vmatprep.subr.mxu0 %v2404
  %3862 = vmatpush1.msra.mxu0 %v2401
  %3863 = vmatprep.subr.mxu0 %v2255
  %3864 = vmatpush1.msra.mxu0 %v2254
  %3865 = vmatprep.subr.mxu0 0.0
  %3866 = vmatpush2.msra.mxu0 0.0
  %3867 = vmatprep.subr.mxu0 0.0
  %3868 = vmatpush2.msra.mxu0 0.0
  %3869 = vmatprep.subr.mxu0 0.0
  %3870 = vmatpush2.msra.mxu0 0.0
  %3871 = vmatprep.subr.mxu0 0.0
  %3872 = vmatpush2.msra.mxu0 0.0
  %3873 = vmatprep.subr.mxu0 0.0
  %3874 = vmatpush2.msra.mxu0 0.0
  %3875 = vmatprep.subr.mxu0 0.0
  %3876 = vmatpush2.msra.mxu0 0.0
  %3877 = vmatprep.subr.mxu0 0.0
  %3878 = vmatpush2.msra.mxu0 0.0
  %3879 = vmatprep.subr.mxu0 0.0
  %3880 = vmatpush2.msra.mxu0 0.0
  %3881 = vmatprep.subr.mxu0 0.0
  %3882 = vmatpush2.msra.mxu0 0.0
  %3883 = vmatprep.subr.mxu0 0.0
  %3884 = vmatpush2.msra.mxu0 0.0
  %3885 = vmatprep.subr.mxu0 0.0
  %3886 = vmatpush2.msra.mxu0 0.0
  %3887 = vmatprep.subr.mxu0 0.0
  %3888 = vmatpush2.msra.mxu0 0.0
  %3889 = vmatprep.subr.mxu0 0.0
  %3890 = vmatpush2.msra.mxu0 0.0
  %3891 = vmatprep.subr.mxu0 0.0
  %3892 = vmatpush2.msra.mxu0 0.0
  %3893 = vmatprep.subr.mxu0 0.0
  %3894 = vmatpush2.msra.mxu0 0.0
  %3895 = vmatprep.subr.mxu0 0.0
  %3896 = vmatpush2.msra.mxu0 0.0
  %3897 = vmatprep.mubr.f32.mxu0 0.0
  %3898 = vmatmul.mubr.f32.gmra.mxu0 %v3831
  %v3899 = vpop.f32.mrf.mxu0
  %v3900 = vadd.f32 0.0, %v3899
  %v3901 = vpop.f32.mrf.mxu0
  %v3902 = vadd.f32 0.0, %v3901
  %3903 = vdwg.mxu0
  %v3906 = vrot.slane %v3900, 1
  %v3907 = vrot.slane %v3902, 1
  %v3912 = vmul.f32 %v3735, %v3900
  %v3913 = vmul.f32 %v3736, %v3902
  %v3914 = vmul.f32 %v3737, %v3906
  %v3915 = vmul.f32 %v3738, %v3907
  %v3916 = vmul.f32 %v3912, %v3912
  %v3917 = vmul.f32 %v3913, %v3913
  %v3918 = vmul.f32 %v3914, %v3914
  %v3919 = vmul.f32 %v3915, %v3915
  %v3924 = vrot.slane %v3918, 7
  %v3925 = vsel %vm2314, %v3924, %v3916
  %v3926 = vrot.slane %v3919, 7
  %v3927 = vsel %vm2314, %v3926, %v3917
  %v3929 = vsel %vm1165, %v3927, 0
  %3931 = vmatprep.subr.mxu0 0.0
  %3932 = vmatpush1.msra.mxu0 %v2249
  %3933 = vmatprep.subr.mxu0 0.0
  %3934 = vmatpush1.msra.mxu0 %v2248
  %3935 = vmatprep.subr.mxu0 0.0
  %3936 = vmatpush1.msra.mxu0 %v2247
  %3937 = vmatprep.subr.mxu0 0.0
  %3938 = vmatpush1.msra.mxu0 %v2246
  %3939 = vmatprep.subr.mxu0 0.0
  %3940 = vmatpush1.msra.mxu0 %v2245
  %3941 = vmatprep.subr.mxu0 0.0
  %3942 = vmatpush1.msra.mxu0 %v2244
  %3943 = vmatprep.subr.mxu0 0.0
  %3944 = vmatpush1.msra.mxu0 %v2243
  %3945 = vmatprep.subr.mxu0 0.0
  %3946 = vmatpush1.msra.mxu0 %v2242
  %3947 = vmatprep.subr.mxu0 0.0
  %3948 = vmatpush1.msra.mxu0 %v2241
  %3949 = vmatprep.subr.mxu0 0.0
  %3950 = vmatpush1.msra.mxu0 %v2240
  %3951 = vmatprep.subr.mxu0 0.0
  %3952 = vmatpush1.msra.mxu0 %v2239
  %3953 = vmatprep.subr.mxu0 0.0
  %3954 = vmatpush1.msra.mxu0 %v2238
  %3955 = vmatprep.subr.mxu0 0.0
  %3956 = vmatpush1.msra.mxu0 %v2237
  %3957 = vmatprep.subr.mxu0 0.0
  %3958 = vmatpush1.msra.mxu0 %v2236
  %3959 = vmatprep.subr.mxu0 0.0
  %3960 = vmatpush1.msra.mxu0 %v2235
  %3961 = vmatprep.subr.mxu0 0.0
  %3962 = vmatpush1.msra.mxu0 %v2234
  %3963 = vmatprep.subr.mxu0 0.0
  %3964 = vmatpush2.msra.mxu0 0.0
  %3965 = vmatprep.subr.mxu0 0.0
  %3966 = vmatpush2.msra.mxu0 0.0
  %3967 = vmatprep.subr.mxu0 0.0
  %3968 = vmatpush2.msra.mxu0 0.0
  %3969 = vmatprep.subr.mxu0 0.0
  %3970 = vmatpush2.msra.mxu0 0.0
  %3971 = vmatprep.subr.mxu0 0.0
  %3972 = vmatpush2.msra.mxu0 0.0
  %3973 = vmatprep.subr.mxu0 0.0
  %3974 = vmatpush2.msra.mxu0 0.0
  %3975 = vmatprep.subr.mxu0 0.0
  %3976 = vmatpush2.msra.mxu0 0.0
  %3977 = vmatprep.subr.mxu0 0.0
  %3978 = vmatpush2.msra.mxu0 0.0
  %3979 = vmatprep.subr.mxu0 0.0
  %3980 = vmatpush2.msra.mxu0 0.0
  %3981 = vmatprep.subr.mxu0 0.0
  %3982 = vmatpush2.msra.mxu0 0.0
  %3983 = vmatprep.subr.mxu0 0.0
  %3984 = vmatpush2.msra.mxu0 0.0
  %3985 = vmatprep.subr.mxu0 0.0
  %3986 = vmatpush2.msra.mxu0 0.0
  %3987 = vmatprep.subr.mxu0 0.0
  %3988 = vmatpush2.msra.mxu0 %v2253
  %3989 = vmatprep.subr.mxu0 0.0
  %3990 = vmatpush2.msra.mxu0 %v2252
  %3991 = vmatprep.subr.mxu0 0.0
  %3992 = vmatpush2.msra.mxu0 %v2251
  %3993 = vmatprep.subr.mxu0 0.0
  %3994 = vmatpush2.msra.mxu0 %v2250
  %3995 = vmatprep.mubr.f32.mxu0 %v3929
  %3996 = vmatmul.mubr.f32.gmra.mxu0 %v3925
  %v3997 = vpop.f32.mrf.mxu0
  %v3998 = vadd.f32 0.0, %v3997
  %v3999 = vpop.f32.mrf.mxu0
  %4000 = vdwg.mxu0
  %v4001 = vrsqrt.pop %v3998
  %v4002 = vmul.f32 %v3998, %v4001
  %vm4003 = vcmp.eq.f32.partialorder %v3998, inf
  %v4004 = vsel %vm4003, %v3998, %v4002
  %vm4005 = vcmp.eq.f32.partialorder %v3998, 0.0
  %v4006 = vand.u32 %v3998, 2147483648
  %v4007 = vsel %vm4005, %v4006, %v4004
  %v4008 = vadd.f32 %v4007, 1.0
  %v4010 = vsel %vm2396, %v4008, 0
  %4012 = vmatprep.subr.mxu0 0.0
  %4013 = vmatpush1.msra.mxu0 0.0
  %4014 = vmatprep.subr.mxu0 0.0
  %4015 = vmatpush1.msra.mxu0 0.0
  %4016 = vmatprep.subr.mxu0 0.0
  %4017 = vmatpush1.msra.mxu0 0.0
  %4018 = vmatprep.subr.mxu0 0.0
  %4019 = vmatpush1.msra.mxu0 0.0
  %4020 = vmatprep.subr.mxu0 0.0
  %4021 = vmatpush1.msra.mxu0 0.0
  %4022 = vmatprep.subr.mxu0 0.0
  %4023 = vmatpush1.msra.mxu0 0.0
  %4024 = vmatprep.subr.mxu0 0.0
  %4025 = vmatpush1.msra.mxu0 0.0
  %4026 = vmatprep.subr.mxu0 0.0
  %4027 = vmatpush1.msra.mxu0 0.0
  %4028 = vmatprep.subr.mxu0 0.0
  %4029 = vmatpush1.msra.mxu0 0.0
  %4030 = vmatprep.subr.mxu0 0.0
  %4031 = vmatpush1.msra.mxu0 0.0
  %4032 = vmatprep.subr.mxu0 0.0
  %4033 = vmatpush1.msra.mxu0 0.0
  %4034 = vmatprep.subr.mxu0 0.0
  %4035 = vmatpush1.msra.mxu0 0.0
  %4036 = vmatprep.subr.mxu0 0.0
  %4037 = vmatpush1.msra.mxu0 0.0
  %4038 = vmatprep.subr.mxu0 0.0
  %4039 = vmatpush1.msra.mxu0 0.0
  %4040 = vmatprep.subr.mxu0 %v2404
  %4041 = vmatpush1.msra.mxu0 %v2401
  %4042 = vmatprep.subr.mxu0 %v2255
  %4043 = vmatpush1.msra.mxu0 %v2254
  %4044 = vmatprep.subr.mxu0 0.0
  %4045 = vmatpush2.msra.mxu0 0.0
  %4046 = vmatprep.subr.mxu0 0.0
  %4047 = vmatpush2.msra.mxu0 0.0
  %4048 = vmatprep.subr.mxu0 0.0
  %4049 = vmatpush2.msra.mxu0 0.0
  %4050 = vmatprep.subr.mxu0 0.0
  %4051 = vmatpush2.msra.mxu0 0.0
  %4052 = vmatprep.subr.mxu0 0.0
  %4053 = vmatpush2.msra.mxu0 0.0
  %4054 = vmatprep.subr.mxu0 0.0
  %4055 = vmatpush2.msra.mxu0 0.0
  %4056 = vmatprep.subr.mxu0 0.0
  %4057 = vmatpush2.msra.mxu0 0.0
  %4058 = vmatprep.subr.mxu0 0.0
  %4059 = vmatpush2.msra.mxu0 0.0
  %4060 = vmatprep.subr.mxu0 0.0
  %4061 = vmatpush2.msra.mxu0 0.0
  %4062 = vmatprep.subr.mxu0 0.0
  %4063 = vmatpush2.msra.mxu0 0.0
  %4064 = vmatprep.subr.mxu0 0.0
  %4065 = vmatpush2.msra.mxu0 0.0
  %4066 = vmatprep.subr.mxu0 0.0
  %4067 = vmatpush2.msra.mxu0 0.0
  %4068 = vmatprep.subr.mxu0 0.0
  %4069 = vmatpush2.msra.mxu0 0.0
  %4070 = vmatprep.subr.mxu0 0.0
  %4071 = vmatpush2.msra.mxu0 0.0
  %4072 = vmatprep.subr.mxu0 0.0
  %4073 = vmatpush2.msra.mxu0 0.0
  %4074 = vmatprep.subr.mxu0 0.0
  %4075 = vmatpush2.msra.mxu0 0.0
  %4076 = vmatprep.mubr.f32.mxu0 0.0
  %4077 = vmatmul.mubr.f32.gmra.mxu0 %v4010
  %v4078 = vpop.f32.mrf.mxu0
  %v4079 = vadd.f32 0.0, %v4078
  %v4080 = vpop.f32.mrf.mxu0
  %v4081 = vadd.f32 0.0, %v4080
  %4082 = vdwg.mxu0
  %v4085 = vrot.slane %v4079, 1
  %v4086 = vrot.slane %v4081, 1
  %v4091 = vmul.f32 %v3912, %v4079
  %v4092 = vmul.f32 %v3913, %v4081
  %v4093 = vmul.f32 %v3914, %v4085
  %v4094 = vmul.f32 %v3915, %v4086
  %v4095 = vld [vmem:[%s13] sm:$0xff]
  %v4096 = vld [vmem:[%s13 + $0x8] sm:$0xff]
  %v4097 = vld [vmem:[%s13 + $0x10] sm:$0xff]
  %v4098 = vld [vmem:[%s13 + $0x18] sm:$0xff]
  %v4099 = vld [vmem:[%s13 + $0x20] sm:$0xff]
  %v4100 = vld [vmem:[%s13 + $0x28] sm:$0xff]
  %v4101 = vld [vmem:[%s13 + $0x30] sm:$0xff]
  %v4102 = vld [vmem:[%s13 + $0x38] sm:$0xff]
  %v4103 = vld [vmem:[%s13 + $0x40] sm:$0xff]
  %v4104 = vld [vmem:[%s13 + $0x48] sm:$0xff]
  %v4105 = vld [vmem:[%s13 + $0x50] sm:$0xff]
  %v4106 = vld [vmem:[%s13 + $0x58] sm:$0xff]
  %v4107 = vld [vmem:[%s13 + $0x60] sm:$0xff]
  %v4108 = vld [vmem:[%s13 + $0x68] sm:$0xff]
  %v4109 = vld [vmem:[%s13 + $0x70] sm:$0xff]
  %v4110 = vld [vmem:[%s13 + $0x78] sm:$0xff]
  %v4111 = vld [vmem:[%s13 + $0x80] sm:$0xff]
  %v4112 = vld [vmem:[%s13 + $0x88] sm:$0xff]
  %v4113 = vld [vmem:[%s13 + $0x90] sm:$0xff]
  %v4114 = vld [vmem:[%s13 + $0x98] sm:$0xff]
  %v4119 = vrot.slane %v4093, 7
  %v4120 = vsel %vm2314, %v4119, %v4091
  %v4121 = vrot.slane %v4094, 7
  %v4122 = vsel %vm2314, %v4121, %v4092
  %v4124 = vsel %vm1165, %v4122, 0
  %4126 = vmatprep.subr.mxu0 0.0
  %4127 = vmatpush1.msra.mxu0 %v4110
  %4128 = vmatprep.subr.mxu0 0.0
  %4129 = vmatpush1.msra.mxu0 %v4109
  %4130 = vmatprep.subr.mxu0 0.0
  %4131 = vmatpush1.msra.mxu0 %v4108
  %4132 = vmatprep.subr.mxu0 0.0
  %4133 = vmatpush1.msra.mxu0 %v4107
  %4134 = vmatprep.subr.mxu0 0.0
  %4135 = vmatpush1.msra.mxu0 %v4106
  %4136 = vmatprep.subr.mxu0 0.0
  %4137 = vmatpush1.msra.mxu0 %v4105
  %4138 = vmatprep.subr.mxu0 0.0
  %4139 = vmatpush1.msra.mxu0 %v4104
  %4140 = vmatprep.subr.mxu0 0.0
  %4141 = vmatpush1.msra.mxu0 %v4103
  %4142 = vmatprep.subr.mxu0 0.0
  %4143 = vmatpush1.msra.mxu0 %v4102
  %4144 = vmatprep.subr.mxu0 0.0
  %4145 = vmatpush1.msra.mxu0 %v4101
  %4146 = vmatprep.subr.mxu0 0.0
  %4147 = vmatpush1.msra.mxu0 %v4100
  %4148 = vmatprep.subr.mxu0 0.0
  %4149 = vmatpush1.msra.mxu0 %v4099
  %4150 = vmatprep.subr.mxu0 0.0
  %4151 = vmatpush1.msra.mxu0 %v4098
  %4152 = vmatprep.subr.mxu0 0.0
  %4153 = vmatpush1.msra.mxu0 %v4097
  %4154 = vmatprep.subr.mxu0 0.0
  %4155 = vmatpush1.msra.mxu0 %v4096
  %4156 = vmatprep.subr.mxu0 0.0
  %4157 = vmatpush1.msra.mxu0 %v4095
  %4158 = vmatprep.subr.mxu0 0.0
  %4159 = vmatpush2.msra.mxu0 0.0
  %4160 = vmatprep.subr.mxu0 0.0
  %4161 = vmatpush2.msra.mxu0 0.0
  %4162 = vmatprep.subr.mxu0 0.0
  %4163 = vmatpush2.msra.mxu0 0.0
  %4164 = vmatprep.subr.mxu0 0.0
  %4165 = vmatpush2.msra.mxu0 0.0
  %4166 = vmatprep.subr.mxu0 0.0
  %4167 = vmatpush2.msra.mxu0 0.0
  %4168 = vmatprep.subr.mxu0 0.0
  %4169 = vmatpush2.msra.mxu0 0.0
  %4170 = vmatprep.subr.mxu0 0.0
  %4171 = vmatpush2.msra.mxu0 0.0
  %4172 = vmatprep.subr.mxu0 0.0
  %4173 = vmatpush2.msra.mxu0 0.0
  %4174 = vmatprep.subr.mxu0 0.0
  %4175 = vmatpush2.msra.mxu0 0.0
  %4176 = vmatprep.subr.mxu0 0.0
  %4177 = vmatpush2.msra.mxu0 0.0
  %4178 = vmatprep.subr.mxu0 0.0
  %4179 = vmatpush2.msra.mxu0 0.0
  %4180 = vmatprep.subr.mxu0 0.0
  %4181 = vmatpush2.msra.mxu0 0.0
  %4182 = vmatprep.subr.mxu0 0.0
  %4183 = vmatpush2.msra.mxu0 %v4114
  %4184 = vmatprep.subr.mxu0 0.0
  %4185 = vmatpush2.msra.mxu0 %v4113
  %4186 = vmatprep.subr.mxu0 0.0
  %4187 = vmatpush2.msra.mxu0 %v4112
  %4188 = vmatprep.subr.mxu0 0.0
  %4189 = vmatpush2.msra.mxu0 %v4111
  %4190 = vmatprep.mubr.f32.mxu0 %v4124
  %4191 = vmatmul.mubr.f32.gmra.mxu0 %v4120
  %v4192 = vpop.f32.mrf.mxu0
  %v4193 = vadd.f32 0.0, %v4192
  %v4194 = vpop.f32.mrf.mxu0
  %4195 = vdwg.mxu0
  %v4196 = vmul.f32 %v4193, %v4193
  %vm4197 = vcmask 418816
  %v4198 = vsel %vm4197, %v4196, 0.0
  %4199 = vadd.xlane.f32.xlu0 %v4198
  %v4200 = vpop.xlane.xlu0 %4199
  %v4201 = vadd.f32 %v4200, 1.0
  %v4202 = vrcp.pop %v4201
  %v4203 = vmul.f32 %v4200, %v4202
  %v4204 = vadd.f32 %v4200, 1e-08
  %v4205 = vrsqrt.pop %v4204
  %v4206 = vmul.f32 %v4203, %v4205
  %v4207 = vmul.f32 %v4193, %v4206
  %v4208 = vld [vmem:[%s14] sm:$0x1]
  %v4210 = vlaneseq
  %v4211 = vshrl.u32 %v4210, 7
  %v4212 = vsub.s32 0, %v4211
  %v4213 = vrot.slane %v4208, %v4212
  %v4215 = vmul.f32 %v4207, %v4213
  %v4216 = vsel %vm4197, %v4215, 0.0
  %4217 = vadd.xlane.f32.xlu0 %v4216
  %v4218 = vpop.xlane.xlu0 %4217
  %v4219 = vld [vmem:[#allocation2] sm:$0x1]
  %v4221 = vlaneseq
  %v4222 = vshrl.u32 %v4221, 7
  %v4223 = vsub.s32 0, %v4222
  %v4224 = vrot.slane %v4219, %v4223
  %v4226 = vadd.f32 %v4218, %v4224
  %v4227 = vsub.f32 0.0, %v4226
  %v4228 = vmul.f32 %v4227, 1.442695
  %v4229 = vpow.pop %v4228
  %v4230 = vadd.f32 %v4229, 1.0
  %v4231 = vrcp.pop %v4230
  %v4232 = vmul.f32 1.0, %v4231
  %4235 = vrot.lane.b32.xlu0 %v4207, 32
  %v4236 = vpop.permute.xlu0 %4235
  %4239 = vrot.lane.b32.xlu0 %v4007, 84
  %v4240 = vpop.permute.xlu0 %4239
  %4243 = vrot.lane.b32.xlu0 %v4232, 94
  %v4244 = vpop.permute.xlu0 %4243
  %v4246 = vsel %vm1165, %v4122, %v4236
  %vm4247 = vcmask 687104
  %v4248 = vsel %vm4247, %v4246, %v4240
  %vm4249 = vcmask 769024
  %v4250 = vsel %vm4249, %v4248, %v4244
  %vm4251 = vcmask 777216
  %v4252 = vsel %vm4251, %v4250, 0.0
  %v4254 = vcombine.low %v4120, %v4252
  %v4256 = vunpack.c.l.s4 1983009808
  %v4257 = vunpack.c.0.s8 %v4256
  %v4258 = vlaneseq
  %v4259 = vshrl.u32 %v4258, 7
  %v4260 = vsub.s32 %v4257, %v4259
  %v4261 = vrot.slane %v4254, %v4260
  %4263 = vst [vmem:[%s17] sm:$0xf] %v4261
  // Predicated region
  $region66: #{discriminator_forward.1} parent=0 // pred_check
    _
  $region67: #{discriminator_forward.1} parent=0 // pred_check_branch
    %4265 = sbr.rel (0) target = $region69
  $region68: #{discriminator_forward.1} parent=0 // pred_region
    _
  $region69: #{discriminator_forward.1} parent=0 // pred_fallthru
    _
  // Predicated region
  $region70: #{discriminator_forward.1} parent=0 // pred_check
    _
  $region71: #{discriminator_forward.1} parent=0 // pred_check_branch
    %4267 = sbr.rel (0) target = $region73
  $region72: #{discriminator_forward.1} parent=0 // pred_region
    _
  $region73: #{discriminator_forward.1} parent=0 // pred_fallthru
    _
  // Predicated region
  $region74: #{discriminator_forward.1} parent=0 // pred_check
    _
  $region75: #{discriminator_forward.1} parent=0 // pred_check_branch
    %4269 = sbr.rel (0) target = $region77
  $region76: #{discriminator_forward.1} parent=0 // pred_region
    _
  $region77: #{discriminator_forward.1} parent=0 // pred_fallthru
    _
  // Predicated region
  $region78: #{discriminator_forward.1} parent=0 // pred_check
    _
  $region79: #{discriminator_forward.1} parent=0 // pred_check_branch
    %4271 = sbr.rel (0) target = $region81
  $region80: #{discriminator_forward.1} parent=0 // pred_region
    _
  $region81: #{discriminator_forward.1} parent=0 // pred_fallthru
    _

</llo_original>
